<compile_context>
chip_gen: v5e
topology: v5e:2x2
jax: 0.10.0
libtpu: 0.0.40
codegen_flags: <defaults>
</compile_context>

<pallas_src>
import functools
import math

import jax
import jax.numpy as jnp
from jax.experimental import pallas as pl
from jax.experimental.pallas import tpu as pltpu


_VMEM_LIMIT = 64 * 1024 * 1024   # raise scoped-VMEM budget for resident-weight kernels


# ----------------------------- helpers -----------------------------

def _round_up(x, m):
    return ((x + m - 1) // m) * m


def _row_tile(M, pref):
    """Row tile: preferred size, or M rounded up to a sublane multiple if M is small."""
    return min(pref, _round_up(M, 8))


def _pad_rows(x, mult):
    """Pad the leading (row) dim up to a multiple of `mult` (zeros)."""
    M = x.shape[0]
    pad = _round_up(M, mult) - M
    if pad:
        x = jnp.pad(x, ((0, pad),) + ((0, 0),) * (x.ndim - 1))
    return x


def _heads_per_block(num_heads, head_dim):
    """Pack heads so one MHA tile is >=128 lanes wide when possible."""
    hpb = max(1, min(num_heads, 128 // max(head_dim, 1)))
    while num_heads % hpb:
        hpb -= 1
    return hpb


def _seq_tile(S, pref=256):
    """Query tile for attention: bounds live (tq, S) f32 intermediates for long sequences."""
    if S <= pref:
        return S
    for t in range(pref, 7, -1):
        if S % t == 0 and t % 8 == 0:
            return t
    return S


def _batch_tile(B, S, H, budget_bytes=4 << 20):
    """Batch tile for the label-fusion kernel (multiple of 8 or the full batch)."""
    if B <= 8:
        return B
    bb = 8
    while bb * 2 <= B and B % (bb * 2) == 0 and (bb * 2) * S * H * 2 <= budget_bytes:
        bb *= 2
    return bb if B % bb == 0 else B


# ----------------------------- fused embedding-sum + LayerNorm -----------------------------

def _emb_ln_kernel(we_ref, te_ref, pe_ref, g_ref, b_ref, o_ref, *, eps):
    x = (we_ref[0].astype(jnp.float32) + te_ref[0].astype(jnp.float32)
         + pe_ref[...].astype(jnp.float32))
    mu = jnp.mean(x, axis=-1, keepdims=True)
    var = jnp.mean(jnp.square(x - mu), axis=-1, keepdims=True)
    y = (x - mu) * jax.lax.rsqrt(var + eps)
    o_ref[0] = (y * g_ref[...] + b_ref[...]).astype(o_ref.dtype)


def pallas_embed_layernorm(we, te, pe, g, b, *, eps=1e-12, out_dtype=jnp.bfloat16):
    B, S, H = we.shape
    return pl.pallas_call(
        functools.partial(_emb_ln_kernel, eps=eps),
        out_shape=jax.ShapeDtypeStruct((B, S, H), out_dtype),
        grid=(B,),
        in_specs=[pl.BlockSpec((1, S, H), lambda b_: (b_, 0, 0)),
                  pl.BlockSpec((1, S, H), lambda b_: (b_, 0, 0)),
                  pl.BlockSpec((S, H), lambda b_: (0, 0)),
                  pl.BlockSpec((1, H), lambda b_: (0, 0)),
                  pl.BlockSpec((1, H), lambda b_: (0, 0))],
        out_specs=pl.BlockSpec((1, S, H), lambda b_: (b_, 0, 0)),
        compiler_params=pltpu.CompilerParams(dimension_semantics=("parallel",)),
    )(we, te, pe, g, b)


# ----------------------------- generic linear (weight VMEM-resident) -----------------------------

def _linear_kernel(x_ref, w_ref, b_ref, o_ref, *, activation):
    y = jnp.dot(x_ref[...], w_ref[...], preferred_element_type=jnp.float32) + b_ref[...]
    if activation == "tanh":
        y = jnp.tanh(y)
    elif activation == "gelu":
        # TODO(synk): BERT's hidden_act is erf-GELU; tanh approximation used for safe lowering.
        y = jax.nn.gelu(y, approximate=True)
    o_ref[...] = y.astype(o_ref.dtype)


def pallas_linear(x, w, b, activation=None, out_dtype=jnp.float32, tm=256):
    M, K = x.shape
    N = w.shape[1]
    tm = _row_tile(M, tm)
    xp = _pad_rows(x, tm)
    Mp = xp.shape[0]
    out = pl.pallas_call(
        functools.partial(_linear_kernel, activation=activation),
        out_shape=jax.ShapeDtypeStruct((Mp, N), out_dtype),
        grid=(Mp // tm,),
        in_specs=[pl.BlockSpec((tm, K), lambda i: (i, 0)),
                  pl.BlockSpec((K, N), lambda i: (0, 0)),     # weight: constant index, resident
                  pl.BlockSpec((1, N), lambda i: (0, 0))],
        out_specs=pl.BlockSpec((tm, N), lambda i: (i, 0)),
        compiler_params=pltpu.CompilerParams(
            dimension_semantics=("parallel",), vmem_limit_bytes=_VMEM_LIMIT),
    )(xp.astype(jnp.bfloat16), w.astype(jnp.bfloat16), b.astype(jnp.float32))
    return out[:M] if Mp != M else out


# ----------------------------- fused QKV projection (resident weight, q pre-scaled) -----------------------------

def _qkv_kernel(x_ref, w_ref, b_ref, oq_ref, ok_ref, ov_ref, *, H, q_scale):
    y = jnp.dot(x_ref[...], w_ref[...], preferred_element_type=jnp.float32) + b_ref[...]
    oq_ref[...] = (y[:, :H] * q_scale).astype(oq_ref.dtype)   # fold 1/sqrt(dh) into q here
    ok_ref[...] = y[:, H:2 * H].astype(ok_ref.dtype)
    ov_ref[...] = y[:, 2 * H:].astype(ov_ref.dtype)


def pallas_qkv(x, wqkv, bqkv, q_scale, *, tm=256, out_dtype=jnp.bfloat16):
    M, K = x.shape
    N3 = wqkv.shape[1]
    H = N3 // 3
    tm = _row_tile(M, tm)
    xp = _pad_rows(x, tm)
    Mp = xp.shape[0]
    q, k, v = pl.pallas_call(
        functools.partial(_qkv_kernel, H=H, q_scale=q_scale),
        out_shape=tuple(jax.ShapeDtypeStruct((Mp, H), out_dtype) for _ in range(3)),
        grid=(Mp // tm,),
        in_specs=[pl.BlockSpec((tm, K), lambda i: (i, 0)),
                  pl.BlockSpec((K, N3), lambda i: (0, 0)),    # wqkv resident
                  pl.BlockSpec((1, N3), lambda i: (0, 0))],
        out_specs=tuple(pl.BlockSpec((tm, H), lambda i: (i, 0)) for _ in range(3)),
        compiler_params=pltpu.CompilerParams(
            dimension_semantics=("parallel",), vmem_limit_bytes=_VMEM_LIMIT),
    )(xp.astype(jnp.bfloat16), wqkv.astype(jnp.bfloat16), bqkv.astype(jnp.float32))
    if Mp != M:
        q, k, v = q[:M], k[:M], v[:M]
    return q, k, v


# ----------------------------- multi-head attention (q-tiled) -----------------------------

def _mha_kernel(q_ref, k_ref, v_ref, bias_ref, o_ref, *, hpb, dh):
    bias = bias_ref[0]                               # (1, S) additive key bias, f32
    qb, kb, vb = q_ref[0], k_ref[0], v_ref[0]        # (tq, hw) / (S, hw) / (S, hw) bf16
    for h in range(hpb):                             # static unroll over heads in this block
        lo = h * dh
        q = qb[:, lo:lo + dh]                        # q already carries 1/sqrt(dh)
        k = kb[:, lo:lo + dh]
        v = vb[:, lo:lo + dh]
        s = jax.lax.dot_general(q, k, (((1,), (1,)), ((), ())),
                                preferred_element_type=jnp.float32) + bias      # (tq, S)
        m = jnp.max(s, axis=-1, keepdims=True)
        e = jnp.exp(s - m)
        p = (e * pl.reciprocal(jnp.sum(e, axis=-1, keepdims=True), approx=True)).astype(v.dtype)
        # write each head's context directly into its hidden slice (no lane concatenation)
        o_ref[0, :, lo:lo + dh] = jnp.dot(
            p, v, preferred_element_type=jnp.float32).astype(o_ref.dtype)


def pallas_mha(q, k, v, attn_bias, num_heads, head_dim, heads_per_block, *, tq_pref=256):
    """q, k, v: [B, S, H] (heads interleaved on the hidden axis); attn_bias: [B, 1, S] f32."""
    B, S, H = q.shape
    hw = heads_per_block * head_dim
    n_hb = num_heads // heads_per_block
    tq = _seq_tile(S, tq_pref)
    n_qt = S // tq
    return pl.pallas_call(
        functools.partial(_mha_kernel, hpb=heads_per_block, dh=head_dim),
        out_shape=jax.ShapeDtypeStruct((B, S, H), jnp.bfloat16),
        # q-tiles are the innermost grid axis so K/V blocks (constant index across it) are
        # fetched once per (batch, head-block) and stay VMEM-resident.
        grid=(B, n_hb, n_qt),
        in_specs=[pl.BlockSpec((1, tq, hw), lambda b, h, t: (b, t, h)),
                  pl.BlockSpec((1, S, hw), lambda b, h, t: (b, 0, h)),
                  pl.BlockSpec((1, S, hw), lambda b, h, t: (b, 0, h)),
                  pl.BlockSpec((1, 1, S), lambda b, h, t: (b, 0, 0))],
        out_specs=pl.BlockSpec((1, tq, hw), lambda b, h, t: (b, t, h)),
        compiler_params=pltpu.CompilerParams(
            dimension_semantics=("parallel", "parallel", "parallel"),
            vmem_limit_bytes=_VMEM_LIMIT),
    )(q, k, v, attn_bias)


# ----------------------------- fused linear + residual + LayerNorm -----------------------------

def _linear_res_ln_kernel(x_ref, w_ref, b_ref, res_ref, g_ref, bln_ref, o_ref, *, eps):
    y = (jnp.dot(x_ref[...], w_ref[...], preferred_element_type=jnp.float32)
         + b_ref[...] + res_ref[...].astype(jnp.float32))
    mu = jnp.mean(y, axis=-1, keepdims=True)
    var = jnp.mean(jnp.square(y - mu), axis=-1, keepdims=True)
    yn = (y - mu) * jax.lax.rsqrt(var + eps)
    o_ref[...] = (yn * g_ref[...] + bln_ref[...]).astype(o_ref.dtype)


def pallas_linear_residual_ln(x, w, b, residual, gamma, beta, *, eps=1e-12,
                              tm=256, out_dtype=jnp.bfloat16):
    M, K = x.shape
    N = w.shape[1]
    tm = _row_tile(M, tm)
    xp = _pad_rows(x, tm)
    rp = _pad_rows(residual, tm)
    Mp = xp.shape[0]
    out = pl.pallas_call(
        functools.partial(_linear_res_ln_kernel, eps=eps),
        out_shape=jax.ShapeDtypeStruct((Mp, N), out_dtype),
        grid=(Mp // tm,),
        in_specs=[pl.BlockSpec((tm, K), lambda i: (i, 0)),
                  pl.BlockSpec((K, N), lambda i: (0, 0)),     # wo resident
                  pl.BlockSpec((1, N), lambda i: (0, 0)),
                  pl.BlockSpec((tm, N), lambda i: (i, 0)),
                  pl.BlockSpec((1, N), lambda i: (0, 0)),
                  pl.BlockSpec((1, N), lambda i: (0, 0))],
        out_specs=pl.BlockSpec((tm, N), lambda i: (i, 0)),
        compiler_params=pltpu.CompilerParams(
            dimension_semantics=("parallel",), vmem_limit_bytes=_VMEM_LIMIT),
    )(xp.astype(jnp.bfloat16), w.astype(jnp.bfloat16), b.astype(jnp.float32),
      rp.astype(jnp.bfloat16), gamma, beta)
    return out[:M] if Mp != M else out


# ----------------------------- fused FFN (w1 + GELU + w2) + residual + LayerNorm -----------------------------

def _ffn_res_ln_kernel(h_ref, w1_ref, b1_ref, w2_ref, b2_ref, g_ref, bln_ref, o_ref, *, eps):
    h = h_ref[...]                                   # single ref: matmul-1 operand AND residual
    # TODO(synk): erf-GELU approximated with tanh GELU (BERT's hidden_act is erf-GELU).
    a = jax.nn.gelu(jnp.dot(h, w1_ref[...], preferred_element_type=jnp.float32) + b1_ref[...],
                    approximate=True).astype(w2_ref.dtype)
    y = (jnp.dot(a, w2_ref[...], preferred_element_type=jnp.float32)
         + b2_ref[...] + h.astype(jnp.float32))
    mu = jnp.mean(y, axis=-1, keepdims=True)
    var = jnp.mean(jnp.square(y - mu), axis=-1, keepdims=True)
    yn = (y - mu) * jax.lax.rsqrt(var + eps)
    o_ref[...] = (yn * g_ref[...] + bln_ref[...]).astype(o_ref.dtype)


def pallas_ffn_residual_ln(h, w1, b1, w2, b2, gamma, beta, *, eps=1e-12,
                           tm=256, out_dtype=jnp.bfloat16):
    M, K = h.shape
    I = w1.shape[1]
    N = w2.shape[1]
    tm = _row_tile(M, tm)
    hp = _pad_rows(h, tm).astype(jnp.bfloat16)
    Mp = hp.shape[0]
    out = pl.pallas_call(
        functools.partial(_ffn_res_ln_kernel, eps=eps),
        out_shape=jax.ShapeDtypeStruct((Mp, N), out_dtype),
        grid=(Mp // tm,),
        in_specs=[pl.BlockSpec((tm, K), lambda i: (i, 0)),    # h (full K row, reused as residual)
                  pl.BlockSpec((K, I), lambda i: (0, 0)),     # w1 resident
                  pl.BlockSpec((1, I), lambda i: (0, 0)),
                  pl.BlockSpec((I, N), lambda i: (0, 0)),     # w2 resident
                  pl.BlockSpec((1, N), lambda i: (0, 0)),
                  pl.BlockSpec((1, N), lambda i: (0, 0)),
                  pl.BlockSpec((1, N), lambda i: (0, 0))],
        out_specs=pl.BlockSpec((tm, N), lambda i: (i, 0)),
        compiler_params=pltpu.CompilerParams(
            dimension_semantics=("parallel",), vmem_limit_bytes=_VMEM_LIMIT),
    )(hp, w1.astype(jnp.bfloat16), b1.astype(jnp.float32),
      w2.astype(jnp.bfloat16), b2.astype(jnp.float32), gamma, beta)
    return out[:M] if Mp != M else out


# ----------------------------- label fusion -----------------------------

def _label_fusion_kernel(labp_ref, tok_ref, bias_ref, o_ref, *, bb):
    labp = labp_ref[...]                             # (L, H) bf16 = (labels@W2)@W1^T
    for bi in range(bb):                             # static unroll; bb is small
        tok = tok_ref[bi]                            # (S, H) bf16
        s = jax.lax.dot_general(labp, tok, (((1,), (1,)), ((), ())),
                                preferred_element_type=jnp.float32) + bias_ref[bi]    # (L, S)
        m = jnp.max(s, axis=-1, keepdims=True)
        e = jnp.exp(s - m)
        w = (e * pl.reciprocal(jnp.sum(e, axis=-1, keepdims=True), approx=True)).astype(tok.dtype)
        ctx = jnp.dot(w, tok, preferred_element_type=jnp.float32)                     # (L, H)
        o_ref[bi:bi + 1, :] = jnp.mean(ctx, axis=0, keepdims=True).astype(o_ref.dtype)


def pallas_label_fusion(lab_proj, tok, bias_b1s):
    """lab_proj: [L, H]; tok: [B, S, H] bf16; bias_b1s: [B, 1, S] f32 -> fused feature [B, H]."""
    B, S, H = tok.shape
    L = lab_proj.shape[0]
    bb = _batch_tile(B, S, H)          # several batch elements per grid step (per-step work is tiny)
    return pl.pallas_call(
        functools.partial(_label_fusion_kernel, bb=bb),
        out_shape=jax.ShapeDtypeStruct((B, H), jnp.float32),
        grid=(B // bb,),
        in_specs=[pl.BlockSpec((L, H), lambda i: (0, 0)),
                  pl.BlockSpec((bb, S, H), lambda i: (i, 0, 0)),
                  pl.BlockSpec((bb, 1, S), lambda i: (i, 0, 0))],
        out_specs=pl.BlockSpec((bb, H), lambda i: (i, 0)),
        compiler_params=pltpu.CompilerParams(
            dimension_semantics=("parallel",), vmem_limit_bytes=_VMEM_LIMIT),
    )(lab_proj, tok, bias_b1s)


# ----------------------------- BERT encoder (glue + kernels) -----------------------------

def bert_encode(p, token_ids, token_type_ids, input_mask, cfg):
    """Returns (encoded_text [B,S,H] bf16, pooled_output [B,H] f32, attn_bias [B,1,S] f32)."""
    B, S = token_ids.shape
    H, nH = cfg["hidden"], cfg["heads"]
    dh = H // nH
    hpb = _heads_per_block(nH, dh)
    q_scale = 1.0 / math.sqrt(dh)

    # Token / type gathers stay in XLA; the broadcast-add + LayerNorm is fused in one kernel.
    we = p["word_emb"][token_ids]                    # (B, S, H) f32
    te = p["type_emb"][token_type_ids]               # (B, S, H) f32
    pe = p["pos_emb"][:S]                            # (S, H) f32
    h = pallas_embed_layernorm(we, te, pe, p["emb_ln_g"], p["emb_ln_b"]).reshape(B * S, H)

    # Additive attention bias precomputed once per forward, S on the lane axis.
    attn_bias = ((1.0 - input_mask.astype(jnp.float32)) * (-1e9)).reshape(B, 1, S)

    for lyr in p["layers"]:
        q, k, v = pallas_qkv(h, lyr["wqkv"], lyr["bqkv"], q_scale)           # [B*S, H] bf16 x3
        ctx = pallas_mha(q.reshape(B, S, H), k.reshape(B, S, H), v.reshape(B, S, H),
                         attn_bias, nH, dh, hpb)                              # [B, S, H] bf16
        h = pallas_linear_residual_ln(ctx.reshape(B * S, H), lyr["wo"], lyr["bo"],
                                      h, lyr["ln1_g"], lyr["ln1_b"])
        h = pallas_ffn_residual_ln(h, lyr["w1"], lyr["b1"], lyr["w2"], lyr["b2"],
                                   lyr["ln2_g"], lyr["ln2_b"])

    seq_out = h.reshape(B, S, H)
    pooled = pallas_linear(seq_out[:, 0, :], p["pooler_w"], p["pooler_b"],
                           activation="tanh", out_dtype=jnp.float32)
    return seq_out, pooled, attn_bias


def forward(params, data, label_token_ids, label_token_type_ids, label_input_mask, cfg):
    # get_text_embedding(...): BERT -> (encoded_text, pooled_output), dropout identity (eval).
    # The reference's `out[...][1]` / `out[0]` indexing is interpreted as "token-level text
    # embeddings" for the fusion input (consistent with passing data['input_mask']); label
    # texts use the pooled output of the SAME (siamese) encoder.
    seq_out, _pooled, text_bias = bert_encode(params["bert"], data["token_ids"],
                                              data["token_type_ids"], data["input_mask"], cfg)
    _lab_seq, label_pooled, _ = bert_encode(params["bert"], label_token_ids,
                                            label_token_type_ids, label_input_mask, cfg)

    B, S, H = seq_out.shape
    L = cfg["label_num"]
    zero_b = jnp.zeros((1, H), jnp.float32)
    # TODO(synk): Label_Fusion_Layer_for_Classification source is not in the provided snippet;
    # reconstructed as masked label->token attention pooling (linear_1 on tokens, linear_2 on
    # pooled label embeddings, softmax over tokens per label, contexts averaged over labels).
    # The token-side projection is folded into the label side (exact algebraic identity):
    #   scores = (labels@W2) @ (tokens@W1)^T == ((labels@W2) @ W1^T) @ tokens^T
    # which removes a full [B*S,H]x[H,H] matmul and an extra HBM pass over the sequence output.
    lab_fc = pallas_linear(label_pooled, params["fuse_w2"], zero_b, out_dtype=jnp.bfloat16)
    lab_proj = pallas_linear(lab_fc, jnp.swapaxes(params["fuse_w1"], 0, 1), zero_b,
                             out_dtype=jnp.bfloat16)
    fused = pallas_label_fusion(lab_proj, seq_out, text_bias)                # (B, H) f32

    # Classifier output padded to a multiple of 128 for lane-dense stores; slice real labels.
    logits = pallas_linear(fused, params["cls_w_pad"], params["cls_b_pad"])[:, :L]
    # TODO(synk): the reference applies nn.BCELoss directly to raw nn.Linear outputs, which is
    # only well-defined for probabilities; the optional loss branch is omitted here.
    return (logits,)


# ----------------------------- deterministic params -----------------------------

def init_params(key, cfg):
    H, I, nL, L = cfg["hidden"], cfg["intermediate"], cfg["layers"], cfg["label_num"]
    L_pad = _round_up(L, 128)
    ks = iter(jax.random.split(key, 16 + 8 * nL))
    bf = jnp.bfloat16

    def n(shape, dtype=jnp.float32):
        return (0.02 * jax.random.normal(next(ks), shape)).astype(dtype)

    ones = lambda s: jnp.ones(s, jnp.float32)
    zeros = lambda s: jnp.zeros(s, jnp.float32)

    layers = []
    for _ in range(nL):
        layers.append(dict(
            wqkv=n((H, 3 * H), bf), bqkv=zeros((1, 3 * H)),       # fused [wq|wk|wv]
            wo=n((H, H), bf), bo=zeros((1, H)),
            ln1_g=ones((1, H)), ln1_b=zeros((1, H)),
            w1=n((H, I), bf), b1=zeros((1, I)),
            w2=n((I, H), bf), b2=zeros((1, H)),
            ln2_g=ones((1, H)), ln2_b=zeros((1, H))))

    bert = dict(
        word_emb=n((cfg["vocab"], H)),
        pos_emb=n((cfg["max_pos"], H)),
        type_emb=n((cfg["type_vocab"], H)),
        emb_ln_g=ones((1, H)), emb_ln_b=zeros((1, H)),
        pooler_w=n((H, H), bf), pooler_b=zeros((1, H)),
        layers=layers)

    cls_w_pad = jnp.zeros((H, L_pad), bf).at[:, :L].set(n((H, L)).astype(bf))
    cls_b_pad = zeros((1, L_pad))
    return dict(bert=bert,
                fuse_w1=n((H, H), bf),       # Label_Fusion linear_1 (no bias)
                fuse_w2=n((H, H), bf),       # Label_Fusion linear_2 (no bias)
                cls_w_pad=cls_w_pad, cls_b_pad=cls_b_pad)


# ----------------------------- demo -----------------------------

if __name__ == "__main__":
    cfg = dict(hidden=32, heads=2, layers=2, intermediate=64,
               vocab=64, max_pos=16, type_vocab=2, label_num=4)
    B, S = 2, 8
    L, S_lab = cfg["label_num"], 8

    key = jax.random.PRNGKey(0)
    kp, k1, k2 = jax.random.split(key, 3)
    params = init_params(kp, cfg)

    data = dict(
        token_ids=jax.random.randint(k1, (B, S), 0, cfg["vocab"]),
        token_type_ids=jnp.zeros((B, S), jnp.int32),
        input_mask=jnp.array([[1, 1, 1, 1, 1, 1, 1, 1],
                              [1, 1, 1, 1, 1, 0, 0, 0]], jnp.int32),
    )
    label_token_ids = jax.random.randint(k2, (L, S_lab), 0, cfg["vocab"])
    label_token_type_ids = jnp.zeros((L, S_lab), jnp.int32)
    label_input_mask = jnp.ones((L, S_lab), jnp.int32)

    fwd = jax.jit(functools.partial(forward, cfg=cfg))
    (logits,) = fwd(params, data, label_token_ids, label_token_type_ids, label_input_mask)
    jax.block_until_ready(logits)
    assert logits.shape == (B, cfg["label_num"]), logits.shape
    assert bool(jnp.all(jnp.isfinite(logits)))
    print("KERNEL_OK")
</pallas_src>

<mosaic_0001>
module attributes {stable_mosaic.version = 11 : i64} {
  func.func @_qkv_kernel(%arg0: i32, %arg1: memref<16x32xbf16, #tpu.memory_space<vmem>>, %arg2: memref<32x96xbf16, #tpu.memory_space<vmem>>, %arg3: memref<1x96xf32, #tpu.memory_space<vmem>>, %arg4: memref<16x32xbf16, #tpu.memory_space<vmem>>, %arg5: memref<16x32xbf16, #tpu.memory_space<vmem>>, %arg6: memref<16x32xbf16, #tpu.memory_space<vmem>>) attributes {dimension_semantics = [#tpu.dimension_semantics<parallel>], iteration_bounds = array<i64: 1>, scalar_prefetch = 0 : i64, scratch_operands = 0 : i64, tpu.core_type = #tpu.core_type<tc>, window_params = [{transform_indices = @transform_0, window_bounds = array<i64: 16, 32>}, {pipeline_mode = #tpu.pipeline_mode<synchronous>, transform_indices = @transform_1, window_bounds = array<i64: 32, 96>}, {pipeline_mode = #tpu.pipeline_mode<synchronous>, transform_indices = @transform_2, window_bounds = array<i64: 1, 96>}, {transform_indices = @transform_3, window_bounds = array<i64: 16, 32>}, {transform_indices = @transform_4, window_bounds = array<i64: 16, 32>}, {transform_indices = @transform_5, window_bounds = array<i64: 16, 32>}]} {
    %c0 = arith.constant 0 : index
    %c0_0 = arith.constant 0 : index
    %0 = vector.load %arg1[%c0, %c0_0] : memref<16x32xbf16, #tpu.memory_space<vmem>>, vector<16x32xbf16>
    %c0_1 = arith.constant 0 : index
    %c0_2 = arith.constant 0 : index
    %1 = vector.load %arg2[%c0_1, %c0_2] : memref<32x96xbf16, #tpu.memory_space<vmem>>, vector<32x96xbf16>
    %cst = arith.constant dense<0.000000e+00> : vector<16x96xf32>
    %2 = tpu.matmul %0, %1, %cst {dimension_numbers = #tpu.dot_dimension_numbers<[1], [0], [0], [1], [0, 0, 1, 1], [], []>} : vector<16x32xbf16>, vector<32x96xbf16>, vector<16x96xf32> -> vector<16x96xf32>
    %c0_3 = arith.constant 0 : index
    %c0_4 = arith.constant 0 : index
    %3 = vector.load %arg3[%c0_3, %c0_4] : memref<1x96xf32, #tpu.memory_space<vmem>>, vector<1x96xf32>
    %4 = vector.broadcast %3 : vector<1x96xf32> to vector<16x96xf32>
    %5 = arith.addf %2, %4 : vector<16x96xf32>
    %6 = vector.extract_strided_slice %5 {offsets = [0, 0], sizes = [16, 32], strides = [1, 1]} : vector<16x96xf32> to vector<16x32xf32>
    %cst_5 = arith.constant 2.500000e-01 : f32
    %7 = vector.broadcast %cst_5 : f32 to vector<16x32xf32>
    %8 = arith.mulf %6, %7 : vector<16x32xf32>
    %9 = arith.truncf %8 : vector<16x32xf32> to vector<16x32xbf16>
    %c0_6 = arith.constant 0 : index
    %c0_7 = arith.constant 0 : index
    %10 = vector.load %arg4[%c0_6, %c0_7] : memref<16x32xbf16, #tpu.memory_space<vmem>>, vector<16x32xbf16>
    tpu.vector_store %arg4[%c0_6, %c0_7], %9 {strides = array<i32>} : memref<16x32xbf16, #tpu.memory_space<vmem>>, vector<16x32xbf16>,
    %11 = vector.extract_strided_slice %5 {offsets = [0, 32], sizes = [16, 32], strides = [1, 1]} : vector<16x96xf32> to vector<16x32xf32>
    %12 = arith.truncf %11 : vector<16x32xf32> to vector<16x32xbf16>
    %c0_8 = arith.constant 0 : index
    %c0_9 = arith.constant 0 : index
    %13 = vector.load %arg5[%c0_8, %c0_9] : memref<16x32xbf16, #tpu.memory_space<vmem>>, vector<16x32xbf16>
    tpu.vector_store %arg5[%c0_8, %c0_9], %12 {strides = array<i32>} : memref<16x32xbf16, #tpu.memory_space<vmem>>, vector<16x32xbf16>,
    %14 = vector.extract_strided_slice %5 {offsets = [0, 64], sizes = [16, 32], strides = [1, 1]} : vector<16x96xf32> to vector<16x32xf32>
    %15 = arith.truncf %14 : vector<16x32xf32> to vector<16x32xbf16>
    %c0_10 = arith.constant 0 : index
    %c0_11 = arith.constant 0 : index
    %16 = vector.load %arg6[%c0_10, %c0_11] : memref<16x32xbf16, #tpu.memory_space<vmem>>, vector<16x32xbf16>
    tpu.vector_store %arg6[%c0_10, %c0_11], %15 {strides = array<i32>} : memref<16x32xbf16, #tpu.memory_space<vmem>>, vector<16x32xbf16>,
    return
  }
  func.func @transform_0(%arg0: i32) -> (i32, i32) {
    %c0_i32 = arith.constant 0 : i32
    %c0_i32_0 = arith.constant 0 : i32
    return %arg0, %c0_i32 : i32, i32
  }
  func.func @transform_1(%arg0: i32) -> (i32, i32) {
    %c0_i32 = arith.constant 0 : i32
    %c0_i32_0 = arith.constant 0 : i32
    %c0_i32_1 = arith.constant 0 : i32
    return %c0_i32, %c0_i32_0 : i32, i32
  }
  func.func @transform_2(%arg0: i32) -> (i32, i32) {
    %c0_i32 = arith.constant 0 : i32
    %c0_i32_0 = arith.constant 0 : i32
    %c0_i32_1 = arith.constant 0 : i32
    return %c0_i32, %c0_i32_0 : i32, i32
  }
  func.func @transform_3(%arg0: i32) -> (i32, i32) {
    %c0_i32 = arith.constant 0 : i32
    %c0_i32_0 = arith.constant 0 : i32
    return %arg0, %c0_i32 : i32, i32
  }
  func.func @transform_4(%arg0: i32) -> (i32, i32) {
    %c0_i32 = arith.constant 0 : i32
    %c0_i32_0 = arith.constant 0 : i32
    return %arg0, %c0_i32 : i32, i32
  }
  func.func @transform_5(%arg0: i32) -> (i32, i32) {
    %c0_i32 = arith.constant 0 : i32
    %c0_i32_0 = arith.constant 0 : i32
    return %arg0, %c0_i32 : i32, i32
  }
}

module attributes {stable_mosaic.version = 11 : i64} {
  func.func @_emb_ln_kernel(%arg0: i32, %arg1: memref<1x8x32xf32, #tpu.memory_space<vmem>>, %arg2: memref<1x8x32xf32, #tpu.memory_space<vmem>>, %arg3: memref<8x32xf32, #tpu.memory_space<vmem>>, %arg4: memref<1x32xf32, #tpu.memory_space<vmem>>, %arg5: memref<1x32xf32, #tpu.memory_space<vmem>>, %arg6: memref<1x8x32xbf16, #tpu.memory_space<vmem>>) attributes {dimension_semantics = [#tpu.dimension_semantics<parallel>], iteration_bounds = array<i64: 2>, scalar_prefetch = 0 : i64, scratch_operands = 0 : i64, tpu.core_type = #tpu.core_type<tc>, window_params = [{transform_indices = @transform_0, window_bounds = array<i64: 1, 8, 32>}, {transform_indices = @transform_1, window_bounds = array<i64: 1, 8, 32>}, {pipeline_mode = #tpu.pipeline_mode<synchronous>, transform_indices = @transform_2, window_bounds = array<i64: 8, 32>}, {pipeline_mode = #tpu.pipeline_mode<synchronous>, transform_indices = @transform_3, window_bounds = array<i64: 1, 32>}, {pipeline_mode = #tpu.pipeline_mode<synchronous>, transform_indices = @transform_4, window_bounds = array<i64: 1, 32>}, {transform_indices = @transform_5, window_bounds = array<i64: 1, 8, 32>}]} {
    %c0 = arith.constant 0 : index
    %c0_0 = arith.constant 0 : index
    %c0_1 = arith.constant 0 : index
    %0 = vector.load %arg1[%c0, %c0_0, %c0_1] : memref<1x8x32xf32, #tpu.memory_space<vmem>>, vector<1x8x32xf32>
    %1 = vector.shape_cast %0 : vector<1x8x32xf32> to vector<8x32xf32>
    %c0_2 = arith.constant 0 : index
    %c0_3 = arith.constant 0 : index
    %c0_4 = arith.constant 0 : index
    %2 = vector.load %arg2[%c0_2, %c0_3, %c0_4] : memref<1x8x32xf32, #tpu.memory_space<vmem>>, vector<1x8x32xf32>
    %3 = vector.shape_cast %2 : vector<1x8x32xf32> to vector<8x32xf32>
    %4 = arith.addf %1, %3 : vector<8x32xf32>
    %c0_5 = arith.constant 0 : index
    %c0_6 = arith.constant 0 : index
    %5 = vector.load %arg3[%c0_5, %c0_6] : memref<8x32xf32, #tpu.memory_space<vmem>>, vector<8x32xf32>
    %6 = arith.addf %4, %5 : vector<8x32xf32>
    %cst = arith.constant dense<0.000000e+00> : vector<8xf32>
    %7 = vector.multi_reduction <add>, %6, %cst [1] : vector<8x32xf32> to vector<8xf32>
    %8 = vector.shape_cast %7 : vector<8xf32> to vector<8x1xf32>
    %cst_7 = arith.constant 3.200000e+01 : f32
    %9 = vector.broadcast %cst_7 : f32 to vector<8x1xf32>
    %10 = arith.divf %8, %9 : vector<8x1xf32>
    %11 = vector.broadcast %10 : vector<8x1xf32> to vector<8x32xf32>
    %12 = arith.subf %6, %11 : vector<8x32xf32>
    %13 = arith.mulf %12, %12 : vector<8x32xf32>
    %cst_8 = arith.constant dense<0.000000e+00> : vector<8xf32>
    %14 = vector.multi_reduction <add>, %13, %cst_8 [1] : vector<8x32xf32> to vector<8xf32>
    %15 = vector.shape_cast %14 : vector<8xf32> to vector<8x1xf32>
    %cst_9 = arith.constant 3.200000e+01 : f32
    %16 = vector.broadcast %cst_9 : f32 to vector<8x1xf32>
    %17 = arith.divf %15, %16 : vector<8x1xf32>
    %18 = vector.broadcast %10 : vector<8x1xf32> to vector<8x32xf32>
    %19 = arith.subf %6, %18 : vector<8x32xf32>
    %cst_10 = arith.constant 9.99999996E-13 : f32
    %20 = vector.broadcast %cst_10 : f32 to vector<8x1xf32>
    %21 = arith.addf %17, %20 : vector<8x1xf32>
    %22 = math.rsqrt %21 : vector<8x1xf32>
    %23 = vector.broadcast %22 : vector<8x1xf32> to vector<8x32xf32>
    %24 = arith.mulf %19, %23 : vector<8x32xf32>
    %c0_11 = arith.constant 0 : index
    %c0_12 = arith.constant 0 : index
    %25 = vector.load %arg4[%c0_11, %c0_12] : memref<1x32xf32, #tpu.memory_space<vmem>>, vector<1x32xf32>
    %26 = vector.broadcast %25 : vector<1x32xf32> to vector<8x32xf32>
    %27 = arith.mulf %24, %26 : vector<8x32xf32>
    %c0_13 = arith.constant 0 : index
    %c0_14 = arith.constant 0 : index
    %28 = vector.load %arg5[%c0_13, %c0_14] : memref<1x32xf32, #tpu.memory_space<vmem>>, vector<1x32xf32>
    %29 = vector.broadcast %28 : vector<1x32xf32> to vector<8x32xf32>
    %30 = arith.addf %27, %29 : vector<8x32xf32>
    %31 = arith.truncf %30 : vector<8x32xf32> to vector<8x32xbf16>
    %c0_15 = arith.constant 0 : index
    %c0_16 = arith.constant 0 : index
    %c0_17 = arith.constant 0 : index
    %32 = vector.load %arg6[%c0_15, %c0_16, %c0_17] : memref<1x8x32xbf16, #tpu.memory_space<vmem>>, vector<1x8x32xbf16>
    %33 = vector.shape_cast %32 : vector<1x8x32xbf16> to vector<8x32xbf16>
    %34 = vector.shape_cast %31 : vector<8x32xbf16> to vector<1x8x32xbf16>
    tpu.vector_store %arg6[%c0_15, %c0_16, %c0_17], %34 {strides = array<i32>} : memref<1x8x32xbf16, #tpu.memory_space<vmem>>, vector<1x8x32xbf16>,
    return
  }
  func.func @transform_0(%arg0: i32) -> (i32, i32, i32) {
    %c0_i32 = arith.constant 0 : i32
    %c0_i32_0 = arith.constant 0 : i32
    %c0_i32_1 = arith.constant 0 : i32
    return %arg0, %c0_i32, %c0_i32_0 : i32, i32, i32
  }
  func.func @transform_1(%arg0: i32) -> (i32, i32, i32) {
    %c0_i32 = arith.constant 0 : i32
    %c0_i32_0 = arith.constant 0 : i32
    %c0_i32_1 = arith.constant 0 : i32
    return %arg0, %c0_i32, %c0_i32_0 : i32, i32, i32
  }
  func.func @transform_2(%arg0: i32) -> (i32, i32) {
    %c0_i32 = arith.constant 0 : i32
    %c0_i32_0 = arith.constant 0 : i32
    %c0_i32_1 = arith.constant 0 : i32
    return %c0_i32, %c0_i32_0 : i32, i32
  }
  func.func @transform_3(%arg0: i32) -> (i32, i32) {
    %c0_i32 = arith.constant 0 : i32
    %c0_i32_0 = arith.constant 0 : i32
    %c0_i32_1 = arith.constant 0 : i32
    return %c0_i32, %c0_i32_0 : i32, i32
  }
  func.func @transform_4(%arg0: i32) -> (i32, i32) {
    %c0_i32 = arith.constant 0 : i32
    %c0_i32_0 = arith.constant 0 : i32
    %c0_i32_1 = arith.constant 0 : i32
    return %c0_i32, %c0_i32_0 : i32, i32
  }
  func.func @transform_5(%arg0: i32) -> (i32, i32, i32) {
    %c0_i32 = arith.constant 0 : i32
    %c0_i32_0 = arith.constant 0 : i32
    %c0_i32_1 = arith.constant 0 : i32
    return %arg0, %c0_i32, %c0_i32_0 : i32, i32, i32
  }
}

module attributes {stable_mosaic.version = 11 : i64} {
  func.func @_linear_res_ln_kernel(%arg0: i32, %arg1: memref<16x32xbf16, #tpu.memory_space<vmem>>, %arg2: memref<32x32xbf16, #tpu.memory_space<vmem>>, %arg3: memref<1x32xf32, #tpu.memory_space<vmem>>, %arg4: memref<16x32xbf16, #tpu.memory_space<vmem>>, %arg5: memref<1x32xf32, #tpu.memory_space<vmem>>, %arg6: memref<1x32xf32, #tpu.memory_space<vmem>>, %arg7: memref<16x32xbf16, #tpu.memory_space<vmem>>) attributes {dimension_semantics = [#tpu.dimension_semantics<parallel>], iteration_bounds = array<i64: 1>, scalar_prefetch = 0 : i64, scratch_operands = 0 : i64, tpu.core_type = #tpu.core_type<tc>, window_params = [{transform_indices = @transform_0, window_bounds = array<i64: 16, 32>}, {pipeline_mode = #tpu.pipeline_mode<synchronous>, transform_indices = @transform_1, window_bounds = array<i64: 32, 32>}, {pipeline_mode = #tpu.pipeline_mode<synchronous>, transform_indices = @transform_2, window_bounds = array<i64: 1, 32>}, {transform_indices = @transform_3, window_bounds = array<i64: 16, 32>}, {pipeline_mode = #tpu.pipeline_mode<synchronous>, transform_indices = @transform_4, window_bounds = array<i64: 1, 32>}, {pipeline_mode = #tpu.pipeline_mode<synchronous>, transform_indices = @transform_5, window_bounds = array<i64: 1, 32>}, {transform_indices = @transform_6, window_bounds = array<i64: 16, 32>}]} {
    %c0 = arith.constant 0 : index
    %c0_0 = arith.constant 0 : index
    %0 = vector.load %arg1[%c0, %c0_0] : memref<16x32xbf16, #tpu.memory_space<vmem>>, vector<16x32xbf16>
    %c0_1 = arith.constant 0 : index
    %c0_2 = arith.constant 0 : index
    %1 = vector.load %arg2[%c0_1, %c0_2] : memref<32x32xbf16, #tpu.memory_space<vmem>>, vector<32x32xbf16>
    %cst = arith.constant dense<0.000000e+00> : vector<16x32xf32>
    %2 = tpu.matmul %0, %1, %cst {dimension_numbers = #tpu.dot_dimension_numbers<[1], [0], [0], [1], [0, 0, 1, 1], [], []>} : vector<16x32xbf16>, vector<32x32xbf16>, vector<16x32xf32> -> vector<16x32xf32>
    %c0_3 = arith.constant 0 : index
    %c0_4 = arith.constant 0 : index
    %3 = vector.load %arg3[%c0_3, %c0_4] : memref<1x32xf32, #tpu.memory_space<vmem>>, vector<1x32xf32>
    %4 = vector.broadcast %3 : vector<1x32xf32> to vector<16x32xf32>
    %5 = arith.addf %2, %4 : vector<16x32xf32>
    %c0_5 = arith.constant 0 : index
    %c0_6 = arith.constant 0 : index
    %6 = vector.load %arg4[%c0_5, %c0_6] : memref<16x32xbf16, #tpu.memory_space<vmem>>, vector<16x32xbf16>
    %7 = arith.extf %6 : vector<16x32xbf16> to vector<16x32xf32>
    %8 = arith.addf %5, %7 : vector<16x32xf32>
    %cst_7 = arith.constant dense<0.000000e+00> : vector<16xf32>
    %9 = vector.multi_reduction <add>, %8, %cst_7 [1] : vector<16x32xf32> to vector<16xf32>
    %10 = vector.shape_cast %9 : vector<16xf32> to vector<16x1xf32>
    %cst_8 = arith.constant 3.200000e+01 : f32
    %11 = vector.broadcast %cst_8 : f32 to vector<16x1xf32>
    %12 = arith.divf %10, %11 : vector<16x1xf32>
    %13 = vector.broadcast %12 : vector<16x1xf32> to vector<16x32xf32>
    %14 = arith.subf %8, %13 : vector<16x32xf32>
    %15 = arith.mulf %14, %14 : vector<16x32xf32>
    %cst_9 = arith.constant dense<0.000000e+00> : vector<16xf32>
    %16 = vector.multi_reduction <add>, %15, %cst_9 [1] : vector<16x32xf32> to vector<16xf32>
    %17 = vector.shape_cast %16 : vector<16xf32> to vector<16x1xf32>
    %cst_10 = arith.constant 3.200000e+01 : f32
    %18 = vector.broadcast %cst_10 : f32 to vector<16x1xf32>
    %19 = arith.divf %17, %18 : vector<16x1xf32>
    %20 = vector.broadcast %12 : vector<16x1xf32> to vector<16x32xf32>
    %21 = arith.subf %8, %20 : vector<16x32xf32>
    %cst_11 = arith.constant 9.99999996E-13 : f32
    %22 = vector.broadcast %cst_11 : f32 to vector<16x1xf32>
    %23 = arith.addf %19, %22 : vector<16x1xf32>
    %24 = math.rsqrt %23 : vector<16x1xf32>
    %25 = vector.broadcast %24 : vector<16x1xf32> to vector<16x32xf32>
    %26 = arith.mulf %21, %25 : vector<16x32xf32>
    %c0_12 = arith.constant 0 : index
    %c0_13 = arith.constant 0 : index
    %27 = vector.load %arg5[%c0_12, %c0_13] : memref<1x32xf32, #tpu.memory_space<vmem>>, vector<1x32xf32>
    %28 = vector.broadcast %27 : vector<1x32xf32> to vector<16x32xf32>
    %29 = arith.mulf %26, %28 : vector<16x32xf32>
    %c0_14 = arith.constant 0 : index
    %c0_15 = arith.constant 0 : index
    %30 = vector.load %arg6[%c0_14, %c0_15] : memref<1x32xf32, #tpu.memory_space<vmem>>, vector<1x32xf32>
    %31 = vector.broadcast %30 : vector<1x32xf32> to vector<16x32xf32>
    %32 = arith.addf %29, %31 : vector<16x32xf32>
    %33 = arith.truncf %32 : vector<16x32xf32> to vector<16x32xbf16>
    %c0_16 = arith.constant 0 : index
    %c0_17 = arith.constant 0 : index
    %34 = vector.load %arg7[%c0_16, %c0_17] : memref<16x32xbf16, #tpu.memory_space<vmem>>, vector<16x32xbf16>
    tpu.vector_store %arg7[%c0_16, %c0_17], %33 {strides = array<i32>} : memref<16x32xbf16, #tpu.memory_space<vmem>>, vector<16x32xbf16>,
    return
  }
  func.func @transform_0(%arg0: i32) -> (i32, i32) {
    %c0_i32 = arith.constant 0 : i32
    %c0_i32_0 = arith.constant 0 : i32
    return %arg0, %c0_i32 : i32, i32
  }
  func.func @transform_1(%arg0: i32) -> (i32, i32) {
    %c0_i32 = arith.constant 0 : i32
    %c0_i32_0 = arith.constant 0 : i32
    %c0_i32_1 = arith.constant 0 : i32
    return %c0_i32, %c0_i32_0 : i32, i32
  }
  func.func @transform_2(%arg0: i32) -> (i32, i32) {
    %c0_i32 = arith.constant 0 : i32
    %c0_i32_0 = arith.constant 0 : i32
    %c0_i32_1 = arith.constant 0 : i32
    return %c0_i32, %c0_i32_0 : i32, i32
  }
  func.func @transform_3(%arg0: i32) -> (i32, i32) {
    %c0_i32 = arith.constant 0 : i32
    %c0_i32_0 = arith.constant 0 : i32
    return %arg0, %c0_i32 : i32, i32
  }
  func.func @transform_4(%arg0: i32) -> (i32, i32) {
    %c0_i32 = arith.constant 0 : i32
    %c0_i32_0 = arith.constant 0 : i32
    %c0_i32_1 = arith.constant 0 : i32
    return %c0_i32, %c0_i32_0 : i32, i32
  }
  func.func @transform_5(%arg0: i32) -> (i32, i32) {
    %c0_i32 = arith.constant 0 : i32
    %c0_i32_0 = arith.constant 0 : i32
    %c0_i32_1 = arith.constant 0 : i32
    return %c0_i32, %c0_i32_0 : i32, i32
  }
  func.func @transform_6(%arg0: i32) -> (i32, i32) {
    %c0_i32 = arith.constant 0 : i32
    %c0_i32_0 = arith.constant 0 : i32
    return %arg0, %c0_i32 : i32, i32
  }
}

module attributes {stable_mosaic.version = 11 : i64} {
  func.func @_mha_kernel(%arg0: i32, %arg1: i32, %arg2: i32, %arg3: memref<1x8x32xbf16, #tpu.memory_space<vmem>>, %arg4: memref<1x8x32xbf16, #tpu.memory_space<vmem>>, %arg5: memref<1x8x32xbf16, #tpu.memory_space<vmem>>, %arg6: memref<1x1x8xf32, #tpu.memory_space<vmem>>, %arg7: memref<1x8x32xbf16, #tpu.memory_space<vmem>>) attributes {dimension_semantics = [#tpu.dimension_semantics<parallel>, #tpu.dimension_semantics<parallel>, #tpu.dimension_semantics<parallel>], iteration_bounds = array<i64: 2, 1, 1>, scalar_prefetch = 0 : i64, scratch_operands = 0 : i64, tpu.core_type = #tpu.core_type<tc>, window_params = [{transform_indices = @transform_0, window_bounds = array<i64: 1, 8, 32>}, {transform_indices = @transform_1, window_bounds = array<i64: 1, 8, 32>}, {transform_indices = @transform_2, window_bounds = array<i64: 1, 8, 32>}, {transform_indices = @transform_3, window_bounds = array<i64: 1, 1, 8>}, {transform_indices = @transform_4, window_bounds = array<i64: 1, 8, 32>}]} {
    %c0 = arith.constant 0 : index
    %c0_0 = arith.constant 0 : index
    %c0_1 = arith.constant 0 : index
    %0 = vector.load %arg6[%c0, %c0_0, %c0_1] : memref<1x1x8xf32, #tpu.memory_space<vmem>>, vector<1x1x8xf32>
    %1 = vector.shape_cast %0 : vector<1x1x8xf32> to vector<1x8xf32>
    %c0_2 = arith.constant 0 : index
    %c0_3 = arith.constant 0 : index
    %c0_4 = arith.constant 0 : index
    %2 = vector.load %arg3[%c0_2, %c0_3, %c0_4] : memref<1x8x32xbf16, #tpu.memory_space<vmem>>, vector<1x8x32xbf16>
    %3 = vector.shape_cast %2 : vector<1x8x32xbf16> to vector<8x32xbf16>
    %c0_5 = arith.constant 0 : index
    %c0_6 = arith.constant 0 : index
    %c0_7 = arith.constant 0 : index
    %4 = vector.load %arg4[%c0_5, %c0_6, %c0_7] : memref<1x8x32xbf16, #tpu.memory_space<vmem>>, vector<1x8x32xbf16>
    %5 = vector.shape_cast %4 : vector<1x8x32xbf16> to vector<8x32xbf16>
    %c0_8 = arith.constant 0 : index
    %c0_9 = arith.constant 0 : index
    %c0_10 = arith.constant 0 : index
    %6 = vector.load %arg5[%c0_8, %c0_9, %c0_10] : memref<1x8x32xbf16, #tpu.memory_space<vmem>>, vector<1x8x32xbf16>
    %7 = vector.shape_cast %6 : vector<1x8x32xbf16> to vector<8x32xbf16>
    %8 = vector.extract_strided_slice %3 {offsets = [0, 0], sizes = [8, 16], strides = [1, 1]} : vector<8x32xbf16> to vector<8x16xbf16>
    %9 = vector.extract_strided_slice %5 {offsets = [0, 0], sizes = [8, 16], strides = [1, 1]} : vector<8x32xbf16> to vector<8x16xbf16>
    %10 = vector.extract_strided_slice %7 {offsets = [0, 0], sizes = [8, 16], strides = [1, 1]} : vector<8x32xbf16> to vector<8x16xbf16>
    %cst = arith.constant dense<0.000000e+00> : vector<8x8xf32>
    %11 = tpu.matmul %8, %9, %cst {dimension_numbers = #tpu.dot_dimension_numbers<[1], [1], [0], [0], [0, 0, 1, 0], [], []>} : vector<8x16xbf16>, vector<8x16xbf16>, vector<8x8xf32> -> vector<8x8xf32>
    %12 = vector.broadcast %1 : vector<1x8xf32> to vector<8x8xf32>
    %13 = arith.addf %11, %12 : vector<8x8xf32>
    %cst_11 = arith.constant dense<0xFF800000> : vector<8xf32>
    %14 = vector.multi_reduction <maximumf>, %13, %cst_11 [1] : vector<8x8xf32> to vector<8xf32>
    %15 = vector.shape_cast %14 : vector<8xf32> to vector<8x1xf32>
    %16 = vector.broadcast %15 : vector<8x1xf32> to vector<8x8xf32>
    %17 = arith.subf %13, %16 : vector<8x8xf32>
    %18 = math.exp %17 : vector<8x8xf32>
    %cst_12 = arith.constant dense<0.000000e+00> : vector<8xf32>
    %19 = vector.multi_reduction <add>, %18, %cst_12 [1] : vector<8x8xf32> to vector<8xf32>
    %20 = vector.shape_cast %19 : vector<8xf32> to vector<8x1xf32>
    %21 = tpu.reciprocal %20 {approx = true} : vector<8x1xf32> -> vector<8x1xf32>
    %22 = vector.broadcast %21 : vector<8x1xf32> to vector<8x8xf32>
    %23 = arith.mulf %18, %22 : vector<8x8xf32>
    %24 = arith.truncf %23 : vector<8x8xf32> to vector<8x8xbf16>
    %cst_13 = arith.constant dense<0.000000e+00> : vector<8x16xf32>
    %25 = tpu.matmul %24, %10, %cst_13 {dimension_numbers = #tpu.dot_dimension_numbers<[1], [0], [0], [1], [0, 0, 1, 1], [], []>} : vector<8x8xbf16>, vector<8x16xbf16>, vector<8x16xf32> -> vector<8x16xf32>
    %26 = arith.truncf %25 : vector<8x16xf32> to vector<8x16xbf16>
    %c0_14 = arith.constant 0 : index
    %c0_15 = arith.constant 0 : index
    %c0_16 = arith.constant 0 : index
    %27 = vector.load %arg7[%c0_14, %c0_15, %c0_16] : memref<1x8x32xbf16, #tpu.memory_space<vmem>>, vector<1x8x16xbf16>
    %28 = vector.shape_cast %27 : vector<1x8x16xbf16> to vector<8x16xbf16>
    %29 = vector.shape_cast %26 : vector<8x16xbf16> to vector<1x8x16xbf16>
    tpu.vector_store %arg7[%c0_14, %c0_15, %c0_16], %29 {strides = array<i32>} : memref<1x8x32xbf16, #tpu.memory_space<vmem>>, vector<1x8x16xbf16>,
    %30 = vector.extract_strided_slice %3 {offsets = [0, 16], sizes = [8, 16], strides = [1, 1]} : vector<8x32xbf16> to vector<8x16xbf16>
    %31 = vector.extract_strided_slice %5 {offsets = [0, 16], sizes = [8, 16], strides = [1, 1]} : vector<8x32xbf16> to vector<8x16xbf16>
    %32 = vector.extract_strided_slice %7 {offsets = [0, 16], sizes = [8, 16], strides = [1, 1]} : vector<8x32xbf16> to vector<8x16xbf16>
    %cst_17 = arith.constant dense<0.000000e+00> : vector<8x8xf32>
    %33 = tpu.matmul %30, %31, %cst_17 {dimension_numbers = #tpu.dot_dimension_numbers<[1], [1], [0], [0], [0, 0, 1, 0], [], []>} : vector<8x16xbf16>, vector<8x16xbf16>, vector<8x8xf32> -> vector<8x8xf32>
    %34 = vector.broadcast %1 : vector<1x8xf32> to vector<8x8xf32>
    %35 = arith.addf %33, %34 : vector<8x8xf32>
    %cst_18 = arith.constant dense<0xFF800000> : vector<8xf32>
    %36 = vector.multi_reduction <maximumf>, %35, %cst_18 [1] : vector<8x8xf32> to vector<8xf32>
    %37 = vector.shape_cast %36 : vector<8xf32> to vector<8x1xf32>
    %38 = vector.broadcast %37 : vector<8x1xf32> to vector<8x8xf32>
    %39 = arith.subf %35, %38 : vector<8x8xf32>
    %40 = math.exp %39 : vector<8x8xf32>
    %cst_19 = arith.constant dense<0.000000e+00> : vector<8xf32>
    %41 = vector.multi_reduction <add>, %40, %cst_19 [1] : vector<8x8xf32> to vector<8xf32>
    %42 = vector.shape_cast %41 : vector<8xf32> to vector<8x1xf32>
    %43 = tpu.reciprocal %42 {approx = true} : vector<8x1xf32> -> vector<8x1xf32>
    %44 = vector.broadcast %43 : vector<8x1xf32> to vector<8x8xf32>
    %45 = arith.mulf %40, %44 : vector<8x8xf32>
    %46 = arith.truncf %45 : vector<8x8xf32> to vector<8x8xbf16>
    %cst_20 = arith.constant dense<0.000000e+00> : vector<8x16xf32>
    %47 = tpu.matmul %46, %32, %cst_20 {dimension_numbers = #tpu.dot_dimension_numbers<[1], [0], [0], [1], [0, 0, 1, 1], [], []>} : vector<8x8xbf16>, vector<8x16xbf16>, vector<8x16xf32> -> vector<8x16xf32>
    %48 = arith.truncf %47 : vector<8x16xf32> to vector<8x16xbf16>
    %c0_21 = arith.constant 0 : index
    %c0_22 = arith.constant 0 : index
    %c16 = arith.constant 16 : index
    %49 = vector.load %arg7[%c0_21, %c0_22, %c16] : memref<1x8x32xbf16, #tpu.memory_space<vmem>>, vector<1x8x16xbf16>
    %50 = vector.shape_cast %49 : vector<1x8x16xbf16> to vector<8x16xbf16>
    %51 = vector.shape_cast %48 : vector<8x16xbf16> to vector<1x8x16xbf16>
    tpu.vector_store %arg7[%c0_21, %c0_22, %c16], %51 {strides = array<i32>} : memref<1x8x32xbf16, #tpu.memory_space<vmem>>, vector<1x8x16xbf16>,
    return
  }
  func.func @transform_0(%arg0: i32, %arg1: i32, %arg2: i32) -> (i32, i32, i32) {
    %c0_i32 = arith.constant 0 : i32
    return %arg0, %arg2, %arg1 : i32, i32, i32
  }
  func.func @transform_1(%arg0: i32, %arg1: i32, %arg2: i32) -> (i32, i32, i32) {
    %c0_i32 = arith.constant 0 : i32
    %c0_i32_0 = arith.constant 0 : i32
    return %arg0, %c0_i32, %arg1 : i32, i32, i32
  }
  func.func @transform_2(%arg0: i32, %arg1: i32, %arg2: i32) -> (i32, i32, i32) {
    %c0_i32 = arith.constant 0 : i32
    %c0_i32_0 = arith.constant 0 : i32
    return %arg0, %c0_i32, %arg1 : i32, i32, i32
  }
  func.func @transform_3(%arg0: i32, %arg1: i32, %arg2: i32) -> (i32, i32, i32) {
    %c0_i32 = arith.constant 0 : i32
    %c0_i32_0 = arith.constant 0 : i32
    %c0_i32_1 = arith.constant 0 : i32
    return %arg0, %c0_i32, %c0_i32_0 : i32, i32, i32
  }
  func.func @transform_4(%arg0: i32, %arg1: i32, %arg2: i32) -> (i32, i32, i32) {
    %c0_i32 = arith.constant 0 : i32
    return %arg0, %arg2, %arg1 : i32, i32, i32
  }
}

module attributes {stable_mosaic.version = 11 : i64} {
  func.func @_ffn_res_ln_kernel(%arg0: i32, %arg1: memref<16x32xbf16, #tpu.memory_space<vmem>>, %arg2: memref<32x64xbf16, #tpu.memory_space<vmem>>, %arg3: memref<1x64xf32, #tpu.memory_space<vmem>>, %arg4: memref<64x32xbf16, #tpu.memory_space<vmem>>, %arg5: memref<1x32xf32, #tpu.memory_space<vmem>>, %arg6: memref<1x32xf32, #tpu.memory_space<vmem>>, %arg7: memref<1x32xf32, #tpu.memory_space<vmem>>, %arg8: memref<16x32xbf16, #tpu.memory_space<vmem>>) attributes {dimension_semantics = [#tpu.dimension_semantics<parallel>], iteration_bounds = array<i64: 1>, scalar_prefetch = 0 : i64, scratch_operands = 0 : i64, tpu.core_type = #tpu.core_type<tc>, window_params = [{transform_indices = @transform_0, window_bounds = array<i64: 16, 32>}, {pipeline_mode = #tpu.pipeline_mode<synchronous>, transform_indices = @transform_1, window_bounds = array<i64: 32, 64>}, {pipeline_mode = #tpu.pipeline_mode<synchronous>, transform_indices = @transform_2, window_bounds = array<i64: 1, 64>}, {pipeline_mode = #tpu.pipeline_mode<synchronous>, transform_indices = @transform_3, window_bounds = array<i64: 64, 32>}, {pipeline_mode = #tpu.pipeline_mode<synchronous>, transform_indices = @transform_4, window_bounds = array<i64: 1, 32>}, {pipeline_mode = #tpu.pipeline_mode<synchronous>, transform_indices = @transform_5, window_bounds = array<i64: 1, 32>}, {pipeline_mode = #tpu.pipeline_mode<synchronous>, transform_indices = @transform_6, window_bounds = array<i64: 1, 32>}, {transform_indices = @transform_7, window_bounds = array<i64: 16, 32>}]} {
    %c0 = arith.constant 0 : index
    %c0_0 = arith.constant 0 : index
    %0 = vector.load %arg1[%c0, %c0_0] : memref<16x32xbf16, #tpu.memory_space<vmem>>, vector<16x32xbf16>
    %c0_1 = arith.constant 0 : index
    %c0_2 = arith.constant 0 : index
    %1 = vector.load %arg2[%c0_1, %c0_2] : memref<32x64xbf16, #tpu.memory_space<vmem>>, vector<32x64xbf16>
    %cst = arith.constant dense<0.000000e+00> : vector<16x64xf32>
    %2 = tpu.matmul %0, %1, %cst {dimension_numbers = #tpu.dot_dimension_numbers<[1], [0], [0], [1], [0, 0, 1, 1], [], []>} : vector<16x32xbf16>, vector<32x64xbf16>, vector<16x64xf32> -> vector<16x64xf32>
    %c0_3 = arith.constant 0 : index
    %c0_4 = arith.constant 0 : index
    %3 = vector.load %arg3[%c0_3, %c0_4] : memref<1x64xf32, #tpu.memory_space<vmem>>, vector<1x64xf32>
    %4 = vector.broadcast %3 : vector<1x64xf32> to vector<16x64xf32>
    %5 = arith.addf %2, %4 : vector<16x64xf32>
    %6 = arith.mulf %5, %5 : vector<16x64xf32>
    %7 = arith.mulf %5, %6 : vector<16x64xf32>
    %cst_5 = arith.constant 4.471500e-02 : f32
    %8 = vector.broadcast %cst_5 : f32 to vector<16x64xf32>
    %9 = arith.mulf %8, %7 : vector<16x64xf32>
    %10 = arith.addf %5, %9 : vector<16x64xf32>
    %cst_6 = arith.constant 0.797884583 : f32
    %11 = vector.broadcast %cst_6 : f32 to vector<16x64xf32>
    %12 = arith.mulf %11, %10 : vector<16x64xf32>
    %13 = math.tanh %12 : vector<16x64xf32>
    %cst_7 = arith.constant 1.000000e+00 : f32
    %14 = vector.broadcast %cst_7 : f32 to vector<16x64xf32>
    %15 = arith.addf %14, %13 : vector<16x64xf32>
    %cst_8 = arith.constant 5.000000e-01 : f32
    %16 = vector.broadcast %cst_8 : f32 to vector<16x64xf32>
    %17 = arith.mulf %16, %15 : vector<16x64xf32>
    %18 = arith.mulf %5, %17 : vector<16x64xf32>
    %19 = arith.truncf %18 : vector<16x64xf32> to vector<16x64xbf16>
    %c0_9 = arith.constant 0 : index
    %c0_10 = arith.constant 0 : index
    %20 = vector.load %arg4[%c0_9, %c0_10] : memref<64x32xbf16, #tpu.memory_space<vmem>>, vector<64x32xbf16>
    %cst_11 = arith.constant dense<0.000000e+00> : vector<16x32xf32>
    %21 = tpu.matmul %19, %20, %cst_11 {dimension_numbers = #tpu.dot_dimension_numbers<[1], [0], [0], [1], [0, 0, 1, 1], [], []>} : vector<16x64xbf16>, vector<64x32xbf16>, vector<16x32xf32> -> vector<16x32xf32>
    %c0_12 = arith.constant 0 : index
    %c0_13 = arith.constant 0 : index
    %22 = vector.load %arg5[%c0_12, %c0_13] : memref<1x32xf32, #tpu.memory_space<vmem>>, vector<1x32xf32>
    %23 = vector.broadcast %22 : vector<1x32xf32> to vector<16x32xf32>
    %24 = arith.addf %21, %23 : vector<16x32xf32>
    %25 = arith.extf %0 : vector<16x32xbf16> to vector<16x32xf32>
    %26 = arith.addf %24, %25 : vector<16x32xf32>
    %cst_14 = arith.constant dense<0.000000e+00> : vector<16xf32>
    %27 = vector.multi_reduction <add>, %26, %cst_14 [1] : vector<16x32xf32> to vector<16xf32>
    %28 = vector.shape_cast %27 : vector<16xf32> to vector<16x1xf32>
    %cst_15 = arith.constant 3.200000e+01 : f32
    %29 = vector.broadcast %cst_15 : f32 to vector<16x1xf32>
    %30 = arith.divf %28, %29 : vector<16x1xf32>
    %31 = vector.broadcast %30 : vector<16x1xf32> to vector<16x32xf32>
    %32 = arith.subf %26, %31 : vector<16x32xf32>
    %33 = arith.mulf %32, %32 : vector<16x32xf32>
    %cst_16 = arith.constant dense<0.000000e+00> : vector<16xf32>
    %34 = vector.multi_reduction <add>, %33, %cst_16 [1] : vector<16x32xf32> to vector<16xf32>
    %35 = vector.shape_cast %34 : vector<16xf32> to vector<16x1xf32>
    %cst_17 = arith.constant 3.200000e+01 : f32
    %36 = vector.broadcast %cst_17 : f32 to vector<16x1xf32>
    %37 = arith.divf %35, %36 : vector<16x1xf32>
    %38 = vector.broadcast %30 : vector<16x1xf32> to vector<16x32xf32>
    %39 = arith.subf %26, %38 : vector<16x32xf32>
    %cst_18 = arith.constant 9.99999996E-13 : f32
    %40 = vector.broadcast %cst_18 : f32 to vector<16x1xf32>
    %41 = arith.addf %37, %40 : vector<16x1xf32>
    %42 = math.rsqrt %41 : vector<16x1xf32>
    %43 = vector.broadcast %42 : vector<16x1xf32> to vector<16x32xf32>
    %44 = arith.mulf %39, %43 : vector<16x32xf32>
    %c0_19 = arith.constant 0 : index
    %c0_20 = arith.constant 0 : index
    %45 = vector.load %arg6[%c0_19, %c0_20] : memref<1x32xf32, #tpu.memory_space<vmem>>, vector<1x32xf32>
    %46 = vector.broadcast %45 : vector<1x32xf32> to vector<16x32xf32>
    %47 = arith.mulf %44, %46 : vector<16x32xf32>
    %c0_21 = arith.constant 0 : index
    %c0_22 = arith.constant 0 : index
    %48 = vector.load %arg7[%c0_21, %c0_22] : memref<1x32xf32, #tpu.memory_space<vmem>>, vector<1x32xf32>
    %49 = vector.broadcast %48 : vector<1x32xf32> to vector<16x32xf32>
    %50 = arith.addf %47, %49 : vector<16x32xf32>
    %51 = arith.truncf %50 : vector<16x32xf32> to vector<16x32xbf16>
    %c0_23 = arith.constant 0 : index
    %c0_24 = arith.constant 0 : index
    %52 = vector.load %arg8[%c0_23, %c0_24] : memref<16x32xbf16, #tpu.memory_space<vmem>>, vector<16x32xbf16>
    tpu.vector_store %arg8[%c0_23, %c0_24], %51 {strides = array<i32>} : memref<16x32xbf16, #tpu.memory_space<vmem>>, vector<16x32xbf16>,
    return
  }
  func.func @transform_0(%arg0: i32) -> (i32, i32) {
    %c0_i32 = arith.constant 0 : i32
    %c0_i32_0 = arith.constant 0 : i32
    return %arg0, %c0_i32 : i32, i32
  }
  func.func @transform_1(%arg0: i32) -> (i32, i32) {
    %c0_i32 = arith.constant 0 : i32
    %c0_i32_0 = arith.constant 0 : i32
    %c0_i32_1 = arith.constant 0 : i32
    return %c0_i32, %c0_i32_0 : i32, i32
  }
  func.func @transform_2(%arg0: i32) -> (i32, i32) {
    %c0_i32 = arith.constant 0 : i32
    %c0_i32_0 = arith.constant 0 : i32
    %c0_i32_1 = arith.constant 0 : i32
    return %c0_i32, %c0_i32_0 : i32, i32
  }
  func.func @transform_3(%arg0: i32) -> (i32, i32) {
    %c0_i32 = arith.constant 0 : i32
    %c0_i32_0 = arith.constant 0 : i32
    %c0_i32_1 = arith.constant 0 : i32
    return %c0_i32, %c0_i32_0 : i32, i32
  }
  func.func @transform_4(%arg0: i32) -> (i32, i32) {
    %c0_i32 = arith.constant 0 : i32
    %c0_i32_0 = arith.constant 0 : i32
    %c0_i32_1 = arith.constant 0 : i32
    return %c0_i32, %c0_i32_0 : i32, i32
  }
  func.func @transform_5(%arg0: i32) -> (i32, i32) {
    %c0_i32 = arith.constant 0 : i32
    %c0_i32_0 = arith.constant 0 : i32
    %c0_i32_1 = arith.constant 0 : i32
    return %c0_i32, %c0_i32_0 : i32, i32
  }
  func.func @transform_6(%arg0: i32) -> (i32, i32) {
    %c0_i32 = arith.constant 0 : i32
    %c0_i32_0 = arith.constant 0 : i32
    %c0_i32_1 = arith.constant 0 : i32
    return %c0_i32, %c0_i32_0 : i32, i32
  }
  func.func @transform_7(%arg0: i32) -> (i32, i32) {
    %c0_i32 = arith.constant 0 : i32
    %c0_i32_0 = arith.constant 0 : i32
    return %arg0, %c0_i32 : i32, i32
  }
}

module attributes {stable_mosaic.version = 11 : i64} {
  func.func @_emb_ln_kernel(%arg0: i32, %arg1: memref<1x8x32xf32, #tpu.memory_space<vmem>>, %arg2: memref<1x8x32xf32, #tpu.memory_space<vmem>>, %arg3: memref<8x32xf32, #tpu.memory_space<vmem>>, %arg4: memref<1x32xf32, #tpu.memory_space<vmem>>, %arg5: memref<1x32xf32, #tpu.memory_space<vmem>>, %arg6: memref<1x8x32xbf16, #tpu.memory_space<vmem>>) attributes {dimension_semantics = [#tpu.dimension_semantics<parallel>], iteration_bounds = array<i64: 4>, scalar_prefetch = 0 : i64, scratch_operands = 0 : i64, tpu.core_type = #tpu.core_type<tc>, window_params = [{transform_indices = @transform_0, window_bounds = array<i64: 1, 8, 32>}, {transform_indices = @transform_1, window_bounds = array<i64: 1, 8, 32>}, {pipeline_mode = #tpu.pipeline_mode<synchronous>, transform_indices = @transform_2, window_bounds = array<i64: 8, 32>}, {pipeline_mode = #tpu.pipeline_mode<synchronous>, transform_indices = @transform_3, window_bounds = array<i64: 1, 32>}, {pipeline_mode = #tpu.pipeline_mode<synchronous>, transform_indices = @transform_4, window_bounds = array<i64: 1, 32>}, {transform_indices = @transform_5, window_bounds = array<i64: 1, 8, 32>}]} {
    %c0 = arith.constant 0 : index
    %c0_0 = arith.constant 0 : index
    %c0_1 = arith.constant 0 : index
    %0 = vector.load %arg1[%c0, %c0_0, %c0_1] : memref<1x8x32xf32, #tpu.memory_space<vmem>>, vector<1x8x32xf32>
    %1 = vector.shape_cast %0 : vector<1x8x32xf32> to vector<8x32xf32>
    %c0_2 = arith.constant 0 : index
    %c0_3 = arith.constant 0 : index
    %c0_4 = arith.constant 0 : index
    %2 = vector.load %arg2[%c0_2, %c0_3, %c0_4] : memref<1x8x32xf32, #tpu.memory_space<vmem>>, vector<1x8x32xf32>
    %3 = vector.shape_cast %2 : vector<1x8x32xf32> to vector<8x32xf32>
    %4 = arith.addf %1, %3 : vector<8x32xf32>
    %c0_5 = arith.constant 0 : index
    %c0_6 = arith.constant 0 : index
    %5 = vector.load %arg3[%c0_5, %c0_6] : memref<8x32xf32, #tpu.memory_space<vmem>>, vector<8x32xf32>
    %6 = arith.addf %4, %5 : vector<8x32xf32>
    %cst = arith.constant dense<0.000000e+00> : vector<8xf32>
    %7 = vector.multi_reduction <add>, %6, %cst [1] : vector<8x32xf32> to vector<8xf32>
    %8 = vector.shape_cast %7 : vector<8xf32> to vector<8x1xf32>
    %cst_7 = arith.constant 3.200000e+01 : f32
    %9 = vector.broadcast %cst_7 : f32 to vector<8x1xf32>
    %10 = arith.divf %8, %9 : vector<8x1xf32>
    %11 = vector.broadcast %10 : vector<8x1xf32> to vector<8x32xf32>
    %12 = arith.subf %6, %11 : vector<8x32xf32>
    %13 = arith.mulf %12, %12 : vector<8x32xf32>
    %cst_8 = arith.constant dense<0.000000e+00> : vector<8xf32>
    %14 = vector.multi_reduction <add>, %13, %cst_8 [1] : vector<8x32xf32> to vector<8xf32>
    %15 = vector.shape_cast %14 : vector<8xf32> to vector<8x1xf32>
    %cst_9 = arith.constant 3.200000e+01 : f32
    %16 = vector.broadcast %cst_9 : f32 to vector<8x1xf32>
    %17 = arith.divf %15, %16 : vector<8x1xf32>
    %18 = vector.broadcast %10 : vector<8x1xf32> to vector<8x32xf32>
    %19 = arith.subf %6, %18 : vector<8x32xf32>
    %cst_10 = arith.constant 9.99999996E-13 : f32
    %20 = vector.broadcast %cst_10 : f32 to vector<8x1xf32>
    %21 = arith.addf %17, %20 : vector<8x1xf32>
    %22 = math.rsqrt %21 : vector<8x1xf32>
    %23 = vector.broadcast %22 : vector<8x1xf32> to vector<8x32xf32>
    %24 = arith.mulf %19, %23 : vector<8x32xf32>
    %c0_11 = arith.constant 0 : index
    %c0_12 = arith.constant 0 : index
    %25 = vector.load %arg4[%c0_11, %c0_12] : memref<1x32xf32, #tpu.memory_space<vmem>>, vector<1x32xf32>
    %26 = vector.broadcast %25 : vector<1x32xf32> to vector<8x32xf32>
    %27 = arith.mulf %24, %26 : vector<8x32xf32>
    %c0_13 = arith.constant 0 : index
    %c0_14 = arith.constant 0 : index
    %28 = vector.load %arg5[%c0_13, %c0_14] : memref<1x32xf32, #tpu.memory_space<vmem>>, vector<1x32xf32>
    %29 = vector.broadcast %28 : vector<1x32xf32> to vector<8x32xf32>
    %30 = arith.addf %27, %29 : vector<8x32xf32>
    %31 = arith.truncf %30 : vector<8x32xf32> to vector<8x32xbf16>
    %c0_15 = arith.constant 0 : index
    %c0_16 = arith.constant 0 : index
    %c0_17 = arith.constant 0 : index
    %32 = vector.load %arg6[%c0_15, %c0_16, %c0_17] : memref<1x8x32xbf16, #tpu.memory_space<vmem>>, vector<1x8x32xbf16>
    %33 = vector.shape_cast %32 : vector<1x8x32xbf16> to vector<8x32xbf16>
    %34 = vector.shape_cast %31 : vector<8x32xbf16> to vector<1x8x32xbf16>
    tpu.vector_store %arg6[%c0_15, %c0_16, %c0_17], %34 {strides = array<i32>} : memref<1x8x32xbf16, #tpu.memory_space<vmem>>, vector<1x8x32xbf16>,
    return
  }
  func.func @transform_0(%arg0: i32) -> (i32, i32, i32) {
    %c0_i32 = arith.constant 0 : i32
    %c0_i32_0 = arith.constant 0 : i32
    %c0_i32_1 = arith.constant 0 : i32
    return %arg0, %c0_i32, %c0_i32_0 : i32, i32, i32
  }
  func.func @transform_1(%arg0: i32) -> (i32, i32, i32) {
    %c0_i32 = arith.constant 0 : i32
    %c0_i32_0 = arith.constant 0 : i32
    %c0_i32_1 = arith.constant 0 : i32
    return %arg0, %c0_i32, %c0_i32_0 : i32, i32, i32
  }
  func.func @transform_2(%arg0: i32) -> (i32, i32) {
    %c0_i32 = arith.constant 0 : i32
    %c0_i32_0 = arith.constant 0 : i32
    %c0_i32_1 = arith.constant 0 : i32
    return %c0_i32, %c0_i32_0 : i32, i32
  }
  func.func @transform_3(%arg0: i32) -> (i32, i32) {
    %c0_i32 = arith.constant 0 : i32
    %c0_i32_0 = arith.constant 0 : i32
    %c0_i32_1 = arith.constant 0 : i32
    return %c0_i32, %c0_i32_0 : i32, i32
  }
  func.func @transform_4(%arg0: i32) -> (i32, i32) {
    %c0_i32 = arith.constant 0 : i32
    %c0_i32_0 = arith.constant 0 : i32
    %c0_i32_1 = arith.constant 0 : i32
    return %c0_i32, %c0_i32_0 : i32, i32
  }
  func.func @transform_5(%arg0: i32) -> (i32, i32, i32) {
    %c0_i32 = arith.constant 0 : i32
    %c0_i32_0 = arith.constant 0 : i32
    %c0_i32_1 = arith.constant 0 : i32
    return %arg0, %c0_i32, %c0_i32_0 : i32, i32, i32
  }
}

module attributes {stable_mosaic.version = 11 : i64} {
  func.func @_mha_kernel(%arg0: i32, %arg1: i32, %arg2: i32, %arg3: memref<1x8x32xbf16, #tpu.memory_space<vmem>>, %arg4: memref<1x8x32xbf16, #tpu.memory_space<vmem>>, %arg5: memref<1x8x32xbf16, #tpu.memory_space<vmem>>, %arg6: memref<1x1x8xf32, #tpu.memory_space<vmem>>, %arg7: memref<1x8x32xbf16, #tpu.memory_space<vmem>>) attributes {dimension_semantics = [#tpu.dimension_semantics<parallel>, #tpu.dimension_semantics<parallel>, #tpu.dimension_semantics<parallel>], iteration_bounds = array<i64: 4, 1, 1>, scalar_prefetch = 0 : i64, scratch_operands = 0 : i64, tpu.core_type = #tpu.core_type<tc>, window_params = [{transform_indices = @transform_0, window_bounds = array<i64: 1, 8, 32>}, {transform_indices = @transform_1, window_bounds = array<i64: 1, 8, 32>}, {transform_indices = @transform_2, window_bounds = array<i64: 1, 8, 32>}, {transform_indices = @transform_3, window_bounds = array<i64: 1, 1, 8>}, {transform_indices = @transform_4, window_bounds = array<i64: 1, 8, 32>}]} {
    %c0 = arith.constant 0 : index
    %c0_0 = arith.constant 0 : index
    %c0_1 = arith.constant 0 : index
    %0 = vector.load %arg6[%c0, %c0_0, %c0_1] : memref<1x1x8xf32, #tpu.memory_space<vmem>>, vector<1x1x8xf32>
    %1 = vector.shape_cast %0 : vector<1x1x8xf32> to vector<1x8xf32>
    %c0_2 = arith.constant 0 : index
    %c0_3 = arith.constant 0 : index
    %c0_4 = arith.constant 0 : index
    %2 = vector.load %arg3[%c0_2, %c0_3, %c0_4] : memref<1x8x32xbf16, #tpu.memory_space<vmem>>, vector<1x8x32xbf16>
    %3 = vector.shape_cast %2 : vector<1x8x32xbf16> to vector<8x32xbf16>
    %c0_5 = arith.constant 0 : index
    %c0_6 = arith.constant 0 : index
    %c0_7 = arith.constant 0 : index
    %4 = vector.load %arg4[%c0_5, %c0_6, %c0_7] : memref<1x8x32xbf16, #tpu.memory_space<vmem>>, vector<1x8x32xbf16>
    %5 = vector.shape_cast %4 : vector<1x8x32xbf16> to vector<8x32xbf16>
    %c0_8 = arith.constant 0 : index
    %c0_9 = arith.constant 0 : index
    %c0_10 = arith.constant 0 : index
    %6 = vector.load %arg5[%c0_8, %c0_9, %c0_10] : memref<1x8x32xbf16, #tpu.memory_space<vmem>>, vector<1x8x32xbf16>
    %7 = vector.shape_cast %6 : vector<1x8x32xbf16> to vector<8x32xbf16>
    %8 = vector.extract_strided_slice %3 {offsets = [0, 0], sizes = [8, 16], strides = [1, 1]} : vector<8x32xbf16> to vector<8x16xbf16>
    %9 = vector.extract_strided_slice %5 {offsets = [0, 0], sizes = [8, 16], strides = [1, 1]} : vector<8x32xbf16> to vector<8x16xbf16>
    %10 = vector.extract_strided_slice %7 {offsets = [0, 0], sizes = [8, 16], strides = [1, 1]} : vector<8x32xbf16> to vector<8x16xbf16>
    %cst = arith.constant dense<0.000000e+00> : vector<8x8xf32>
    %11 = tpu.matmul %8, %9, %cst {dimension_numbers = #tpu.dot_dimension_numbers<[1], [1], [0], [0], [0, 0, 1, 0], [], []>} : vector<8x16xbf16>, vector<8x16xbf16>, vector<8x8xf32> -> vector<8x8xf32>
    %12 = vector.broadcast %1 : vector<1x8xf32> to vector<8x8xf32>
    %13 = arith.addf %11, %12 : vector<8x8xf32>
    %cst_11 = arith.constant dense<0xFF800000> : vector<8xf32>
    %14 = vector.multi_reduction <maximumf>, %13, %cst_11 [1] : vector<8x8xf32> to vector<8xf32>
    %15 = vector.shape_cast %14 : vector<8xf32> to vector<8x1xf32>
    %16 = vector.broadcast %15 : vector<8x1xf32> to vector<8x8xf32>
    %17 = arith.subf %13, %16 : vector<8x8xf32>
    %18 = math.exp %17 : vector<8x8xf32>
    %cst_12 = arith.constant dense<0.000000e+00> : vector<8xf32>
    %19 = vector.multi_reduction <add>, %18, %cst_12 [1] : vector<8x8xf32> to vector<8xf32>
    %20 = vector.shape_cast %19 : vector<8xf32> to vector<8x1xf32>
    %21 = tpu.reciprocal %20 {approx = true} : vector<8x1xf32> -> vector<8x1xf32>
    %22 = vector.broadcast %21 : vector<8x1xf32> to vector<8x8xf32>
    %23 = arith.mulf %18, %22 : vector<8x8xf32>
    %24 = arith.truncf %23 : vector<8x8xf32> to vector<8x8xbf16>
    %cst_13 = arith.constant dense<0.000000e+00> : vector<8x16xf32>
    %25 = tpu.matmul %24, %10, %cst_13 {dimension_numbers = #tpu.dot_dimension_numbers<[1], [0], [0], [1], [0, 0, 1, 1], [], []>} : vector<8x8xbf16>, vector<8x16xbf16>, vector<8x16xf32> -> vector<8x16xf32>
    %26 = arith.truncf %25 : vector<8x16xf32> to vector<8x16xbf16>
    %c0_14 = arith.constant 0 : index
    %c0_15 = arith.constant 0 : index
    %c0_16 = arith.constant 0 : index
    %27 = vector.load %arg7[%c0_14, %c0_15, %c0_16] : memref<1x8x32xbf16, #tpu.memory_space<vmem>>, vector<1x8x16xbf16>
    %28 = vector.shape_cast %27 : vector<1x8x16xbf16> to vector<8x16xbf16>
    %29 = vector.shape_cast %26 : vector<8x16xbf16> to vector<1x8x16xbf16>
    tpu.vector_store %arg7[%c0_14, %c0_15, %c0_16], %29 {strides = array<i32>} : memref<1x8x32xbf16, #tpu.memory_space<vmem>>, vector<1x8x16xbf16>,
    %30 = vector.extract_strided_slice %3 {offsets = [0, 16], sizes = [8, 16], strides = [1, 1]} : vector<8x32xbf16> to vector<8x16xbf16>
    %31 = vector.extract_strided_slice %5 {offsets = [0, 16], sizes = [8, 16], strides = [1, 1]} : vector<8x32xbf16> to vector<8x16xbf16>
    %32 = vector.extract_strided_slice %7 {offsets = [0, 16], sizes = [8, 16], strides = [1, 1]} : vector<8x32xbf16> to vector<8x16xbf16>
    %cst_17 = arith.constant dense<0.000000e+00> : vector<8x8xf32>
    %33 = tpu.matmul %30, %31, %cst_17 {dimension_numbers = #tpu.dot_dimension_numbers<[1], [1], [0], [0], [0, 0, 1, 0], [], []>} : vector<8x16xbf16>, vector<8x16xbf16>, vector<8x8xf32> -> vector<8x8xf32>
    %34 = vector.broadcast %1 : vector<1x8xf32> to vector<8x8xf32>
    %35 = arith.addf %33, %34 : vector<8x8xf32>
    %cst_18 = arith.constant dense<0xFF800000> : vector<8xf32>
    %36 = vector.multi_reduction <maximumf>, %35, %cst_18 [1] : vector<8x8xf32> to vector<8xf32>
    %37 = vector.shape_cast %36 : vector<8xf32> to vector<8x1xf32>
    %38 = vector.broadcast %37 : vector<8x1xf32> to vector<8x8xf32>
    %39 = arith.subf %35, %38 : vector<8x8xf32>
    %40 = math.exp %39 : vector<8x8xf32>
    %cst_19 = arith.constant dense<0.000000e+00> : vector<8xf32>
    %41 = vector.multi_reduction <add>, %40, %cst_19 [1] : vector<8x8xf32> to vector<8xf32>
    %42 = vector.shape_cast %41 : vector<8xf32> to vector<8x1xf32>
    %43 = tpu.reciprocal %42 {approx = true} : vector<8x1xf32> -> vector<8x1xf32>
    %44 = vector.broadcast %43 : vector<8x1xf32> to vector<8x8xf32>
    %45 = arith.mulf %40, %44 : vector<8x8xf32>
    %46 = arith.truncf %45 : vector<8x8xf32> to vector<8x8xbf16>
    %cst_20 = arith.constant dense<0.000000e+00> : vector<8x16xf32>
    %47 = tpu.matmul %46, %32, %cst_20 {dimension_numbers = #tpu.dot_dimension_numbers<[1], [0], [0], [1], [0, 0, 1, 1], [], []>} : vector<8x8xbf16>, vector<8x16xbf16>, vector<8x16xf32> -> vector<8x16xf32>
    %48 = arith.truncf %47 : vector<8x16xf32> to vector<8x16xbf16>
    %c0_21 = arith.constant 0 : index
    %c0_22 = arith.constant 0 : index
    %c16 = arith.constant 16 : index
    %49 = vector.load %arg7[%c0_21, %c0_22, %c16] : memref<1x8x32xbf16, #tpu.memory_space<vmem>>, vector<1x8x16xbf16>
    %50 = vector.shape_cast %49 : vector<1x8x16xbf16> to vector<8x16xbf16>
    %51 = vector.shape_cast %48 : vector<8x16xbf16> to vector<1x8x16xbf16>
    tpu.vector_store %arg7[%c0_21, %c0_22, %c16], %51 {strides = array<i32>} : memref<1x8x32xbf16, #tpu.memory_space<vmem>>, vector<1x8x16xbf16>,
    return
  }
  func.func @transform_0(%arg0: i32, %arg1: i32, %arg2: i32) -> (i32, i32, i32) {
    %c0_i32 = arith.constant 0 : i32
    return %arg0, %arg2, %arg1 : i32, i32, i32
  }
  func.func @transform_1(%arg0: i32, %arg1: i32, %arg2: i32) -> (i32, i32, i32) {
    %c0_i32 = arith.constant 0 : i32
    %c0_i32_0 = arith.constant 0 : i32
    return %arg0, %c0_i32, %arg1 : i32, i32, i32
  }
  func.func @transform_2(%arg0: i32, %arg1: i32, %arg2: i32) -> (i32, i32, i32) {
    %c0_i32 = arith.constant 0 : i32
    %c0_i32_0 = arith.constant 0 : i32
    return %arg0, %c0_i32, %arg1 : i32, i32, i32
  }
  func.func @transform_3(%arg0: i32, %arg1: i32, %arg2: i32) -> (i32, i32, i32) {
    %c0_i32 = arith.constant 0 : i32
    %c0_i32_0 = arith.constant 0 : i32
    %c0_i32_1 = arith.constant 0 : i32
    return %arg0, %c0_i32, %c0_i32_0 : i32, i32, i32
  }
  func.func @transform_4(%arg0: i32, %arg1: i32, %arg2: i32) -> (i32, i32, i32) {
    %c0_i32 = arith.constant 0 : i32
    return %arg0, %arg2, %arg1 : i32, i32, i32
  }
}

module attributes {stable_mosaic.version = 11 : i64} {
  func.func @_qkv_kernel(%arg0: i32, %arg1: memref<32x32xbf16, #tpu.memory_space<vmem>>, %arg2: memref<32x96xbf16, #tpu.memory_space<vmem>>, %arg3: memref<1x96xf32, #tpu.memory_space<vmem>>, %arg4: memref<32x32xbf16, #tpu.memory_space<vmem>>, %arg5: memref<32x32xbf16, #tpu.memory_space<vmem>>, %arg6: memref<32x32xbf16, #tpu.memory_space<vmem>>) attributes {dimension_semantics = [#tpu.dimension_semantics<parallel>], iteration_bounds = array<i64: 1>, scalar_prefetch = 0 : i64, scratch_operands = 0 : i64, tpu.core_type = #tpu.core_type<tc>, window_params = [{transform_indices = @transform_0, window_bounds = array<i64: 32, 32>}, {pipeline_mode = #tpu.pipeline_mode<synchronous>, transform_indices = @transform_1, window_bounds = array<i64: 32, 96>}, {pipeline_mode = #tpu.pipeline_mode<synchronous>, transform_indices = @transform_2, window_bounds = array<i64: 1, 96>}, {transform_indices = @transform_3, window_bounds = array<i64: 32, 32>}, {transform_indices = @transform_4, window_bounds = array<i64: 32, 32>}, {transform_indices = @transform_5, window_bounds = array<i64: 32, 32>}]} {
    %c0 = arith.constant 0 : index
    %c0_0 = arith.constant 0 : index
    %0 = vector.load %arg1[%c0, %c0_0] : memref<32x32xbf16, #tpu.memory_space<vmem>>, vector<32x32xbf16>
    %c0_1 = arith.constant 0 : index
    %c0_2 = arith.constant 0 : index
    %1 = vector.load %arg2[%c0_1, %c0_2] : memref<32x96xbf16, #tpu.memory_space<vmem>>, vector<32x96xbf16>
    %cst = arith.constant dense<0.000000e+00> : vector<32x96xf32>
    %2 = tpu.matmul %0, %1, %cst {dimension_numbers = #tpu.dot_dimension_numbers<[1], [0], [0], [1], [0, 0, 1, 1], [], []>} : vector<32x32xbf16>, vector<32x96xbf16>, vector<32x96xf32> -> vector<32x96xf32>
    %c0_3 = arith.constant 0 : index
    %c0_4 = arith.constant 0 : index
    %3 = vector.load %arg3[%c0_3, %c0_4] : memref<1x96xf32, #tpu.memory_space<vmem>>, vector<1x96xf32>
    %4 = vector.broadcast %3 : vector<1x96xf32> to vector<32x96xf32>
    %5 = arith.addf %2, %4 : vector<32x96xf32>
    %6 = vector.extract_strided_slice %5 {offsets = [0, 0], sizes = [32, 32], strides = [1, 1]} : vector<32x96xf32> to vector<32x32xf32>
    %cst_5 = arith.constant 2.500000e-01 : f32
    %7 = vector.broadcast %cst_5 : f32 to vector<32x32xf32>
    %8 = arith.mulf %6, %7 : vector<32x32xf32>
    %9 = arith.truncf %8 : vector<32x32xf32> to vector<32x32xbf16>
    %c0_6 = arith.constant 0 : index
    %c0_7 = arith.constant 0 : index
    %10 = vector.load %arg4[%c0_6, %c0_7] : memref<32x32xbf16, #tpu.memory_space<vmem>>, vector<32x32xbf16>
    tpu.vector_store %arg4[%c0_6, %c0_7], %9 {strides = array<i32>} : memref<32x32xbf16, #tpu.memory_space<vmem>>, vector<32x32xbf16>,
    %11 = vector.extract_strided_slice %5 {offsets = [0, 32], sizes = [32, 32], strides = [1, 1]} : vector<32x96xf32> to vector<32x32xf32>
    %12 = arith.truncf %11 : vector<32x32xf32> to vector<32x32xbf16>
    %c0_8 = arith.constant 0 : index
    %c0_9 = arith.constant 0 : index
    %13 = vector.load %arg5[%c0_8, %c0_9] : memref<32x32xbf16, #tpu.memory_space<vmem>>, vector<32x32xbf16>
    tpu.vector_store %arg5[%c0_8, %c0_9], %12 {strides = array<i32>} : memref<32x32xbf16, #tpu.memory_space<vmem>>, vector<32x32xbf16>,
    %14 = vector.extract_strided_slice %5 {offsets = [0, 64], sizes = [32, 32], strides = [1, 1]} : vector<32x96xf32> to vector<32x32xf32>
    %15 = arith.truncf %14 : vector<32x32xf32> to vector<32x32xbf16>
    %c0_10 = arith.constant 0 : index
    %c0_11 = arith.constant 0 : index
    %16 = vector.load %arg6[%c0_10, %c0_11] : memref<32x32xbf16, #tpu.memory_space<vmem>>, vector<32x32xbf16>
    tpu.vector_store %arg6[%c0_10, %c0_11], %15 {strides = array<i32>} : memref<32x32xbf16, #tpu.memory_space<vmem>>, vector<32x32xbf16>,
    return
  }
  func.func @transform_0(%arg0: i32) -> (i32, i32) {
    %c0_i32 = arith.constant 0 : i32
    %c0_i32_0 = arith.constant 0 : i32
    return %arg0, %c0_i32 : i32, i32
  }
  func.func @transform_1(%arg0: i32) -> (i32, i32) {
    %c0_i32 = arith.constant 0 : i32
    %c0_i32_0 = arith.constant 0 : i32
    %c0_i32_1 = arith.constant 0 : i32
    return %c0_i32, %c0_i32_0 : i32, i32
  }
  func.func @transform_2(%arg0: i32) -> (i32, i32) {
    %c0_i32 = arith.constant 0 : i32
    %c0_i32_0 = arith.constant 0 : i32
    %c0_i32_1 = arith.constant 0 : i32
    return %c0_i32, %c0_i32_0 : i32, i32
  }
  func.func @transform_3(%arg0: i32) -> (i32, i32) {
    %c0_i32 = arith.constant 0 : i32
    %c0_i32_0 = arith.constant 0 : i32
    return %arg0, %c0_i32 : i32, i32
  }
  func.func @transform_4(%arg0: i32) -> (i32, i32) {
    %c0_i32 = arith.constant 0 : i32
    %c0_i32_0 = arith.constant 0 : i32
    return %arg0, %c0_i32 : i32, i32
  }
  func.func @transform_5(%arg0: i32) -> (i32, i32) {
    %c0_i32 = arith.constant 0 : i32
    %c0_i32_0 = arith.constant 0 : i32
    return %arg0, %c0_i32 : i32, i32
  }
}

module attributes {stable_mosaic.version = 11 : i64} {
  func.func @_linear_res_ln_kernel(%arg0: i32, %arg1: memref<32x32xbf16, #tpu.memory_space<vmem>>, %arg2: memref<32x32xbf16, #tpu.memory_space<vmem>>, %arg3: memref<1x32xf32, #tpu.memory_space<vmem>>, %arg4: memref<32x32xbf16, #tpu.memory_space<vmem>>, %arg5: memref<1x32xf32, #tpu.memory_space<vmem>>, %arg6: memref<1x32xf32, #tpu.memory_space<vmem>>, %arg7: memref<32x32xbf16, #tpu.memory_space<vmem>>) attributes {dimension_semantics = [#tpu.dimension_semantics<parallel>], iteration_bounds = array<i64: 1>, scalar_prefetch = 0 : i64, scratch_operands = 0 : i64, tpu.core_type = #tpu.core_type<tc>, window_params = [{transform_indices = @transform_0, window_bounds = array<i64: 32, 32>}, {pipeline_mode = #tpu.pipeline_mode<synchronous>, transform_indices = @transform_1, window_bounds = array<i64: 32, 32>}, {pipeline_mode = #tpu.pipeline_mode<synchronous>, transform_indices = @transform_2, window_bounds = array<i64: 1, 32>}, {transform_indices = @transform_3, window_bounds = array<i64: 32, 32>}, {pipeline_mode = #tpu.pipeline_mode<synchronous>, transform_indices = @transform_4, window_bounds = array<i64: 1, 32>}, {pipeline_mode = #tpu.pipeline_mode<synchronous>, transform_indices = @transform_5, window_bounds = array<i64: 1, 32>}, {transform_indices = @transform_6, window_bounds = array<i64: 32, 32>}]} {
    %c0 = arith.constant 0 : index
    %c0_0 = arith.constant 0 : index
    %0 = vector.load %arg1[%c0, %c0_0] : memref<32x32xbf16, #tpu.memory_space<vmem>>, vector<32x32xbf16>
    %c0_1 = arith.constant 0 : index
    %c0_2 = arith.constant 0 : index
    %1 = vector.load %arg2[%c0_1, %c0_2] : memref<32x32xbf16, #tpu.memory_space<vmem>>, vector<32x32xbf16>
    %cst = arith.constant dense<0.000000e+00> : vector<32x32xf32>
    %2 = tpu.matmul %0, %1, %cst {dimension_numbers = #tpu.dot_dimension_numbers<[1], [0], [0], [1], [0, 0, 1, 1], [], []>} : vector<32x32xbf16>, vector<32x32xbf16>, vector<32x32xf32> -> vector<32x32xf32>
    %c0_3 = arith.constant 0 : index
    %c0_4 = arith.constant 0 : index
    %3 = vector.load %arg3[%c0_3, %c0_4] : memref<1x32xf32, #tpu.memory_space<vmem>>, vector<1x32xf32>
    %4 = vector.broadcast %3 : vector<1x32xf32> to vector<32x32xf32>
    %5 = arith.addf %2, %4 : vector<32x32xf32>
    %c0_5 = arith.constant 0 : index
    %c0_6 = arith.constant 0 : index
    %6 = vector.load %arg4[%c0_5, %c0_6] : memref<32x32xbf16, #tpu.memory_space<vmem>>, vector<32x32xbf16>
    %7 = arith.extf %6 : vector<32x32xbf16> to vector<32x32xf32>
    %8 = arith.addf %5, %7 : vector<32x32xf32>
    %cst_7 = arith.constant dense<0.000000e+00> : vector<32xf32>
    %9 = vector.multi_reduction <add>, %8, %cst_7 [1] : vector<32x32xf32> to vector<32xf32>
    %10 = vector.shape_cast %9 : vector<32xf32> to vector<32x1xf32>
    %cst_8 = arith.constant 3.200000e+01 : f32
    %11 = vector.broadcast %cst_8 : f32 to vector<32x1xf32>
    %12 = arith.divf %10, %11 : vector<32x1xf32>
    %13 = vector.broadcast %12 : vector<32x1xf32> to vector<32x32xf32>
    %14 = arith.subf %8, %13 : vector<32x32xf32>
    %15 = arith.mulf %14, %14 : vector<32x32xf32>
    %cst_9 = arith.constant dense<0.000000e+00> : vector<32xf32>
    %16 = vector.multi_reduction <add>, %15, %cst_9 [1] : vector<32x32xf32> to vector<32xf32>
    %17 = vector.shape_cast %16 : vector<32xf32> to vector<32x1xf32>
    %cst_10 = arith.constant 3.200000e+01 : f32
    %18 = vector.broadcast %cst_10 : f32 to vector<32x1xf32>
    %19 = arith.divf %17, %18 : vector<32x1xf32>
    %20 = vector.broadcast %12 : vector<32x1xf32> to vector<32x32xf32>
    %21 = arith.subf %8, %20 : vector<32x32xf32>
    %cst_11 = arith.constant 9.99999996E-13 : f32
    %22 = vector.broadcast %cst_11 : f32 to vector<32x1xf32>
    %23 = arith.addf %19, %22 : vector<32x1xf32>
    %24 = math.rsqrt %23 : vector<32x1xf32>
    %25 = vector.broadcast %24 : vector<32x1xf32> to vector<32x32xf32>
    %26 = arith.mulf %21, %25 : vector<32x32xf32>
    %c0_12 = arith.constant 0 : index
    %c0_13 = arith.constant 0 : index
    %27 = vector.load %arg5[%c0_12, %c0_13] : memref<1x32xf32, #tpu.memory_space<vmem>>, vector<1x32xf32>
    %28 = vector.broadcast %27 : vector<1x32xf32> to vector<32x32xf32>
    %29 = arith.mulf %26, %28 : vector<32x32xf32>
    %c0_14 = arith.constant 0 : index
    %c0_15 = arith.constant 0 : index
    %30 = vector.load %arg6[%c0_14, %c0_15] : memref<1x32xf32, #tpu.memory_space<vmem>>, vector<1x32xf32>
    %31 = vector.broadcast %30 : vector<1x32xf32> to vector<32x32xf32>
    %32 = arith.addf %29, %31 : vector<32x32xf32>
    %33 = arith.truncf %32 : vector<32x32xf32> to vector<32x32xbf16>
    %c0_16 = arith.constant 0 : index
    %c0_17 = arith.constant 0 : index
    %34 = vector.load %arg7[%c0_16, %c0_17] : memref<32x32xbf16, #tpu.memory_space<vmem>>, vector<32x32xbf16>
    tpu.vector_store %arg7[%c0_16, %c0_17], %33 {strides = array<i32>} : memref<32x32xbf16, #tpu.memory_space<vmem>>, vector<32x32xbf16>,
    return
  }
  func.func @transform_0(%arg0: i32) -> (i32, i32) {
    %c0_i32 = arith.constant 0 : i32
    %c0_i32_0 = arith.constant 0 : i32
    return %arg0, %c0_i32 : i32, i32
  }
  func.func @transform_1(%arg0: i32) -> (i32, i32) {
    %c0_i32 = arith.constant 0 : i32
    %c0_i32_0 = arith.constant 0 : i32
    %c0_i32_1 = arith.constant 0 : i32
    return %c0_i32, %c0_i32_0 : i32, i32
  }
  func.func @transform_2(%arg0: i32) -> (i32, i32) {
    %c0_i32 = arith.constant 0 : i32
    %c0_i32_0 = arith.constant 0 : i32
    %c0_i32_1 = arith.constant 0 : i32
    return %c0_i32, %c0_i32_0 : i32, i32
  }
  func.func @transform_3(%arg0: i32) -> (i32, i32) {
    %c0_i32 = arith.constant 0 : i32
    %c0_i32_0 = arith.constant 0 : i32
    return %arg0, %c0_i32 : i32, i32
  }
  func.func @transform_4(%arg0: i32) -> (i32, i32) {
    %c0_i32 = arith.constant 0 : i32
    %c0_i32_0 = arith.constant 0 : i32
    %c0_i32_1 = arith.constant 0 : i32
    return %c0_i32, %c0_i32_0 : i32, i32
  }
  func.func @transform_5(%arg0: i32) -> (i32, i32) {
    %c0_i32 = arith.constant 0 : i32
    %c0_i32_0 = arith.constant 0 : i32
    %c0_i32_1 = arith.constant 0 : i32
    return %c0_i32, %c0_i32_0 : i32, i32
  }
  func.func @transform_6(%arg0: i32) -> (i32, i32) {
    %c0_i32 = arith.constant 0 : i32
    %c0_i32_0 = arith.constant 0 : i32
    return %arg0, %c0_i32 : i32, i32
  }
}

module attributes {stable_mosaic.version = 11 : i64} {
  func.func @_ffn_res_ln_kernel(%arg0: i32, %arg1: memref<32x32xbf16, #tpu.memory_space<vmem>>, %arg2: memref<32x64xbf16, #tpu.memory_space<vmem>>, %arg3: memref<1x64xf32, #tpu.memory_space<vmem>>, %arg4: memref<64x32xbf16, #tpu.memory_space<vmem>>, %arg5: memref<1x32xf32, #tpu.memory_space<vmem>>, %arg6: memref<1x32xf32, #tpu.memory_space<vmem>>, %arg7: memref<1x32xf32, #tpu.memory_space<vmem>>, %arg8: memref<32x32xbf16, #tpu.memory_space<vmem>>) attributes {dimension_semantics = [#tpu.dimension_semantics<parallel>], iteration_bounds = array<i64: 1>, scalar_prefetch = 0 : i64, scratch_operands = 0 : i64, tpu.core_type = #tpu.core_type<tc>, window_params = [{transform_indices = @transform_0, window_bounds = array<i64: 32, 32>}, {pipeline_mode = #tpu.pipeline_mode<synchronous>, transform_indices = @transform_1, window_bounds = array<i64: 32, 64>}, {pipeline_mode = #tpu.pipeline_mode<synchronous>, transform_indices = @transform_2, window_bounds = array<i64: 1, 64>}, {pipeline_mode = #tpu.pipeline_mode<synchronous>, transform_indices = @transform_3, window_bounds = array<i64: 64, 32>}, {pipeline_mode = #tpu.pipeline_mode<synchronous>, transform_indices = @transform_4, window_bounds = array<i64: 1, 32>}, {pipeline_mode = #tpu.pipeline_mode<synchronous>, transform_indices = @transform_5, window_bounds = array<i64: 1, 32>}, {pipeline_mode = #tpu.pipeline_mode<synchronous>, transform_indices = @transform_6, window_bounds = array<i64: 1, 32>}, {transform_indices = @transform_7, window_bounds = array<i64: 32, 32>}]} {
    %c0 = arith.constant 0 : index
    %c0_0 = arith.constant 0 : index
    %0 = vector.load %arg1[%c0, %c0_0] : memref<32x32xbf16, #tpu.memory_space<vmem>>, vector<32x32xbf16>
    %c0_1 = arith.constant 0 : index
    %c0_2 = arith.constant 0 : index
    %1 = vector.load %arg2[%c0_1, %c0_2] : memref<32x64xbf16, #tpu.memory_space<vmem>>, vector<32x64xbf16>
    %cst = arith.constant dense<0.000000e+00> : vector<32x64xf32>
    %2 = tpu.matmul %0, %1, %cst {dimension_numbers = #tpu.dot_dimension_numbers<[1], [0], [0], [1], [0, 0, 1, 1], [], []>} : vector<32x32xbf16>, vector<32x64xbf16>, vector<32x64xf32> -> vector<32x64xf32>
    %c0_3 = arith.constant 0 : index
    %c0_4 = arith.constant 0 : index
    %3 = vector.load %arg3[%c0_3, %c0_4] : memref<1x64xf32, #tpu.memory_space<vmem>>, vector<1x64xf32>
    %4 = vector.broadcast %3 : vector<1x64xf32> to vector<32x64xf32>
    %5 = arith.addf %2, %4 : vector<32x64xf32>
    %6 = arith.mulf %5, %5 : vector<32x64xf32>
    %7 = arith.mulf %5, %6 : vector<32x64xf32>
    %cst_5 = arith.constant 4.471500e-02 : f32
    %8 = vector.broadcast %cst_5 : f32 to vector<32x64xf32>
    %9 = arith.mulf %8, %7 : vector<32x64xf32>
    %10 = arith.addf %5, %9 : vector<32x64xf32>
    %cst_6 = arith.constant 0.797884583 : f32
    %11 = vector.broadcast %cst_6 : f32 to vector<32x64xf32>
    %12 = arith.mulf %11, %10 : vector<32x64xf32>
    %13 = math.tanh %12 : vector<32x64xf32>
    %cst_7 = arith.constant 1.000000e+00 : f32
    %14 = vector.broadcast %cst_7 : f32 to vector<32x64xf32>
    %15 = arith.addf %14, %13 : vector<32x64xf32>
    %cst_8 = arith.constant 5.000000e-01 : f32
    %16 = vector.broadcast %cst_8 : f32 to vector<32x64xf32>
    %17 = arith.mulf %16, %15 : vector<32x64xf32>
    %18 = arith.mulf %5, %17 : vector<32x64xf32>
    %19 = arith.truncf %18 : vector<32x64xf32> to vector<32x64xbf16>
    %c0_9 = arith.constant 0 : index
    %c0_10 = arith.constant 0 : index
    %20 = vector.load %arg4[%c0_9, %c0_10] : memref<64x32xbf16, #tpu.memory_space<vmem>>, vector<64x32xbf16>
    %cst_11 = arith.constant dense<0.000000e+00> : vector<32x32xf32>
    %21 = tpu.matmul %19, %20, %cst_11 {dimension_numbers = #tpu.dot_dimension_numbers<[1], [0], [0], [1], [0, 0, 1, 1], [], []>} : vector<32x64xbf16>, vector<64x32xbf16>, vector<32x32xf32> -> vector<32x32xf32>
    %c0_12 = arith.constant 0 : index
    %c0_13 = arith.constant 0 : index
    %22 = vector.load %arg5[%c0_12, %c0_13] : memref<1x32xf32, #tpu.memory_space<vmem>>, vector<1x32xf32>
    %23 = vector.broadcast %22 : vector<1x32xf32> to vector<32x32xf32>
    %24 = arith.addf %21, %23 : vector<32x32xf32>
    %25 = arith.extf %0 : vector<32x32xbf16> to vector<32x32xf32>
    %26 = arith.addf %24, %25 : vector<32x32xf32>
    %cst_14 = arith.constant dense<0.000000e+00> : vector<32xf32>
    %27 = vector.multi_reduction <add>, %26, %cst_14 [1] : vector<32x32xf32> to vector<32xf32>
    %28 = vector.shape_cast %27 : vector<32xf32> to vector<32x1xf32>
    %cst_15 = arith.constant 3.200000e+01 : f32
    %29 = vector.broadcast %cst_15 : f32 to vector<32x1xf32>
    %30 = arith.divf %28, %29 : vector<32x1xf32>
    %31 = vector.broadcast %30 : vector<32x1xf32> to vector<32x32xf32>
    %32 = arith.subf %26, %31 : vector<32x32xf32>
    %33 = arith.mulf %32, %32 : vector<32x32xf32>
    %cst_16 = arith.constant dense<0.000000e+00> : vector<32xf32>
    %34 = vector.multi_reduction <add>, %33, %cst_16 [1] : vector<32x32xf32> to vector<32xf32>
    %35 = vector.shape_cast %34 : vector<32xf32> to vector<32x1xf32>
    %cst_17 = arith.constant 3.200000e+01 : f32
    %36 = vector.broadcast %cst_17 : f32 to vector<32x1xf32>
    %37 = arith.divf %35, %36 : vector<32x1xf32>
    %38 = vector.broadcast %30 : vector<32x1xf32> to vector<32x32xf32>
    %39 = arith.subf %26, %38 : vector<32x32xf32>
    %cst_18 = arith.constant 9.99999996E-13 : f32
    %40 = vector.broadcast %cst_18 : f32 to vector<32x1xf32>
    %41 = arith.addf %37, %40 : vector<32x1xf32>
    %42 = math.rsqrt %41 : vector<32x1xf32>
    %43 = vector.broadcast %42 : vector<32x1xf32> to vector<32x32xf32>
    %44 = arith.mulf %39, %43 : vector<32x32xf32>
    %c0_19 = arith.constant 0 : index
    %c0_20 = arith.constant 0 : index
    %45 = vector.load %arg6[%c0_19, %c0_20] : memref<1x32xf32, #tpu.memory_space<vmem>>, vector<1x32xf32>
    %46 = vector.broadcast %45 : vector<1x32xf32> to vector<32x32xf32>
    %47 = arith.mulf %44, %46 : vector<32x32xf32>
    %c0_21 = arith.constant 0 : index
    %c0_22 = arith.constant 0 : index
    %48 = vector.load %arg7[%c0_21, %c0_22] : memref<1x32xf32, #tpu.memory_space<vmem>>, vector<1x32xf32>
    %49 = vector.broadcast %48 : vector<1x32xf32> to vector<32x32xf32>
    %50 = arith.addf %47, %49 : vector<32x32xf32>
    %51 = arith.truncf %50 : vector<32x32xf32> to vector<32x32xbf16>
    %c0_23 = arith.constant 0 : index
    %c0_24 = arith.constant 0 : index
    %52 = vector.load %arg8[%c0_23, %c0_24] : memref<32x32xbf16, #tpu.memory_space<vmem>>, vector<32x32xbf16>
    tpu.vector_store %arg8[%c0_23, %c0_24], %51 {strides = array<i32>} : memref<32x32xbf16, #tpu.memory_space<vmem>>, vector<32x32xbf16>,
    return
  }
  func.func @transform_0(%arg0: i32) -> (i32, i32) {
    %c0_i32 = arith.constant 0 : i32
    %c0_i32_0 = arith.constant 0 : i32
    return %arg0, %c0_i32 : i32, i32
  }
  func.func @transform_1(%arg0: i32) -> (i32, i32) {
    %c0_i32 = arith.constant 0 : i32
    %c0_i32_0 = arith.constant 0 : i32
    %c0_i32_1 = arith.constant 0 : i32
    return %c0_i32, %c0_i32_0 : i32, i32
  }
  func.func @transform_2(%arg0: i32) -> (i32, i32) {
    %c0_i32 = arith.constant 0 : i32
    %c0_i32_0 = arith.constant 0 : i32
    %c0_i32_1 = arith.constant 0 : i32
    return %c0_i32, %c0_i32_0 : i32, i32
  }
  func.func @transform_3(%arg0: i32) -> (i32, i32) {
    %c0_i32 = arith.constant 0 : i32
    %c0_i32_0 = arith.constant 0 : i32
    %c0_i32_1 = arith.constant 0 : i32
    return %c0_i32, %c0_i32_0 : i32, i32
  }
  func.func @transform_4(%arg0: i32) -> (i32, i32) {
    %c0_i32 = arith.constant 0 : i32
    %c0_i32_0 = arith.constant 0 : i32
    %c0_i32_1 = arith.constant 0 : i32
    return %c0_i32, %c0_i32_0 : i32, i32
  }
  func.func @transform_5(%arg0: i32) -> (i32, i32) {
    %c0_i32 = arith.constant 0 : i32
    %c0_i32_0 = arith.constant 0 : i32
    %c0_i32_1 = arith.constant 0 : i32
    return %c0_i32, %c0_i32_0 : i32, i32
  }
  func.func @transform_6(%arg0: i32) -> (i32, i32) {
    %c0_i32 = arith.constant 0 : i32
    %c0_i32_0 = arith.constant 0 : i32
    %c0_i32_1 = arith.constant 0 : i32
    return %c0_i32, %c0_i32_0 : i32, i32
  }
  func.func @transform_7(%arg0: i32) -> (i32, i32) {
    %c0_i32 = arith.constant 0 : i32
    %c0_i32_0 = arith.constant 0 : i32
    return %arg0, %c0_i32 : i32, i32
  }
}

module attributes {stable_mosaic.version = 11 : i64} {
  func.func @_linear_kernel(%arg0: i32, %arg1: memref<8x32xbf16, #tpu.memory_space<vmem>>, %arg2: memref<32x32xbf16, #tpu.memory_space<vmem>>, %arg3: memref<1x32xf32, #tpu.memory_space<vmem>>, %arg4: memref<8x32xf32, #tpu.memory_space<vmem>>) attributes {dimension_semantics = [#tpu.dimension_semantics<parallel>], iteration_bounds = array<i64: 1>, scalar_prefetch = 0 : i64, scratch_operands = 0 : i64, tpu.core_type = #tpu.core_type<tc>, window_params = [{transform_indices = @transform_0, window_bounds = array<i64: 8, 32>}, {pipeline_mode = #tpu.pipeline_mode<synchronous>, transform_indices = @transform_1, window_bounds = array<i64: 32, 32>}, {pipeline_mode = #tpu.pipeline_mode<synchronous>, transform_indices = @transform_2, window_bounds = array<i64: 1, 32>}, {transform_indices = @transform_3, window_bounds = array<i64: 8, 32>}]} {
    %c0 = arith.constant 0 : index
    %c0_0 = arith.constant 0 : index
    %0 = vector.load %arg1[%c0, %c0_0] : memref<8x32xbf16, #tpu.memory_space<vmem>>, vector<8x32xbf16>
    %c0_1 = arith.constant 0 : index
    %c0_2 = arith.constant 0 : index
    %1 = vector.load %arg2[%c0_1, %c0_2] : memref<32x32xbf16, #tpu.memory_space<vmem>>, vector<32x32xbf16>
    %cst = arith.constant dense<0.000000e+00> : vector<8x32xf32>
    %2 = tpu.matmul %0, %1, %cst {dimension_numbers = #tpu.dot_dimension_numbers<[1], [0], [0], [1], [0, 0, 1, 1], [], []>} : vector<8x32xbf16>, vector<32x32xbf16>, vector<8x32xf32> -> vector<8x32xf32>
    %c0_3 = arith.constant 0 : index
    %c0_4 = arith.constant 0 : index
    %3 = vector.load %arg3[%c0_3, %c0_4] : memref<1x32xf32, #tpu.memory_space<vmem>>, vector<1x32xf32>
    %4 = vector.broadcast %3 : vector<1x32xf32> to vector<8x32xf32>
    %5 = arith.addf %2, %4 : vector<8x32xf32>
    %6 = math.tanh %5 : vector<8x32xf32>
    %c0_5 = arith.constant 0 : index
    %c0_6 = arith.constant 0 : index
    %7 = vector.load %arg4[%c0_5, %c0_6] : memref<8x32xf32, #tpu.memory_space<vmem>>, vector<8x32xf32>
    tpu.vector_store %arg4[%c0_5, %c0_6], %6 {strides = array<i32>} : memref<8x32xf32, #tpu.memory_space<vmem>>, vector<8x32xf32>,
    return
  }
  func.func @transform_0(%arg0: i32) -> (i32, i32) {
    %c0_i32 = arith.constant 0 : i32
    %c0_i32_0 = arith.constant 0 : i32
    return %arg0, %c0_i32 : i32, i32
  }
  func.func @transform_1(%arg0: i32) -> (i32, i32) {
    %c0_i32 = arith.constant 0 : i32
    %c0_i32_0 = arith.constant 0 : i32
    %c0_i32_1 = arith.constant 0 : i32
    return %c0_i32, %c0_i32_0 : i32, i32
  }
  func.func @transform_2(%arg0: i32) -> (i32, i32) {
    %c0_i32 = arith.constant 0 : i32
    %c0_i32_0 = arith.constant 0 : i32
    %c0_i32_1 = arith.constant 0 : i32
    return %c0_i32, %c0_i32_0 : i32, i32
  }
  func.func @transform_3(%arg0: i32) -> (i32, i32) {
    %c0_i32 = arith.constant 0 : i32
    %c0_i32_0 = arith.constant 0 : i32
    return %arg0, %c0_i32 : i32, i32
  }
}

module attributes {stable_mosaic.version = 11 : i64} {
  func.func @_linear_kernel(%arg0: i32, %arg1: memref<8x32xbf16, #tpu.memory_space<vmem>>, %arg2: memref<32x32xbf16, #tpu.memory_space<vmem>>, %arg3: memref<1x32xf32, #tpu.memory_space<vmem>>, %arg4: memref<8x32xbf16, #tpu.memory_space<vmem>>) attributes {dimension_semantics = [#tpu.dimension_semantics<parallel>], iteration_bounds = array<i64: 1>, scalar_prefetch = 0 : i64, scratch_operands = 0 : i64, tpu.core_type = #tpu.core_type<tc>, window_params = [{transform_indices = @transform_0, window_bounds = array<i64: 8, 32>}, {pipeline_mode = #tpu.pipeline_mode<synchronous>, transform_indices = @transform_1, window_bounds = array<i64: 32, 32>}, {pipeline_mode = #tpu.pipeline_mode<synchronous>, transform_indices = @transform_2, window_bounds = array<i64: 1, 32>}, {transform_indices = @transform_3, window_bounds = array<i64: 8, 32>}]} {
    %c0 = arith.constant 0 : index
    %c0_0 = arith.constant 0 : index
    %0 = vector.load %arg1[%c0, %c0_0] : memref<8x32xbf16, #tpu.memory_space<vmem>>, vector<8x32xbf16>
    %c0_1 = arith.constant 0 : index
    %c0_2 = arith.constant 0 : index
    %1 = vector.load %arg2[%c0_1, %c0_2] : memref<32x32xbf16, #tpu.memory_space<vmem>>, vector<32x32xbf16>
    %cst = arith.constant dense<0.000000e+00> : vector<8x32xf32>
    %2 = tpu.matmul %0, %1, %cst {dimension_numbers = #tpu.dot_dimension_numbers<[1], [0], [0], [1], [0, 0, 1, 1], [], []>} : vector<8x32xbf16>, vector<32x32xbf16>, vector<8x32xf32> -> vector<8x32xf32>
    %c0_3 = arith.constant 0 : index
    %c0_4 = arith.constant 0 : index
    %3 = vector.load %arg3[%c0_3, %c0_4] : memref<1x32xf32, #tpu.memory_space<vmem>>, vector<1x32xf32>
    %4 = vector.broadcast %3 : vector<1x32xf32> to vector<8x32xf32>
    %5 = arith.addf %2, %4 : vector<8x32xf32>
    %6 = arith.truncf %5 : vector<8x32xf32> to vector<8x32xbf16>
    %c0_5 = arith.constant 0 : index
    %c0_6 = arith.constant 0 : index
    %7 = vector.load %arg4[%c0_5, %c0_6] : memref<8x32xbf16, #tpu.memory_space<vmem>>, vector<8x32xbf16>
    tpu.vector_store %arg4[%c0_5, %c0_6], %6 {strides = array<i32>} : memref<8x32xbf16, #tpu.memory_space<vmem>>, vector<8x32xbf16>,
    return
  }
  func.func @transform_0(%arg0: i32) -> (i32, i32) {
    %c0_i32 = arith.constant 0 : i32
    %c0_i32_0 = arith.constant 0 : i32
    return %arg0, %c0_i32 : i32, i32
  }
  func.func @transform_1(%arg0: i32) -> (i32, i32) {
    %c0_i32 = arith.constant 0 : i32
    %c0_i32_0 = arith.constant 0 : i32
    %c0_i32_1 = arith.constant 0 : i32
    return %c0_i32, %c0_i32_0 : i32, i32
  }
  func.func @transform_2(%arg0: i32) -> (i32, i32) {
    %c0_i32 = arith.constant 0 : i32
    %c0_i32_0 = arith.constant 0 : i32
    %c0_i32_1 = arith.constant 0 : i32
    return %c0_i32, %c0_i32_0 : i32, i32
  }
  func.func @transform_3(%arg0: i32) -> (i32, i32) {
    %c0_i32 = arith.constant 0 : i32
    %c0_i32_0 = arith.constant 0 : i32
    return %arg0, %c0_i32 : i32, i32
  }
}

module attributes {stable_mosaic.version = 11 : i64} {
  func.func @_label_fusion_kernel(%arg0: i32, %arg1: memref<4x32xbf16, #tpu.memory_space<vmem>>, %arg2: memref<2x8x32xbf16, #tpu.memory_space<vmem>>, %arg3: memref<2x1x8xf32, #tpu.memory_space<vmem>>, %arg4: memref<2x32xf32, #tpu.memory_space<vmem>>) attributes {dimension_semantics = [#tpu.dimension_semantics<parallel>], iteration_bounds = array<i64: 1>, scalar_prefetch = 0 : i64, scratch_operands = 0 : i64, tpu.core_type = #tpu.core_type<tc>, window_params = [{pipeline_mode = #tpu.pipeline_mode<synchronous>, transform_indices = @transform_0, window_bounds = array<i64: 4, 32>}, {transform_indices = @transform_1, window_bounds = array<i64: 2, 8, 32>}, {transform_indices = @transform_2, window_bounds = array<i64: 2, 1, 8>}, {transform_indices = @transform_3, window_bounds = array<i64: 2, 32>}]} {
    %c0 = arith.constant 0 : index
    %c0_0 = arith.constant 0 : index
    %0 = vector.load %arg1[%c0, %c0_0] : memref<4x32xbf16, #tpu.memory_space<vmem>>, vector<4x32xbf16>
    %c0_1 = arith.constant 0 : index
    %c0_2 = arith.constant 0 : index
    %c0_3 = arith.constant 0 : index
    %1 = vector.load %arg2[%c0_1, %c0_2, %c0_3] : memref<2x8x32xbf16, #tpu.memory_space<vmem>>, vector<1x8x32xbf16>
    %2 = vector.shape_cast %1 : vector<1x8x32xbf16> to vector<8x32xbf16>
    %cst = arith.constant dense<0.000000e+00> : vector<4x8xf32>
    %3 = tpu.matmul %0, %2, %cst {dimension_numbers = #tpu.dot_dimension_numbers<[1], [1], [0], [0], [0, 0, 1, 0], [], []>} : vector<4x32xbf16>, vector<8x32xbf16>, vector<4x8xf32> -> vector<4x8xf32>
    %c0_4 = arith.constant 0 : index
    %c0_5 = arith.constant 0 : index
    %c0_6 = arith.constant 0 : index
    %4 = vector.load %arg3[%c0_4, %c0_5, %c0_6] : memref<2x1x8xf32, #tpu.memory_space<vmem>>, vector<1x1x8xf32>
    %5 = vector.shape_cast %4 : vector<1x1x8xf32> to vector<1x8xf32>
    %6 = vector.broadcast %5 : vector<1x8xf32> to vector<4x8xf32>
    %7 = arith.addf %3, %6 : vector<4x8xf32>
    %cst_7 = arith.constant dense<0xFF800000> : vector<4xf32>
    %8 = vector.multi_reduction <maximumf>, %7, %cst_7 [1] : vector<4x8xf32> to vector<4xf32>
    %9 = vector.shape_cast %8 : vector<4xf32> to vector<4x1xf32>
    %10 = vector.broadcast %9 : vector<4x1xf32> to vector<4x8xf32>
    %11 = arith.subf %7, %10 : vector<4x8xf32>
    %12 = math.exp %11 : vector<4x8xf32>
    %cst_8 = arith.constant dense<0.000000e+00> : vector<4xf32>
    %13 = vector.multi_reduction <add>, %12, %cst_8 [1] : vector<4x8xf32> to vector<4xf32>
    %14 = vector.shape_cast %13 : vector<4xf32> to vector<4x1xf32>
    %15 = tpu.reciprocal %14 {approx = true} : vector<4x1xf32> -> vector<4x1xf32>
    %16 = vector.broadcast %15 : vector<4x1xf32> to vector<4x8xf32>
    %17 = arith.mulf %12, %16 : vector<4x8xf32>
    %18 = arith.truncf %17 : vector<4x8xf32> to vector<4x8xbf16>
    %cst_9 = arith.constant dense<0.000000e+00> : vector<4x32xf32>
    %19 = tpu.matmul %18, %2, %cst_9 {dimension_numbers = #tpu.dot_dimension_numbers<[1], [0], [0], [1], [0, 0, 1, 1], [], []>} : vector<4x8xbf16>, vector<8x32xbf16>, vector<4x32xf32> -> vector<4x32xf32>
    %cst_10 = arith.constant dense<0.000000e+00> : vector<32xf32>
    %20 = vector.multi_reduction <add>, %19, %cst_10 [0] : vector<4x32xf32> to vector<32xf32>
    %21 = vector.shape_cast %20 : vector<32xf32> to vector<1x32xf32>
    %cst_11 = arith.constant 4.000000e+00 : f32
    %22 = vector.broadcast %cst_11 : f32 to vector<1x32xf32>
    %23 = arith.divf %21, %22 : vector<1x32xf32>
    %c0_12 = arith.constant 0 : index
    %c0_13 = arith.constant 0 : index
    %24 = vector.load %arg4[%c0_12, %c0_13] : memref<2x32xf32, #tpu.memory_space<vmem>>, vector<1x32xf32>
    tpu.vector_store %arg4[%c0_12, %c0_13], %23 {strides = array<i32>} : memref<2x32xf32, #tpu.memory_space<vmem>>, vector<1x32xf32>,
    %c1 = arith.constant 1 : index
    %c0_14 = arith.constant 0 : index
    %c0_15 = arith.constant 0 : index
    %25 = vector.load %arg2[%c1, %c0_14, %c0_15] : memref<2x8x32xbf16, #tpu.memory_space<vmem>>, vector<1x8x32xbf16>
    %26 = vector.shape_cast %25 : vector<1x8x32xbf16> to vector<8x32xbf16>
    %cst_16 = arith.constant dense<0.000000e+00> : vector<4x8xf32>
    %27 = tpu.matmul %0, %26, %cst_16 {dimension_numbers = #tpu.dot_dimension_numbers<[1], [1], [0], [0], [0, 0, 1, 0], [], []>} : vector<4x32xbf16>, vector<8x32xbf16>, vector<4x8xf32> -> vector<4x8xf32>
    %c1_17 = arith.constant 1 : index
    %c0_18 = arith.constant 0 : index
    %c0_19 = arith.constant 0 : index
    %28 = vector.load %arg3[%c1_17, %c0_18, %c0_19] : memref<2x1x8xf32, #tpu.memory_space<vmem>>, vector<1x1x8xf32>
    %29 = vector.shape_cast %28 : vector<1x1x8xf32> to vector<1x8xf32>
    %30 = vector.broadcast %29 : vector<1x8xf32> to vector<4x8xf32>
    %31 = arith.addf %27, %30 : vector<4x8xf32>
    %cst_20 = arith.constant dense<0xFF800000> : vector<4xf32>
    %32 = vector.multi_reduction <maximumf>, %31, %cst_20 [1] : vector<4x8xf32> to vector<4xf32>
    %33 = vector.shape_cast %32 : vector<4xf32> to vector<4x1xf32>
    %34 = vector.broadcast %33 : vector<4x1xf32> to vector<4x8xf32>
    %35 = arith.subf %31, %34 : vector<4x8xf32>
    %36 = math.exp %35 : vector<4x8xf32>
    %cst_21 = arith.constant dense<0.000000e+00> : vector<4xf32>
    %37 = vector.multi_reduction <add>, %36, %cst_21 [1] : vector<4x8xf32> to vector<4xf32>
    %38 = vector.shape_cast %37 : vector<4xf32> to vector<4x1xf32>
    %39 = tpu.reciprocal %38 {approx = true} : vector<4x1xf32> -> vector<4x1xf32>
    %40 = vector.broadcast %39 : vector<4x1xf32> to vector<4x8xf32>
    %41 = arith.mulf %36, %40 : vector<4x8xf32>
    %42 = arith.truncf %41 : vector<4x8xf32> to vector<4x8xbf16>
    %cst_22 = arith.constant dense<0.000000e+00> : vector<4x32xf32>
    %43 = tpu.matmul %42, %26, %cst_22 {dimension_numbers = #tpu.dot_dimension_numbers<[1], [0], [0], [1], [0, 0, 1, 1], [], []>} : vector<4x8xbf16>, vector<8x32xbf16>, vector<4x32xf32> -> vector<4x32xf32>
    %cst_23 = arith.constant dense<0.000000e+00> : vector<32xf32>
    %44 = vector.multi_reduction <add>, %43, %cst_23 [0] : vector<4x32xf32> to vector<32xf32>
    %45 = vector.shape_cast %44 : vector<32xf32> to vector<1x32xf32>
    %cst_24 = arith.constant 4.000000e+00 : f32
    %46 = vector.broadcast %cst_24 : f32 to vector<1x32xf32>
    %47 = arith.divf %45, %46 : vector<1x32xf32>
    %c1_25 = arith.constant 1 : index
    %c0_26 = arith.constant 0 : index
    %48 = vector.load %arg4[%c1_25, %c0_26] : memref<2x32xf32, #tpu.memory_space<vmem>>, vector<1x32xf32>
    tpu.vector_store %arg4[%c1_25, %c0_26], %47 {strides = array<i32>} : memref<2x32xf32, #tpu.memory_space<vmem>>, vector<1x32xf32>,
    return
  }
  func.func @transform_0(%arg0: i32) -> (i32, i32) {
    %c0_i32 = arith.constant 0 : i32
    %c0_i32_0 = arith.constant 0 : i32
    %c0_i32_1 = arith.constant 0 : i32
    return %c0_i32, %c0_i32_0 : i32, i32
  }
  func.func @transform_1(%arg0: i32) -> (i32, i32, i32) {
    %c0_i32 = arith.constant 0 : i32
    %c0_i32_0 = arith.constant 0 : i32
    %c0_i32_1 = arith.constant 0 : i32
    return %arg0, %c0_i32, %c0_i32_0 : i32, i32, i32
  }
  func.func @transform_2(%arg0: i32) -> (i32, i32, i32) {
    %c0_i32 = arith.constant 0 : i32
    %c0_i32_0 = arith.constant 0 : i32
    %c0_i32_1 = arith.constant 0 : i32
    return %arg0, %c0_i32, %c0_i32_0 : i32, i32, i32
  }
  func.func @transform_3(%arg0: i32) -> (i32, i32) {
    %c0_i32 = arith.constant 0 : i32
    %c0_i32_0 = arith.constant 0 : i32
    return %arg0, %c0_i32 : i32, i32
  }
}

module attributes {stable_mosaic.version = 11 : i64} {
  func.func @_linear_kernel(%arg0: i32, %arg1: memref<8x32xbf16, #tpu.memory_space<vmem>>, %arg2: memref<32x128xbf16, #tpu.memory_space<vmem>>, %arg3: memref<1x128xf32, #tpu.memory_space<vmem>>, %arg4: memref<8x128xf32, #tpu.memory_space<vmem>>) attributes {dimension_semantics = [#tpu.dimension_semantics<parallel>], iteration_bounds = array<i64: 1>, scalar_prefetch = 0 : i64, scratch_operands = 0 : i64, tpu.core_type = #tpu.core_type<tc>, window_params = [{transform_indices = @transform_0, window_bounds = array<i64: 8, 32>}, {pipeline_mode = #tpu.pipeline_mode<synchronous>, transform_indices = @transform_1, window_bounds = array<i64: 32, 128>}, {pipeline_mode = #tpu.pipeline_mode<synchronous>, transform_indices = @transform_2, window_bounds = array<i64: 1, 128>}, {transform_indices = @transform_3, window_bounds = array<i64: 8, 128>}]} {
    %c0 = arith.constant 0 : index
    %c0_0 = arith.constant 0 : index
    %0 = vector.load %arg1[%c0, %c0_0] : memref<8x32xbf16, #tpu.memory_space<vmem>>, vector<8x32xbf16>
    %c0_1 = arith.constant 0 : index
    %c0_2 = arith.constant 0 : index
    %1 = vector.load %arg2[%c0_1, %c0_2] : memref<32x128xbf16, #tpu.memory_space<vmem>>, vector<32x128xbf16>
    %cst = arith.constant dense<0.000000e+00> : vector<8x128xf32>
    %2 = tpu.matmul %0, %1, %cst {dimension_numbers = #tpu.dot_dimension_numbers<[1], [0], [0], [1], [0, 0, 1, 1], [], []>} : vector<8x32xbf16>, vector<32x128xbf16>, vector<8x128xf32> -> vector<8x128xf32>
    %c0_3 = arith.constant 0 : index
    %c0_4 = arith.constant 0 : index
    %3 = vector.load %arg3[%c0_3, %c0_4] : memref<1x128xf32, #tpu.memory_space<vmem>>, vector<1x128xf32>
    %4 = vector.broadcast %3 : vector<1x128xf32> to vector<8x128xf32>
    %5 = arith.addf %2, %4 : vector<8x128xf32>
    %c0_5 = arith.constant 0 : index
    %c0_6 = arith.constant 0 : index
    %6 = vector.load %arg4[%c0_5, %c0_6] : memref<8x128xf32, #tpu.memory_space<vmem>>, vector<8x128xf32>
    tpu.vector_store %arg4[%c0_5, %c0_6], %5 {strides = array<i32>} : memref<8x128xf32, #tpu.memory_space<vmem>>, vector<8x128xf32>,
    return
  }
  func.func @transform_0(%arg0: i32) -> (i32, i32) {
    %c0_i32 = arith.constant 0 : i32
    %c0_i32_0 = arith.constant 0 : i32
    return %arg0, %c0_i32 : i32, i32
  }
  func.func @transform_1(%arg0: i32) -> (i32, i32) {
    %c0_i32 = arith.constant 0 : i32
    %c0_i32_0 = arith.constant 0 : i32
    %c0_i32_1 = arith.constant 0 : i32
    return %c0_i32, %c0_i32_0 : i32, i32
  }
  func.func @transform_2(%arg0: i32) -> (i32, i32) {
    %c0_i32 = arith.constant 0 : i32
    %c0_i32_0 = arith.constant 0 : i32
    %c0_i32_1 = arith.constant 0 : i32
    return %c0_i32, %c0_i32_0 : i32, i32
  }
  func.func @transform_3(%arg0: i32) -> (i32, i32) {
    %c0_i32 = arith.constant 0 : i32
    %c0_i32_0 = arith.constant 0 : i32
    return %arg0, %c0_i32 : i32, i32
  }
}

</mosaic_0001>

<llo_original>
// kernel: forward.26
$region0: #{forward.26}
  #allocation0 [shape = 'u32[]', space=smem, size = 0x4, offset = 0x4, fixed_abs, tag = 'smem constant byte address 0x4 - core index']
  #allocation1 [shape = 'u32[72,128]{1,0:T(1,128)}', space=vmem, size = 0x9000, scoped, tag = 'internal scratch']
  %s0 = inlined_call_operand.vmem [shape: bf16[16,32], index: 0, kind: input, shape index: {}]
  %s1 = inlined_call_operand.vmem [shape: bf16[32,32], index: 1, kind: input, shape index: {}]
  %s2 = inlined_call_operand.vmem [shape: f32[1,32], index: 2, kind: input, shape index: {}]
  %s3 = inlined_call_operand.vmem [shape: bf16[16,32], index: 3, kind: input, shape index: {}]
  %s4 = inlined_call_operand.vmem [shape: f32[1,32], index: 4, kind: input, shape index: {}]
  %s5 = inlined_call_operand.vmem [shape: f32[1,32], index: 5, kind: input, shape index: {}]
  %s6 = inlined_call_operand.vmem [shape: bf16[16,32], index: 6, kind: output, shape index: {}]
  %s7 = sld [smem:[#allocation0]]
  $region34: #{forward.26} parent=0
    _
  %s9 = ssub.s32 1, %s7
  %s10 = scalar_select 0, %s9, %s7
  // Predicated region
  $region2: #{forward.26} parent=0 // pred_check
    _
  $region3: #{forward.26} parent=0 // pred_check_branch
    %12 = sbr.rel (0) target = $region5
  $region4: #{forward.26} parent=0 // pred_region
    _
  $region5: #{forward.26} parent=0 // pred_fallthru
    _
  // Predicated region
  $region6: #{forward.26} parent=0 // pred_check
    _
  $region7: #{forward.26} parent=0 // pred_check_branch
    %14 = sbr.rel (0) target = $region9
  $region8: #{forward.26} parent=0 // pred_region
    _
  $region9: #{forward.26} parent=0 // pred_fallthru
    _
  // Predicated region
  $region10: #{forward.26} parent=0 // pred_check
    _
  $region11: #{forward.26} parent=0 // pred_check_branch
    %16 = sbr.rel (0) target = $region13
  $region12: #{forward.26} parent=0 // pred_region
    _
  $region13: #{forward.26} parent=0 // pred_fallthru
    _
  // Predicated region
  $region14: #{forward.26} parent=0 // pred_check
    _
  $region15: #{forward.26} parent=0 // pred_check_branch
    %18 = sbr.rel (0) target = $region17
  $region16: #{forward.26} parent=0 // pred_region
    _
  $region17: #{forward.26} parent=0 // pred_fallthru
    _
  // Predicated region
  $region18: #{forward.26} parent=0 // pred_check
    _
  $region19: #{forward.26} parent=0 // pred_check_branch
    %20 = sbr.rel (0) target = $region21
  $region20: #{forward.26} parent=0 // pred_region
    _
  $region21: #{forward.26} parent=0 // pred_fallthru
    _
  // Predicated region
  $region22: #{forward.26} parent=0 // pred_check
    _
  $region23: #{forward.26} parent=0 // pred_check_branch
    %22 = sbr.rel (0) target = $region25
  $region24: #{forward.26} parent=0 // pred_region
    _
  $region25: #{forward.26} parent=0 // pred_fallthru
    _
  %v24 = vld [vmem:[%s0] sm:$0xf]
  %v25 = vld [vmem:[%s0 + $0x4] sm:$0xf]
  %v26 = vld [vmem:[%s1] sm:$0xf]
  %v27 = vld [vmem:[%s1 + $0x4] sm:$0xf]
  %v28 = vld [vmem:[%s1 + $0x8] sm:$0xf]
  %v29 = vld [vmem:[%s1 + $0xc] sm:$0xf]
  %v30 = vld [vmem:[%s2] sm:$0x1]
  %v32 = vperm.slane %v30, 0
  %v36 = vunpack.c.l.b16 %v24
  %v37 = vunpack.c.l.b16 %v25
  %v38 = vpack.c.b16 %v37, %v36
  %v43 = vunpack.c.l.b16 %v26
  %v44 = vunpack.c.l.b16 %v27
  %v45 = vunpack.c.l.b16 %v28
  %v46 = vunpack.c.l.b16 %v29
  %v47 = vpack.c.b16 %v44, %v43
  %v48 = vpack.c.b16 %v46, %v45
  %vm51 = vcmask 261120
  %v53 = vsel %vm51, %v38, 0
  %55 = vmatpush.bf16.msra.mxu0 0
  %56 = vmatpush.bf16.msra.mxu0 0
  %57 = vmatpush.bf16.msra.mxu0 0
  %58 = vmatpush.bf16.msra.mxu0 0
  %59 = vmatpush.bf16.msra.mxu0 0
  %60 = vmatpush.bf16.msra.mxu0 0
  %61 = vmatpush.bf16.msra.mxu0 %v48
  %62 = vmatpush.bf16.msra.mxu0 %v47
  %63 = vmatmul.bf16.gmra.mxu0 %v53
  %v64 = vpop.f32.mrf.mxu0
  %v65 = vadd.f32 %v32, %v64
  %v66 = vpop.f32.mrf.mxu0
  %v67 = vadd.f32 %v32, %v66
  %68 = vdwg.mxu0
  %v69 = vld [vmem:[%s3] sm:$0xf]
  %v70 = vld [vmem:[%s3 + $0x4] sm:$0xf]
  %v71 = vunpack.c.l.bf16 %v69
  %v72 = vunpack.c.l.bf16 %v70
  %v73 = vadd.f32 %v65, %v71
  %v74 = vadd.f32 %v67, %v72
  %v75 = vsel %vm51, %v73, 0.0
  %76 = vadd.xlane.f32.xlu0 %v75
  %v77 = vpop.xlane.xlu0 %76
  %v78 = vsel %vm51, %v74, 0.0
  %79 = vadd.xlane.f32.xlu0 %v78
  %v80 = vpop.xlane.xlu0 %79
  %v81 = vrcp.pop 32.0
  %v82 = vmul.f32 32.0, %v81
  %v83 = vsub.f32 1.0, %v82
  %v84 = vmul.f32 %v81, %v83
  %v85 = vadd.f32 %v81, %v84
  %vm86 = vweird.f32 %v81
  %v87 = vsel %vm86, %v81, %v85
  %v88 = vmul.f32 %v77, %v87
  %v89 = vmul.f32 %v80, %v87
  %v90 = vsub.f32 %v73, %v88
  %v91 = vsub.f32 %v74, %v89
  %v92 = vmul.f32 %v90, %v90
  %v93 = vmul.f32 %v91, %v91
  %v94 = vsel %vm51, %v92, 0.0
  %95 = vadd.xlane.f32.xlu0 %v94
  %v96 = vpop.xlane.xlu0 %95
  %v97 = vsel %vm51, %v93, 0.0
  %98 = vadd.xlane.f32.xlu0 %v97
  %v99 = vpop.xlane.xlu0 %98
  %v100 = vmul.f32 %v96, %v87
  %v101 = vmul.f32 %v99, %v87
  %v102 = vadd.f32 %v100, 1e-12
  %v103 = vadd.f32 %v101, 1e-12
  %v104 = vrsqrt.pop %v102
  %v105 = vmul.f32 %v104, %v102
  %v106 = vmul.f32 %v105, %v104
  %v107 = vmul.f32 0.5, %v106
  %v108 = vsub.f32 1.5, %v107
  %v109 = vmul.f32 %v104, %v108
  %vm110 = vweird.f32 %v102
  %vm111 = vweird.f32 %v104
  %vm112 = vmor %vm110, %vm111
  %v113 = vsel %vm112, %v104, %v109
  %v114 = vrsqrt.pop %v103
  %v115 = vmul.f32 %v114, %v103
  %v116 = vmul.f32 %v115, %v114
  %v117 = vmul.f32 0.5, %v116
  %v118 = vsub.f32 1.5, %v117
  %v119 = vmul.f32 %v114, %v118
  %vm120 = vweird.f32 %v103
  %vm121 = vweird.f32 %v114
  %vm122 = vmor %vm120, %vm121
  %v123 = vsel %vm122, %v114, %v119
  %v124 = vmul.f32 %v90, %v113
  %v125 = vmul.f32 %v91, %v123
  %v126 = vld [vmem:[%s4] sm:$0x1]
  %v128 = vperm.slane %v126, 0
  %v130 = vmul.f32 %v124, %v128
  %v131 = vmul.f32 %v125, %v128
  %v132 = vld [vmem:[%s5] sm:$0x1]
  %v134 = vperm.slane %v132, 0
  %v136 = vadd.f32 %v130, %v134
  %v137 = vadd.f32 %v131, %v134
  %v138 = vpack.c.bf16 %v136, %v136
  %v139 = vpack.c.bf16 %v137, %v137
  %vm140 = vcmask 257024
  %141 = vst.msk [vmem:[%s6] sm:$0xf] %vm140, %v138
  %142 = vst.msk [vmem:[%s6 + $0x4] sm:$0xf] %vm140, %v139
  // Predicated region
  $region26: #{forward.26} parent=0 // pred_check
    _
  $region27: #{forward.26} parent=0 // pred_check_branch
    %144 = sbr.rel (0) target = $region29
  $region28: #{forward.26} parent=0 // pred_region
    _
  $region29: #{forward.26} parent=0 // pred_fallthru
    _
  // Predicated region
  $region30: #{forward.26} parent=0 // pred_check
    _
  $region31: #{forward.26} parent=0 // pred_check_branch
    %146 = sbr.rel (0) target = $region33
  $region32: #{forward.26} parent=0 // pred_region
    _
  $region33: #{forward.26} parent=0 // pred_fallthru
    _

// kernel: forward.25
$region0: #{forward.25}
  #allocation0 [shape = 'u32[]', space=smem, size = 0x4, offset = 0x4, fixed_abs, tag = 'smem constant byte address 0x4 - core index']
  #allocation1 [shape = 'u32[72,128]{1,0:T(1,128)}', space=vmem, size = 0x9000, scoped, tag = 'internal scratch']
  %s0 = inlined_call_operand.vmem [shape: bf16[2,8,32], index: 0, kind: input, shape index: {}]
  %s1 = inlined_call_operand.vmem [shape: bf16[2,8,32], index: 1, kind: input, shape index: {}]
  %s2 = inlined_call_operand.vmem [shape: bf16[2,8,32], index: 2, kind: input, shape index: {}]
  %s3 = inlined_call_operand.vmem [shape: f32[2,1,8], index: 3, kind: input, shape index: {}]
  %s4 = inlined_call_operand.vmem [shape: bf16[2,8,32], index: 4, kind: output, shape index: {}]
  %s5 = sld [smem:[#allocation0]]
  $region49: #{forward.25} parent=0
    _
  %s7 = ssub.s32 1, %s5
  %s8 = scalar_select 0, %s7, %s5
  loop: start=0, step=1, limit=4
  $region2: #{forward.25} parent=0 // loop_pre_header
    _
  $region3: #{forward.25} parent=0 // loop_header
    %s10 = sphi 0, %s14
    %p11 = scmp.ge.s32.totalorder %s10, 4
    %s17 = sphi 0, %s36
    %s18 = sphi 0, %s32
    %s19 = sphi 0, %s28
    %s20 = sphi 0, %s17
    %s21 = sphi 0, %s18
    %s22 = sphi 0, %s19
    %s23 = sphi 0, %s20
    %s24 = sphi 0, %s21
    %s25 = sphi 0, %s22
    %s43 = sphi 0, %s45
    %s46 = sphi 0, %s43
    %s47 = sphi 0, %s46
    %s63 = sphi 0, %s47
    %s71 = sphi 0, %s73
    %s74 = sphi 0, %s71
    %s75 = sphi 0, %s74
    %s91 = sphi 0, %s75
    %s99 = sphi 0, %s101
    %s102 = sphi 0, %s99
    %s103 = sphi 0, %s102
    %s119 = sphi 0, %s103
    %s125 = sphi 0, %s127
    %s128 = sphi 0, %s125
    %s129 = sphi 0, %s128
    %s145 = sphi 0, %s129
    %s155 = sphi 0, %s157
    %s158 = sphi 0, %s155
    %s159 = sphi 0, %s158
    %s175 = sphi 0, %s159
  $region4: #{forward.25} parent=0 // loop_header_branch
    %13 = sbr.rel (%p11) target = $region8
  $region5: #{forward.25} parent=0 // loop_body
    %s15 = ssub.s32 %s10, 1
    %s16 = ssub.s32 %s10, 2
    %s26 = sadd.s32 1, %s19
    %p27 = scmp.ge.s32.totalorder %s26, 1
    %s28 = scalar_select %p27, 0, %s26
    %s29 = sadd.s32 1, %s18
    %s30 = scalar_select %p27, %s29, %s18
    %p31 = scmp.ge.s32.totalorder %s30, 1
    %s32 = scalar_select %p31, 0, %s30
    %s33 = sadd.s32 1, %s17
    %s34 = scalar_select %p31, %s33, %s17
    %p35 = scmp.ge.s32.totalorder %s34, 2
    %s36 = scalar_select %p35, 0, %s34
    %s37 = ssub.s32 %s17, %s36
    %s38 = ssub.s32 %s19, %s28
    %s39 = sor.u32 %s37, %s38
    %s40 = ssub.s32 %s18, %s32
    %s41 = sor.u32 %s39, %s40
    %p42 = scmp.eq.s32.totalorder %s41, 0
    %s44 = sadd.s32 %s43, 1
    %s45 = scalar_select %p42, %s43, %s44
    %p48 = pneg %p42
    %p49 = scmp.eq.s32.totalorder %s10, 1
    %p50 = por %p48, %p49
    %p51 = scmp.ne.s32.totalorder %s43, %s46
    %p52 = scmp.eq.s32.totalorder %s10, 0
    %p53 = por %p51, %p52
    %p54 = scmp.ne.s32.totalorder %s43, %s46
    %p55 = scmp.eq.s32.totalorder %s15, 1
    %p56 = por %p54, %p55
    %p57 = scmp.ne.s32.totalorder %s46, %s47
    %p58 = scmp.eq.s32.totalorder %s15, 0
    %p59 = por %p57, %p58
    %p60 = scmp.ne.s32.totalorder %s46, %s47
    %p61 = scmp.eq.s32.totalorder %s16, 1
    %p62 = por %p60, %p61
    %p64 = scmp.ne.s32.totalorder %s47, %s63
    %p65 = scmp.eq.s32.totalorder %s16, 0
    %p66 = por %p64, %p65
    %s67 = ssub.s32 %s17, %s36
    %s68 = ssub.s32 %s18, %s32
    %s69 = sor.u32 %s67, %s68
    %p70 = scmp.eq.s32.totalorder %s69, 0
    %s72 = sadd.s32 %s71, 1
    %s73 = scalar_select %p70, %s71, %s72
    %p76 = pneg %p70
    %p77 = scmp.eq.s32.totalorder %s10, 1
    %p78 = por %p76, %p77
    %p79 = scmp.ne.s32.totalorder %s71, %s74
    %p80 = scmp.eq.s32.totalorder %s10, 0
    %p81 = por %p79, %p80
    %p82 = scmp.ne.s32.totalorder %s71, %s74
    %p83 = scmp.eq.s32.totalorder %s15, 1
    %p84 = por %p82, %p83
    %p85 = scmp.ne.s32.totalorder %s74, %s75
    %p86 = scmp.eq.s32.totalorder %s15, 0
    %p87 = por %p85, %p86
    %p88 = scmp.ne.s32.totalorder %s74, %s75
    %p89 = scmp.eq.s32.totalorder %s16, 1
    %p90 = por %p88, %p89
    %p92 = scmp.ne.s32.totalorder %s75, %s91
    %p93 = scmp.eq.s32.totalorder %s16, 0
    %p94 = por %p92, %p93
    %s95 = ssub.s32 %s17, %s36
    %s96 = ssub.s32 %s18, %s32
    %s97 = sor.u32 %s95, %s96
    %p98 = scmp.eq.s32.totalorder %s97, 0
    %s100 = sadd.s32 %s99, 1
    %s101 = scalar_select %p98, %s99, %s100
    %p104 = pneg %p98
    %p105 = scmp.eq.s32.totalorder %s10, 1
    %p106 = por %p104, %p105
    %p107 = scmp.ne.s32.totalorder %s99, %s102
    %p108 = scmp.eq.s32.totalorder %s10, 0
    %p109 = por %p107, %p108
    %p110 = scmp.ne.s32.totalorder %s99, %s102
    %p111 = scmp.eq.s32.totalorder %s15, 1
    %p112 = por %p110, %p111
    %p113 = scmp.ne.s32.totalorder %s102, %s103
    %p114 = scmp.eq.s32.totalorder %s15, 0
    %p115 = por %p113, %p114
    %p116 = scmp.ne.s32.totalorder %s102, %s103
    %p117 = scmp.eq.s32.totalorder %s16, 1
    %p118 = por %p116, %p117
    %p120 = scmp.ne.s32.totalorder %s103, %s119
    %p121 = scmp.eq.s32.totalorder %s16, 0
    %p122 = por %p120, %p121
    %s123 = ssub.s32 %s17, %s36
    %p124 = scmp.eq.s32.totalorder %s123, 0
    %s126 = sadd.s32 %s125, 1
    %s127 = scalar_select %p124, %s125, %s126
    %p130 = pneg %p124
    %p131 = scmp.eq.s32.totalorder %s10, 1
    %p132 = por %p130, %p131
    %p133 = scmp.ne.s32.totalorder %s125, %s128
    %p134 = scmp.eq.s32.totalorder %s10, 0
    %p135 = por %p133, %p134
    %p136 = scmp.ne.s32.totalorder %s125, %s128
    %p137 = scmp.eq.s32.totalorder %s15, 1
    %p138 = por %p136, %p137
    %p139 = scmp.ne.s32.totalorder %s128, %s129
    %p140 = scmp.eq.s32.totalorder %s15, 0
    %p141 = por %p139, %p140
    %p142 = scmp.ne.s32.totalorder %s128, %s129
    %p143 = scmp.eq.s32.totalorder %s16, 1
    %p144 = por %p142, %p143
    %p146 = scmp.ne.s32.totalorder %s129, %s145
    %p147 = scmp.eq.s32.totalorder %s16, 0
    %p148 = por %p146, %p147
    %s149 = ssub.s32 %s17, %s36
    %s150 = ssub.s32 %s19, %s28
    %s151 = sor.u32 %s149, %s150
    %s152 = ssub.s32 %s18, %s32
    %s153 = sor.u32 %s151, %s152
    %p154 = scmp.eq.s32.totalorder %s153, 0
    %s156 = sadd.s32 %s155, 1
    %s157 = scalar_select %p154, %s155, %s156
    %p160 = pneg %p154
    %p161 = scmp.eq.s32.totalorder %s10, 1
    %p162 = por %p160, %p161
    %p163 = scmp.ne.s32.totalorder %s155, %s158
    %p164 = scmp.eq.s32.totalorder %s10, 0
    %p165 = por %p163, %p164
    %p166 = scmp.ne.s32.totalorder %s155, %s158
    %p167 = scmp.eq.s32.totalorder %s15, 1
    %p168 = por %p166, %p167
    %p169 = scmp.ne.s32.totalorder %s158, %s159
    %p170 = scmp.eq.s32.totalorder %s15, 0
    %p171 = por %p169, %p170
    %p172 = scmp.ne.s32.totalorder %s158, %s159
    %p173 = scmp.eq.s32.totalorder %s16, 1
    %p174 = por %p172, %p173
    %p176 = scmp.ne.s32.totalorder %s159, %s175
    %p177 = scmp.eq.s32.totalorder %s16, 0
    %p178 = por %p176, %p177
    %p179 = scmp.le.s32.totalorder 1, %s10
    %p180 = scmp.lt.s32.totalorder %s10, 3
    %p181 = pnand %p179, %p180
    %p182 = pneg %p181
    // Predicated region
    $region9: #{forward.25} parent=5 // pred_check
      _
    $region10: #{forward.25} parent=5 // pred_check_branch
      %184 = sbr.rel (%p181) target = $region12
    $region11: #{forward.25} parent=5 // pred_region
      %s185 = ssub.s32 %s10, 1
    $region12: #{forward.25} parent=5 // pred_fallthru
      _
    %p186 = scmp.lt.s32.totalorder %s10, 2
    // Predicated region
    $region13: #{forward.25} parent=5 // pred_check
      %p187 = pneg %p186
    $region14: #{forward.25} parent=5 // pred_check_branch
      %189 = sbr.rel (%p187) target = $region16
    $region15: #{forward.25} parent=5 // pred_region
      // Predicated region
      $region17: #{forward.25} parent=15 // pred_check
        %p190 = pneg %p53
      $region18: #{forward.25} parent=15 // pred_check_branch
        %192 = sbr.rel (%p190) target = $region20
      $region19: #{forward.25} parent=15 // pred_region
        %p193 = scmp.lt.s32.totalorder %s17, 1
        %s194 = scalar_select %p193, %s17, 1
        %p195 = scmp.lt.s32.totalorder %s19, 0
        %s196 = scalar_select %p195, %s19, 0
        %p197 = scmp.lt.s32.totalorder %s18, 0
        %s198 = scalar_select %p197, %s18, 0
        %s199 = sadd.s32 %s198, %s196
        %s200 = sadd.s32 %s199, %s194
        %s201 = smul.addr %s200, 4
        %s202 = scalar_lea.vmem %s0, %s201
      $region20: #{forward.25} parent=15 // pred_fallthru
        _
      // Predicated region
      $region21: #{forward.25} parent=15 // pred_check
        %p203 = pneg %p81
      $region22: #{forward.25} parent=15 // pred_check_branch
        %205 = sbr.rel (%p203) target = $region24
      $region23: #{forward.25} parent=15 // pred_region
        %p206 = scmp.lt.s32.totalorder %s17, 1
        %s207 = scalar_select %p206, %s17, 1
        %p208 = scmp.lt.s32.totalorder %s18, 0
        %s209 = scalar_select %p208, %s18, 0
        %s210 = sadd.s32 %s209, %s207
        %s211 = smul.addr %s210, 4
        %s212 = scalar_lea.vmem %s1, %s211
      $region24: #{forward.25} parent=15 // pred_fallthru
        _
      // Predicated region
      $region25: #{forward.25} parent=15 // pred_check
        %p213 = pneg %p109
      $region26: #{forward.25} parent=15 // pred_check_branch
        %215 = sbr.rel (%p213) target = $region28
      $region27: #{forward.25} parent=15 // pred_region
        %p216 = scmp.lt.s32.totalorder %s17, 1
        %s217 = scalar_select %p216, %s17, 1
        %p218 = scmp.lt.s32.totalorder %s18, 0
        %s219 = scalar_select %p218, %s18, 0
        %s220 = sadd.s32 %s219, %s217
        %s221 = smul.addr %s220, 4
        %s222 = scalar_lea.vmem %s2, %s221
      $region28: #{forward.25} parent=15 // pred_fallthru
        _
      // Predicated region
      $region29: #{forward.25} parent=15 // pred_check
        %p223 = pneg %p135
      $region30: #{forward.25} parent=15 // pred_check_branch
        %225 = sbr.rel (%p223) target = $region32
      $region31: #{forward.25} parent=15 // pred_region
        %p226 = scmp.lt.s32.totalorder %s17, 1
        %s227 = scalar_select %p226, %s17, 1
        %s228 = scalar_lea.vmem %s3, %s227
      $region32: #{forward.25} parent=15 // pred_fallthru
        _
    $region16: #{forward.25} parent=5 // pred_fallthru
      _
    %p229 = scmp.le.s32.totalorder 1, %s10
    %p230 = scmp.lt.s32.totalorder %s10, 3
    %p231 = pnand %p229, %p230
    %p232 = pneg %p231
    // Predicated region
    $region33: #{forward.25} parent=5 // pred_check
      _
    $region34: #{forward.25} parent=5 // pred_check_branch
      %234 = sbr.rel (%p231) target = $region36
    $region35: #{forward.25} parent=5 // pred_region
      %s235 = ssub.s32 %s10, 1
      %p236 = scmp.lt.s32.totalorder %s20, 1
      %s237 = scalar_select %p236, %s20, 1
      %p238 = scmp.lt.s32.totalorder %s22, 0
      %s239 = scalar_select %p238, %s22, 0
      %p240 = scmp.lt.s32.totalorder %s21, 0
      %s241 = scalar_select %p240, %s21, 0
      %s242 = sadd.s32 %s241, %s239
      %s243 = sadd.s32 %s242, %s237
      %s244 = smul.addr %s243, 4
      %s245 = scalar_lea.vmem %s0, %s244
      %p246 = pneg %p59
      %p247 = pneg %p56
      %p248 = scmp.lt.s32.totalorder %s20, 1
      %s249 = scalar_select %p248, %s20, 1
      %p250 = scmp.lt.s32.totalorder %s21, 0
      %s251 = scalar_select %p250, %s21, 0
      %s252 = sadd.s32 %s251, %s249
      %s253 = smul.addr %s252, 4
      %s254 = scalar_lea.vmem %s1, %s253
      %p255 = pneg %p87
      %p256 = pneg %p84
      %p257 = scmp.lt.s32.totalorder %s20, 1
      %s258 = scalar_select %p257, %s20, 1
      %p259 = scmp.lt.s32.totalorder %s21, 0
      %s260 = scalar_select %p259, %s21, 0
      %s261 = sadd.s32 %s260, %s258
      %s262 = smul.addr %s261, 4
      %s263 = scalar_lea.vmem %s2, %s262
      %p264 = pneg %p115
      %p265 = pneg %p112
      %p266 = scmp.lt.s32.totalorder %s20, 1
      %s267 = scalar_select %p266, %s20, 1
      %s268 = scalar_lea.vmem %s3, %s267
      %p269 = pneg %p141
      %p270 = pneg %p138
      %p271 = pneg %p171
      %p272 = pneg %p168
      %p273 = scmp.lt.s32.totalorder %s20, 1
      %s274 = scalar_select %p273, %s20, 1
      %p275 = scmp.lt.s32.totalorder %s22, 0
      %s276 = scalar_select %p275, %s22, 0
      %p277 = scmp.lt.s32.totalorder %s21, 0
      %s278 = scalar_select %p277, %s21, 0
      %s279 = sadd.s32 %s278, %s276
      %s280 = sadd.s32 %s279, %s274
      %s281 = smul.addr %s280, 4
      %s282 = scalar_lea.vmem %s4, %s281
      %p283 = scmp.lt.s32.totalorder %s20, 1
      %s284 = scalar_select %p283, %s20, 1
      %p285 = scmp.lt.s32.totalorder %s22, 0
      %s286 = scalar_select %p285, %s22, 0
      %p287 = scmp.lt.s32.totalorder %s21, 0
      %s288 = scalar_select %p287, %s21, 0
      %s289 = sadd.s32 %s288, %s286
      %s290 = sadd.s32 %s289, %s284
      %s291 = smul.addr %s290, 4
      %s292 = scalar_lea.vmem %s0, %s291
      %p293 = scmp.lt.s32.totalorder %s20, 1
      %s294 = scalar_select %p293, %s20, 1
      %p295 = scmp.lt.s32.totalorder %s21, 0
      %s296 = scalar_select %p295, %s21, 0
      %s297 = sadd.s32 %s296, %s294
      %s298 = smul.addr %s297, 4
      %s299 = scalar_lea.vmem %s1, %s298
      %p300 = scmp.lt.s32.totalorder %s20, 1
      %s301 = scalar_select %p300, %s20, 1
      %p302 = scmp.lt.s32.totalorder %s21, 0
      %s303 = scalar_select %p302, %s21, 0
      %s304 = sadd.s32 %s303, %s301
      %s305 = smul.addr %s304, 4
      %s306 = scalar_lea.vmem %s2, %s305
      %p307 = scmp.lt.s32.totalorder %s20, 1
      %s308 = scalar_select %p307, %s20, 1
      %s309 = scalar_lea.vmem %s3, %s308
      %p310 = scmp.lt.s32.totalorder %s20, 1
      %s311 = scalar_select %p310, %s20, 1
      %p312 = scmp.lt.s32.totalorder %s22, 0
      %s313 = scalar_select %p312, %s22, 0
      %p314 = scmp.lt.s32.totalorder %s21, 0
      %s315 = scalar_select %p314, %s21, 0
      %s316 = sadd.s32 %s315, %s313
      %s317 = sadd.s32 %s316, %s311
      %s318 = smul.addr %s317, 4
      %s319 = scalar_lea.vmem %s4, %s318
      %v321 = vld [vmem:[%s309] sm:$0x1]
      %v322 = vld [vmem:[%s292] sm:$0xf]
      %v323 = vld [vmem:[%s299] sm:$0xf]
      %v324 = vld [vmem:[%s306] sm:$0xf]
      %v326 = vperm.slane %v321, 0
      %vm328 = vcmask 130048
      %v330 = vsel %vm328, %v322, 0
      %v333 = vsel %vm328, %v323, 0
      %335 = vmatpush.bf16.xpose.msra.mxu0 0
      %336 = vmatpush.bf16.xpose.msra.mxu0 0
      %337 = vmatpush.bf16.xpose.msra.mxu0 0
      %338 = vmatpush.bf16.xpose.msra.mxu0 0
      %339 = vmatpush.bf16.xpose.msra.mxu0 0
      %340 = vmatpush.bf16.xpose.msra.mxu0 0
      %341 = vmatpush.bf16.xpose.msra.mxu0 0
      %342 = vmatpush.bf16.xpose.msra.mxu0 %v333
      %343 = vmatmul.bf16.gmra.mxu0 %v330
      %v344 = vpop.f32.mrf.mxu0
      %v345 = vadd.f32 %v326, %v344
      %v346 = vpop.f32.mrf.mxu0
      %347 = vdwg.mxu0
      %vm348 = vcmask 64512
      %v349 = vsel %vm348, %v345, -inf
      %350 = vmax.xlane.f32.xlu0 %v349
      %v351 = vpop.xlane.xlu0 %350
      %v352 = vsub.f32 %v345, %v351
      %v353 = vmul.f32 %v352, 1.442695
      %v354 = vpow.pop %v353
      %v355 = vsel %vm348, %v354, 0.0
      %356 = vadd.xlane.f32.xlu0 %v355
      %v357 = vpop.xlane.xlu0 %356
      %v358 = vrcp.pop %v357
      %v359 = vmul.f32 %v354, %v358
      %v360 = vpack.c.bf16 %v359, %v359
      %v362 = vsel %vm348, %v360, 0
      %vm364 = vcmask 1043456
      %v366 = vsel %vm364, %v324, 0
      %368 = vmatpush.bf16.msra.mxu0 0
      %369 = vmatpush.bf16.msra.mxu0 0
      %370 = vmatpush.bf16.msra.mxu0 0
      %371 = vmatpush.bf16.msra.mxu0 0
      %372 = vmatpush.bf16.msra.mxu0 0
      %373 = vmatpush.bf16.msra.mxu0 0
      %374 = vmatpush.bf16.msra.mxu0 0
      %375 = vmatpush.bf16.msra.mxu0 %v366
      %376 = vmatmul.bf16.gmra.mxu0 %v362
      %v377 = vpop.f32.mrf.mxu0
      %v378 = vadd.f32 0.0, %v377
      %v379 = vpop.f32.mrf.mxu0
      %380 = vdwg.mxu0
      %v381 = vpack.c.bf16 %v378, %v378
      %vm382 = vcmask 125952
      %383 = vst.msk [vmem:[%s319] sm:$0xf] %vm382, %v381
      %v385 = vunpack.c.l.b16 %v322
      %v386 = vpack.c.b16 %v385, %v385
      %387 = vrot.lane.b32.xlu0 %v386, 112
      %v388 = vpop.permute.xlu0 %387
      %v390 = vunpack.c.l.b16 %v323
      %v391 = vpack.c.b16 %v390, %v390
      %392 = vrot.lane.b32.xlu0 %v391, 112
      %v393 = vpop.permute.xlu0 %392
      %v395 = vsel %vm328, %v388, 0
      %v398 = vsel %vm328, %v393, 0
      %400 = vmatpush.bf16.xpose.msra.mxu0 0
      %401 = vmatpush.bf16.xpose.msra.mxu0 0
      %402 = vmatpush.bf16.xpose.msra.mxu0 0
      %403 = vmatpush.bf16.xpose.msra.mxu0 0
      %404 = vmatpush.bf16.xpose.msra.mxu0 0
      %405 = vmatpush.bf16.xpose.msra.mxu0 0
      %406 = vmatpush.bf16.xpose.msra.mxu0 0
      %407 = vmatpush.bf16.xpose.msra.mxu0 %v398
      %408 = vmatmul.bf16.gmra.mxu0 %v395
      %v409 = vpop.f32.mrf.mxu0
      %v410 = vadd.f32 %v326, %v409
      %v411 = vpop.f32.mrf.mxu0
      %412 = vdwg.mxu0
      %v413 = vsel %vm348, %v410, -inf
      %414 = vmax.xlane.f32.xlu0 %v413
      %v415 = vpop.xlane.xlu0 %414
      %v416 = vsub.f32 %v410, %v415
      %v417 = vmul.f32 %v416, 1.442695
      %v418 = vpow.pop %v417
      %v419 = vsel %vm348, %v418, 0.0
      %420 = vadd.xlane.f32.xlu0 %v419
      %v421 = vpop.xlane.xlu0 %420
      %v422 = vrcp.pop %v421
      %v423 = vmul.f32 %v418, %v422
      %v424 = vpack.c.bf16 %v423, %v423
      %v426 = vunpack.c.l.b16 %v324
      %v427 = vpack.c.b16 %v426, %v426
      %428 = vrot.lane.b32.xlu0 %v427, 112
      %v429 = vpop.permute.xlu0 %428
      %v431 = vsel %vm348, %v424, 0
      %v434 = vsel %vm364, %v429, 0
      %436 = vmatpush.bf16.msra.mxu0 0
      %437 = vmatpush.bf16.msra.mxu0 0
      %438 = vmatpush.bf16.msra.mxu0 0
      %439 = vmatpush.bf16.msra.mxu0 0
      %440 = vmatpush.bf16.msra.mxu0 0
      %441 = vmatpush.bf16.msra.mxu0 0
      %442 = vmatpush.bf16.msra.mxu0 0
      %443 = vmatpush.bf16.msra.mxu0 %v434
      %444 = vmatmul.bf16.gmra.mxu0 %v431
      %v445 = vpop.f32.mrf.mxu0
      %v446 = vadd.f32 0.0, %v445
      %v447 = vpop.f32.mrf.mxu0
      %448 = vdwg.mxu0
      %v449 = vpack.c.bf16 %v446, %v446
      %451 = vrot.lane.b32.xlu0 %v449, 16
      %v452 = vpop.permute.xlu0 %451
      %vm454 = vcmask 257152
      %455 = vst.msk [vmem:[%s319] sm:$0xf] %vm454, %v452
      %p456 = scmp.lt.s32.totalorder %s20, 1
      %s457 = scalar_select %p456, %s20, 1
      %p458 = scmp.lt.s32.totalorder %s22, 0
      %s459 = scalar_select %p458, %s22, 0
      %p460 = scmp.lt.s32.totalorder %s21, 0
      %s461 = scalar_select %p460, %s21, 0
      %s462 = sadd.s32 %s461, %s459
      %s463 = sadd.s32 %s462, %s457
      %s464 = smul.addr %s463, 4
      %s465 = scalar_lea.vmem %s4, %s464
      // Predicated region
      $region37: #{forward.25} parent=35 // pred_check
        %p466 = pneg %p168
      $region38: #{forward.25} parent=35 // pred_check_branch
        %468 = sbr.rel (%p466) target = $region40
      $region39: #{forward.25} parent=35 // pred_region
        _
      $region40: #{forward.25} parent=35 // pred_fallthru
        _
    $region36: #{forward.25} parent=5 // pred_fallthru
      _
    %p469 = scmp.le.s32.totalorder 2, %s10
    // Predicated region
    $region41: #{forward.25} parent=5 // pred_check
      %p470 = pneg %p469
    $region42: #{forward.25} parent=5 // pred_check_branch
      %472 = sbr.rel (%p470) target = $region44
    $region43: #{forward.25} parent=5 // pred_region
      %s473 = ssub.s32 %s10, 2
      // Predicated region
      $region45: #{forward.25} parent=43 // pred_check
        %p474 = pneg %p174
      $region46: #{forward.25} parent=43 // pred_check_branch
        %476 = sbr.rel (%p474) target = $region48
      $region47: #{forward.25} parent=43 // pred_region
        %p477 = scmp.lt.s32.totalorder %s23, 1
        %s478 = scalar_select %p477, %s23, 1
        %p479 = scmp.lt.s32.totalorder %s25, 0
        %s480 = scalar_select %p479, %s25, 0
        %p481 = scmp.lt.s32.totalorder %s24, 0
        %s482 = scalar_select %p481, %s24, 0
        %s483 = sadd.s32 %s482, %s480
        %s484 = sadd.s32 %s483, %s478
        %s485 = smul.addr %s484, 4
        %s486 = scalar_lea.vmem %s4, %s485
      $region48: #{forward.25} parent=43 // pred_fallthru
        _
    $region44: #{forward.25} parent=5 // pred_fallthru
      _
  $region6: #{forward.25} parent=0 // loop_footer
    %s14 = sadd.s32 1, %s10
  $region7: #{forward.25} parent=0 // loop_footer_branch
    %9 = sbr.rel target = $region3
  $region8: #{forward.25} parent=0 // loop_exit
    _

// kernel: forward.24
$region0: #{forward.24}
  #allocation0 [shape = 'u32[]', space=smem, size = 0x4, offset = 0x4, fixed_abs, tag = 'smem constant byte address 0x4 - core index']
  #allocation1 [shape = 'u32[72,128]{1,0:T(1,128)}', space=vmem, size = 0x9000, scoped, tag = 'internal scratch']
  %s0 = inlined_call_operand.vmem [shape: bf16[16,32], index: 0, kind: input, shape index: {}]
  %s1 = inlined_call_operand.vmem [shape: bf16[32,96], index: 1, kind: input, shape index: {}]
  %s2 = inlined_call_operand.vmem [shape: f32[1,96], index: 2, kind: input, shape index: {}]
  %s3 = inlined_call_operand.vmem [shape: bf16[16,32], index: 3, kind: output, shape index: {0}]
  %s4 = inlined_call_operand.vmem [shape: bf16[16,32], index: 4, kind: output, shape index: {1}]
  %s5 = inlined_call_operand.vmem [shape: bf16[16,32], index: 5, kind: output, shape index: {2}]
  %6 = xla_tuple %s3, %s4, %s5
  %s7 = sld [smem:[#allocation0]]
  $region38: #{forward.24} parent=0
    _
  %s9 = ssub.s32 1, %s7
  %s10 = scalar_select 0, %s9, %s7
  // Predicated region
  $region2: #{forward.24} parent=0 // pred_check
    _
  $region3: #{forward.24} parent=0 // pred_check_branch
    %12 = sbr.rel (0) target = $region5
  $region4: #{forward.24} parent=0 // pred_region
    _
  $region5: #{forward.24} parent=0 // pred_fallthru
    _
  // Predicated region
  $region6: #{forward.24} parent=0 // pred_check
    _
  $region7: #{forward.24} parent=0 // pred_check_branch
    %14 = sbr.rel (0) target = $region9
  $region8: #{forward.24} parent=0 // pred_region
    _
  $region9: #{forward.24} parent=0 // pred_fallthru
    _
  // Predicated region
  $region10: #{forward.24} parent=0 // pred_check
    _
  $region11: #{forward.24} parent=0 // pred_check_branch
    %16 = sbr.rel (0) target = $region13
  $region12: #{forward.24} parent=0 // pred_region
    _
  $region13: #{forward.24} parent=0 // pred_fallthru
    _
  %v18 = vld [vmem:[%s0] sm:$0xf]
  %v19 = vld [vmem:[%s0 + $0x4] sm:$0xf]
  %v20 = vld [vmem:[%s1] sm:$0xf]
  %v21 = vld [vmem:[%s1 + $0x4] sm:$0xf]
  %v22 = vld [vmem:[%s1 + $0x8] sm:$0xf]
  %v23 = vld [vmem:[%s1 + $0xc] sm:$0xf]
  %v24 = vld [vmem:[%s2] sm:$0x1]
  %v26 = vperm.slane %v24, 0
  %v30 = vunpack.c.l.b16 %v18
  %v31 = vunpack.c.l.b16 %v19
  %v32 = vpack.c.b16 %v31, %v30
  %v37 = vunpack.c.l.b16 %v20
  %v38 = vunpack.c.l.b16 %v21
  %v39 = vunpack.c.l.b16 %v22
  %v40 = vunpack.c.l.b16 %v23
  %v41 = vpack.c.b16 %v38, %v37
  %v42 = vpack.c.b16 %v40, %v39
  %vm45 = vcmask 261120
  %v47 = vsel %vm45, %v32, 0
  %49 = vmatpush.bf16.msra.mxu0 0
  %50 = vmatpush.bf16.msra.mxu0 0
  %51 = vmatpush.bf16.msra.mxu0 0
  %52 = vmatpush.bf16.msra.mxu0 0
  %53 = vmatpush.bf16.msra.mxu0 0
  %54 = vmatpush.bf16.msra.mxu0 0
  %55 = vmatpush.bf16.msra.mxu0 %v42
  %56 = vmatpush.bf16.msra.mxu0 %v41
  %57 = vmatmul.bf16.gmra.mxu0 %v47
  %v58 = vpop.f32.mrf.mxu0
  %v59 = vadd.f32 %v26, %v58
  %v60 = vpop.f32.mrf.mxu0
  %v61 = vadd.f32 %v26, %v60
  %62 = vdwg.mxu0
  %v63 = vmul.f32 %v59, 0.25
  %v64 = vmul.f32 %v61, 0.25
  %v65 = vpack.c.bf16 %v63, %v63
  %v66 = vpack.c.bf16 %v64, %v64
  %vm67 = vcmask 257024
  %68 = vst.msk [vmem:[%s3] sm:$0xf] %vm67, %v65
  %69 = vst.msk [vmem:[%s3 + $0x4] sm:$0xf] %vm67, %v66
  %v70 = vpack.c.bf16 %v59, %v59
  %v71 = vpack.c.bf16 %v61, %v61
  %74 = vrot.lane.b32.xlu0 %v70, 96
  %v75 = vpop.permute.xlu0 %74
  %76 = vrot.lane.b32.xlu0 %v71, 96
  %v77 = vpop.permute.xlu0 %76
  %80 = vst.msk [vmem:[%s4] sm:$0xf] %vm67, %v75
  %81 = vst.msk [vmem:[%s4 + $0x4] sm:$0xf] %vm67, %v77
  %82 = vrot.lane.b32.xlu0 %v70, 64
  %v83 = vpop.permute.xlu0 %82
  %84 = vrot.lane.b32.xlu0 %v71, 64
  %v85 = vpop.permute.xlu0 %84
  %88 = vst.msk [vmem:[%s5] sm:$0xf] %vm67, %v83
  %89 = vst.msk [vmem:[%s5 + $0x4] sm:$0xf] %vm67, %v85
  // Predicated region
  $region14: #{forward.24} parent=0 // pred_check
    _
  $region15: #{forward.24} parent=0 // pred_check_branch
    %91 = sbr.rel (0) target = $region17
  $region16: #{forward.24} parent=0 // pred_region
    _
  $region17: #{forward.24} parent=0 // pred_fallthru
    _
  // Predicated region
  $region18: #{forward.24} parent=0 // pred_check
    _
  $region19: #{forward.24} parent=0 // pred_check_branch
    %93 = sbr.rel (0) target = $region21
  $region20: #{forward.24} parent=0 // pred_region
    _
  $region21: #{forward.24} parent=0 // pred_fallthru
    _
  // Predicated region
  $region22: #{forward.24} parent=0 // pred_check
    _
  $region23: #{forward.24} parent=0 // pred_check_branch
    %95 = sbr.rel (0) target = $region25
  $region24: #{forward.24} parent=0 // pred_region
    _
  $region25: #{forward.24} parent=0 // pred_fallthru
    _
  // Predicated region
  $region26: #{forward.24} parent=0 // pred_check
    _
  $region27: #{forward.24} parent=0 // pred_check_branch
    %97 = sbr.rel (0) target = $region29
  $region28: #{forward.24} parent=0 // pred_region
    _
  $region29: #{forward.24} parent=0 // pred_fallthru
    _
  // Predicated region
  $region30: #{forward.24} parent=0 // pred_check
    _
  $region31: #{forward.24} parent=0 // pred_check_branch
    %99 = sbr.rel (0) target = $region33
  $region32: #{forward.24} parent=0 // pred_region
    _
  $region33: #{forward.24} parent=0 // pred_fallthru
    _
  // Predicated region
  $region34: #{forward.24} parent=0 // pred_check
    _
  $region35: #{forward.24} parent=0 // pred_check_branch
    %101 = sbr.rel (0) target = $region37
  $region36: #{forward.24} parent=0 // pred_region
    _
  $region37: #{forward.24} parent=0 // pred_fallthru
    _

// kernel: forward.23
$region0: #{forward.23}
  #allocation0 [shape = 'u32[]', space=smem, size = 0x4, offset = 0x4, fixed_abs, tag = 'smem constant byte address 0x4 - core index']
  #allocation1 [shape = 'u32[72,128]{1,0:T(1,128)}', space=vmem, size = 0x9000, scoped, tag = 'internal scratch']
  %s0 = inlined_call_operand.vmem [shape: f32[2,8,32], index: 0, kind: input, shape index: {}]
  %s1 = inlined_call_operand.vmem [shape: f32[2,8,32], index: 1, kind: input, shape index: {}]
  %s2 = inlined_call_operand.vmem [shape: f32[8,32], index: 2, kind: input, shape index: {}]
  %s3 = inlined_call_operand.vmem [shape: f32[1,32], index: 3, kind: input, shape index: {}]
  %s4 = inlined_call_operand.vmem [shape: f32[1,32], index: 4, kind: input, shape index: {}]
  %s5 = inlined_call_operand.vmem [shape: bf16[2,8,32], index: 5, kind: output, shape index: {}]
  %s6 = sld [smem:[#allocation0]]
  $region53: #{forward.23} parent=0
    _
  %s8 = ssub.s32 1, %s6
  %s9 = scalar_select 0, %s8, %s6
  loop: start=0, step=1, limit=4
  $region2: #{forward.23} parent=0 // loop_pre_header
    _
  $region3: #{forward.23} parent=0 // loop_header
    %s11 = sphi 0, %s15
    %p12 = scmp.ge.s32.totalorder %s11, 4
    %s21 = sphi 0, %s23
    %s24 = sphi 0, %s21
    %s25 = sphi 0, %s24
    %s41 = sphi 0, %s25
    %s47 = sphi 0, %s49
    %s50 = sphi 0, %s47
    %s51 = sphi 0, %s50
    %s67 = sphi 0, %s51
    %s71 = sphi 0, %s71
    %s73 = sphi 0, %s71
    %s74 = sphi 0, %s73
    %s88 = sphi 0, %s74
    %s92 = sphi 0, %s92
    %s94 = sphi 0, %s92
    %s95 = sphi 0, %s94
    %s109 = sphi 0, %s95
    %s113 = sphi 0, %s113
    %s115 = sphi 0, %s113
    %s116 = sphi 0, %s115
    %s130 = sphi 0, %s116
    %s136 = sphi 0, %s138
    %s139 = sphi 0, %s136
    %s140 = sphi 0, %s139
    %s156 = sphi 0, %s140
  $region4: #{forward.23} parent=0 // loop_header_branch
    %14 = sbr.rel (%p12) target = $region8
  $region5: #{forward.23} parent=0 // loop_body
    %s16 = ssub.s32 %s11, 1
    %s17 = ssub.s32 %s11, 2
    %s18 = sadd.s32 %s11, 1
    %s19 = ssub.s32 %s11, %s18
    %p20 = scmp.eq.s32.totalorder %s19, 0
    %s22 = sadd.s32 %s21, 1
    %s23 = scalar_select %p20, %s21, %s22
    %p26 = pneg %p20
    %p27 = scmp.eq.s32.totalorder %s11, 1
    %p28 = por %p26, %p27
    %p29 = scmp.ne.s32.totalorder %s21, %s24
    %p30 = scmp.eq.s32.totalorder %s11, 0
    %p31 = por %p29, %p30
    %p32 = scmp.ne.s32.totalorder %s21, %s24
    %p33 = scmp.eq.s32.totalorder %s16, 1
    %p34 = por %p32, %p33
    %p35 = scmp.ne.s32.totalorder %s24, %s25
    %p36 = scmp.eq.s32.totalorder %s16, 0
    %p37 = por %p35, %p36
    %p38 = scmp.ne.s32.totalorder %s24, %s25
    %p39 = scmp.eq.s32.totalorder %s17, 1
    %p40 = por %p38, %p39
    %p42 = scmp.ne.s32.totalorder %s25, %s41
    %p43 = scmp.eq.s32.totalorder %s17, 0
    %p44 = por %p42, %p43
    %s45 = ssub.s32 %s11, %s18
    %p46 = scmp.eq.s32.totalorder %s45, 0
    %s48 = sadd.s32 %s47, 1
    %s49 = scalar_select %p46, %s47, %s48
    %p52 = pneg %p46
    %p53 = scmp.eq.s32.totalorder %s11, 1
    %p54 = por %p52, %p53
    %p55 = scmp.ne.s32.totalorder %s47, %s50
    %p56 = scmp.eq.s32.totalorder %s11, 0
    %p57 = por %p55, %p56
    %p58 = scmp.ne.s32.totalorder %s47, %s50
    %p59 = scmp.eq.s32.totalorder %s16, 1
    %p60 = por %p58, %p59
    %p61 = scmp.ne.s32.totalorder %s50, %s51
    %p62 = scmp.eq.s32.totalorder %s16, 0
    %p63 = por %p61, %p62
    %p64 = scmp.ne.s32.totalorder %s50, %s51
    %p65 = scmp.eq.s32.totalorder %s17, 1
    %p66 = por %p64, %p65
    %p68 = scmp.ne.s32.totalorder %s51, %s67
    %p69 = scmp.eq.s32.totalorder %s17, 0
    %p70 = por %p68, %p69
    %s72 = sadd.s32 %s71, 1
    %p75 = scmp.eq.s32.totalorder %s11, 1
    %p76 = scmp.ne.s32.totalorder %s71, %s73
    %p77 = scmp.eq.s32.totalorder %s11, 0
    %p78 = por %p76, %p77
    %p79 = scmp.ne.s32.totalorder %s71, %s73
    %p80 = scmp.eq.s32.totalorder %s16, 1
    %p81 = por %p79, %p80
    %p82 = scmp.ne.s32.totalorder %s73, %s74
    %p83 = scmp.eq.s32.totalorder %s16, 0
    %p84 = por %p82, %p83
    %p85 = scmp.ne.s32.totalorder %s73, %s74
    %p86 = scmp.eq.s32.totalorder %s17, 1
    %p87 = por %p85, %p86
    %p89 = scmp.ne.s32.totalorder %s74, %s88
    %p90 = scmp.eq.s32.totalorder %s17, 0
    %p91 = por %p89, %p90
    %s93 = sadd.s32 %s92, 1
    %p96 = scmp.eq.s32.totalorder %s11, 1
    %p97 = scmp.ne.s32.totalorder %s92, %s94
    %p98 = scmp.eq.s32.totalorder %s11, 0
    %p99 = por %p97, %p98
    %p100 = scmp.ne.s32.totalorder %s92, %s94
    %p101 = scmp.eq.s32.totalorder %s16, 1
    %p102 = por %p100, %p101
    %p103 = scmp.ne.s32.totalorder %s94, %s95
    %p104 = scmp.eq.s32.totalorder %s16, 0
    %p105 = por %p103, %p104
    %p106 = scmp.ne.s32.totalorder %s94, %s95
    %p107 = scmp.eq.s32.totalorder %s17, 1
    %p108 = por %p106, %p107
    %p110 = scmp.ne.s32.totalorder %s95, %s109
    %p111 = scmp.eq.s32.totalorder %s17, 0
    %p112 = por %p110, %p111
    %s114 = sadd.s32 %s113, 1
    %p117 = scmp.eq.s32.totalorder %s11, 1
    %p118 = scmp.ne.s32.totalorder %s113, %s115
    %p119 = scmp.eq.s32.totalorder %s11, 0
    %p120 = por %p118, %p119
    %p121 = scmp.ne.s32.totalorder %s113, %s115
    %p122 = scmp.eq.s32.totalorder %s16, 1
    %p123 = por %p121, %p122
    %p124 = scmp.ne.s32.totalorder %s115, %s116
    %p125 = scmp.eq.s32.totalorder %s16, 0
    %p126 = por %p124, %p125
    %p127 = scmp.ne.s32.totalorder %s115, %s116
    %p128 = scmp.eq.s32.totalorder %s17, 1
    %p129 = por %p127, %p128
    %p131 = scmp.ne.s32.totalorder %s116, %s130
    %p132 = scmp.eq.s32.totalorder %s17, 0
    %p133 = por %p131, %p132
    %s134 = ssub.s32 %s11, %s18
    %p135 = scmp.eq.s32.totalorder %s134, 0
    %s137 = sadd.s32 %s136, 1
    %s138 = scalar_select %p135, %s136, %s137
    %p141 = pneg %p135
    %p142 = scmp.eq.s32.totalorder %s11, 1
    %p143 = por %p141, %p142
    %p144 = scmp.ne.s32.totalorder %s136, %s139
    %p145 = scmp.eq.s32.totalorder %s11, 0
    %p146 = por %p144, %p145
    %p147 = scmp.ne.s32.totalorder %s136, %s139
    %p148 = scmp.eq.s32.totalorder %s16, 1
    %p149 = por %p147, %p148
    %p150 = scmp.ne.s32.totalorder %s139, %s140
    %p151 = scmp.eq.s32.totalorder %s16, 0
    %p152 = por %p150, %p151
    %p153 = scmp.ne.s32.totalorder %s139, %s140
    %p154 = scmp.eq.s32.totalorder %s17, 1
    %p155 = por %p153, %p154
    %p157 = scmp.ne.s32.totalorder %s140, %s156
    %p158 = scmp.eq.s32.totalorder %s17, 0
    %p159 = por %p157, %p158
    %p160 = scmp.le.s32.totalorder 1, %s11
    %p161 = scmp.lt.s32.totalorder %s11, 3
    %p162 = pnand %p160, %p161
    %p163 = pneg %p162
    // Predicated region
    $region9: #{forward.23} parent=5 // pred_check
      _
    $region10: #{forward.23} parent=5 // pred_check_branch
      %165 = sbr.rel (%p162) target = $region12
    $region11: #{forward.23} parent=5 // pred_region
      %s166 = ssub.s32 %s11, 1
      // Predicated region
      $region13: #{forward.23} parent=11 // pred_check
        %p167 = pneg %p84
      $region14: #{forward.23} parent=11 // pred_check_branch
        %169 = sbr.rel (%p167) target = $region16
      $region15: #{forward.23} parent=11 // pred_region
        _
      $region16: #{forward.23} parent=11 // pred_fallthru
        _
      // Predicated region
      $region17: #{forward.23} parent=11 // pred_check
        %p170 = pneg %p105
      $region18: #{forward.23} parent=11 // pred_check_branch
        %172 = sbr.rel (%p170) target = $region20
      $region19: #{forward.23} parent=11 // pred_region
        _
      $region20: #{forward.23} parent=11 // pred_fallthru
        _
      // Predicated region
      $region21: #{forward.23} parent=11 // pred_check
        %p173 = pneg %p126
      $region22: #{forward.23} parent=11 // pred_check_branch
        %175 = sbr.rel (%p173) target = $region24
      $region23: #{forward.23} parent=11 // pred_region
        _
      $region24: #{forward.23} parent=11 // pred_fallthru
        _
    $region12: #{forward.23} parent=5 // pred_fallthru
      _
    %p176 = scmp.lt.s32.totalorder %s11, 2
    // Predicated region
    $region25: #{forward.23} parent=5 // pred_check
      %p177 = pneg %p176
    $region26: #{forward.23} parent=5 // pred_check_branch
      %179 = sbr.rel (%p177) target = $region28
    $region27: #{forward.23} parent=5 // pred_region
      // Predicated region
      $region29: #{forward.23} parent=27 // pred_check
        %p180 = pneg %p31
      $region30: #{forward.23} parent=27 // pred_check_branch
        %182 = sbr.rel (%p180) target = $region32
      $region31: #{forward.23} parent=27 // pred_region
        %p183 = scmp.lt.s32.totalorder %s11, 1
        %s184 = scalar_select %p183, %s11, 1
        %s185 = smul.addr %s184, 8
        %s186 = scalar_lea.vmem %s0, %s185
      $region32: #{forward.23} parent=27 // pred_fallthru
        _
      // Predicated region
      $region33: #{forward.23} parent=27 // pred_check
        %p187 = pneg %p57
      $region34: #{forward.23} parent=27 // pred_check_branch
        %189 = sbr.rel (%p187) target = $region36
      $region35: #{forward.23} parent=27 // pred_region
        %p190 = scmp.lt.s32.totalorder %s11, 1
        %s191 = scalar_select %p190, %s11, 1
        %s192 = smul.addr %s191, 8
        %s193 = scalar_lea.vmem %s1, %s192
      $region36: #{forward.23} parent=27 // pred_fallthru
        _
    $region28: #{forward.23} parent=5 // pred_fallthru
      _
    %p194 = scmp.le.s32.totalorder 1, %s11
    %p195 = scmp.lt.s32.totalorder %s11, 3
    %p196 = pnand %p194, %p195
    %p197 = pneg %p196
    // Predicated region
    $region37: #{forward.23} parent=5 // pred_check
      _
    $region38: #{forward.23} parent=5 // pred_check_branch
      %199 = sbr.rel (%p196) target = $region40
    $region39: #{forward.23} parent=5 // pred_region
      %s200 = ssub.s32 %s11, 1
      %p201 = scmp.lt.s32.totalorder %s16, 1
      %s202 = scalar_select %p201, %s16, 1
      %s203 = smul.addr %s202, 8
      %s204 = scalar_lea.vmem %s0, %s203
      %p205 = pneg %p37
      %p206 = pneg %p34
      %p207 = scmp.lt.s32.totalorder %s16, 1
      %s208 = scalar_select %p207, %s16, 1
      %s209 = smul.addr %s208, 8
      %s210 = scalar_lea.vmem %s1, %s209
      %p211 = pneg %p63
      %p212 = pneg %p60
      %p213 = pneg %p84
      %p214 = pneg %p81
      %p215 = pneg %p105
      %p216 = pneg %p102
      %p217 = pneg %p126
      %p218 = pneg %p123
      %p219 = pneg %p152
      %p220 = pneg %p149
      %p221 = scmp.lt.s32.totalorder %s16, 1
      %s222 = scalar_select %p221, %s16, 1
      %s223 = smul.addr %s222, 4
      %s224 = scalar_lea.vmem %s5, %s223
      %p225 = scmp.lt.s32.totalorder %s16, 1
      %s226 = scalar_select %p225, %s16, 1
      %s227 = smul.addr %s226, 8
      %s228 = scalar_lea.vmem %s0, %s227
      %p229 = scmp.lt.s32.totalorder %s16, 1
      %s230 = scalar_select %p229, %s16, 1
      %s231 = smul.addr %s230, 8
      %s232 = scalar_lea.vmem %s1, %s231
      %p233 = scmp.lt.s32.totalorder %s16, 1
      %s234 = scalar_select %p233, %s16, 1
      %s235 = smul.addr %s234, 4
      %s236 = scalar_lea.vmem %s5, %s235
      %v237 = vld [vmem:[%s228] sm:$0xff]
      %v238 = vld [vmem:[%s232] sm:$0xff]
      %v239 = vadd.f32 %v237, %v238
      %v240 = vld [vmem:[%s2] sm:$0xff]
      %v241 = vadd.f32 %v239, %v240
      %vm242 = vcmask 261120
      %v243 = vsel %vm242, %v241, 0.0
      %244 = vadd.xlane.f32.xlu0 %v243
      %v245 = vpop.xlane.xlu0 %244
      %v246 = vrcp.pop 32.0
      %v247 = vmul.f32 32.0, %v246
      %v248 = vsub.f32 1.0, %v247
      %v249 = vmul.f32 %v246, %v248
      %v250 = vadd.f32 %v246, %v249
      %vm251 = vweird.f32 %v246
      %v252 = vsel %vm251, %v246, %v250
      %v253 = vmul.f32 %v245, %v252
      %v254 = vsub.f32 %v241, %v253
      %v255 = vmul.f32 %v254, %v254
      %v256 = vsel %vm242, %v255, 0.0
      %257 = vadd.xlane.f32.xlu0 %v256
      %v258 = vpop.xlane.xlu0 %257
      %v259 = vmul.f32 %v258, %v252
      %v260 = vadd.f32 %v259, 1e-12
      %v261 = vrsqrt.pop %v260
      %v262 = vmul.f32 %v261, %v260
      %v263 = vmul.f32 %v262, %v261
      %v264 = vmul.f32 0.5, %v263
      %v265 = vsub.f32 1.5, %v264
      %v266 = vmul.f32 %v261, %v265
      %vm267 = vweird.f32 %v260
      %vm268 = vweird.f32 %v261
      %vm269 = vmor %vm267, %vm268
      %v270 = vsel %vm269, %v261, %v266
      %v271 = vmul.f32 %v254, %v270
      %v272 = vld [vmem:[%s3] sm:$0x1]
      %v274 = vperm.slane %v272, 0
      %v276 = vmul.f32 %v271, %v274
      %v277 = vld [vmem:[%s4] sm:$0x1]
      %v279 = vperm.slane %v277, 0
      %v281 = vadd.f32 %v276, %v279
      %v282 = vpack.c.bf16 %v281, %v281
      %vm283 = vcmask 257024
      %284 = vst.msk [vmem:[%s236] sm:$0xf] %vm283, %v282
      %p285 = scmp.lt.s32.totalorder %s16, 1
      %s286 = scalar_select %p285, %s16, 1
      %s287 = smul.addr %s286, 4
      %s288 = scalar_lea.vmem %s5, %s287
      // Predicated region
      $region41: #{forward.23} parent=39 // pred_check
        %p289 = pneg %p149
      $region42: #{forward.23} parent=39 // pred_check_branch
        %291 = sbr.rel (%p289) target = $region44
      $region43: #{forward.23} parent=39 // pred_region
        _
      $region44: #{forward.23} parent=39 // pred_fallthru
        _
    $region40: #{forward.23} parent=5 // pred_fallthru
      _
    %p292 = scmp.le.s32.totalorder 2, %s11
    // Predicated region
    $region45: #{forward.23} parent=5 // pred_check
      %p293 = pneg %p292
    $region46: #{forward.23} parent=5 // pred_check_branch
      %295 = sbr.rel (%p293) target = $region48
    $region47: #{forward.23} parent=5 // pred_region
      %s296 = ssub.s32 %s11, 2
      // Predicated region
      $region49: #{forward.23} parent=47 // pred_check
        %p297 = pneg %p155
      $region50: #{forward.23} parent=47 // pred_check_branch
        %299 = sbr.rel (%p297) target = $region52
      $region51: #{forward.23} parent=47 // pred_region
        %p300 = scmp.lt.s32.totalorder %s17, 1
        %s301 = scalar_select %p300, %s17, 1
        %s302 = smul.addr %s301, 4
        %s303 = scalar_lea.vmem %s5, %s302
      $region52: #{forward.23} parent=47 // pred_fallthru
        _
    $region48: #{forward.23} parent=5 // pred_fallthru
      _
  $region6: #{forward.23} parent=0 // loop_footer
    %s15 = sadd.s32 1, %s11
  $region7: #{forward.23} parent=0 // loop_footer_branch
    %10 = sbr.rel target = $region3
  $region8: #{forward.23} parent=0 // loop_exit
    _

// kernel: forward.27
$region0: #{forward.27}
  #allocation0 [shape = 'u32[]', space=smem, size = 0x4, offset = 0x4, fixed_abs, tag = 'smem constant byte address 0x4 - core index']
  #allocation1 [shape = 'u32[72,128]{1,0:T(1,128)}', space=vmem, size = 0x9000, scoped, tag = 'internal scratch']
  %s0 = inlined_call_operand.vmem [shape: bf16[16,32], index: 0, kind: input, shape index: {}]
  %s1 = inlined_call_operand.vmem [shape: bf16[32,64], index: 1, kind: input, shape index: {}]
  %s2 = inlined_call_operand.vmem [shape: f32[1,64], index: 2, kind: input, shape index: {}]
  %s3 = inlined_call_operand.vmem [shape: bf16[64,32], index: 3, kind: input, shape index: {}]
  %s4 = inlined_call_operand.vmem [shape: f32[1,32], index: 4, kind: input, shape index: {}]
  %s5 = inlined_call_operand.vmem [shape: f32[1,32], index: 5, kind: input, shape index: {}]
  %s6 = inlined_call_operand.vmem [shape: f32[1,32], index: 6, kind: input, shape index: {}]
  %s7 = inlined_call_operand.vmem [shape: bf16[16,32], index: 7, kind: output, shape index: {}]
  %s8 = sld [smem:[#allocation0]]
  $region38: #{forward.27} parent=0
    _
  %s10 = ssub.s32 1, %s8
  %s11 = scalar_select 0, %s10, %s8
  // Predicated region
  $region2: #{forward.27} parent=0 // pred_check
    _
  $region3: #{forward.27} parent=0 // pred_check_branch
    %13 = sbr.rel (0) target = $region5
  $region4: #{forward.27} parent=0 // pred_region
    _
  $region5: #{forward.27} parent=0 // pred_fallthru
    _
  // Predicated region
  $region6: #{forward.27} parent=0 // pred_check
    _
  $region7: #{forward.27} parent=0 // pred_check_branch
    %15 = sbr.rel (0) target = $region9
  $region8: #{forward.27} parent=0 // pred_region
    _
  $region9: #{forward.27} parent=0 // pred_fallthru
    _
  // Predicated region
  $region10: #{forward.27} parent=0 // pred_check
    _
  $region11: #{forward.27} parent=0 // pred_check_branch
    %17 = sbr.rel (0) target = $region13
  $region12: #{forward.27} parent=0 // pred_region
    _
  $region13: #{forward.27} parent=0 // pred_fallthru
    _
  // Predicated region
  $region14: #{forward.27} parent=0 // pred_check
    _
  $region15: #{forward.27} parent=0 // pred_check_branch
    %19 = sbr.rel (0) target = $region17
  $region16: #{forward.27} parent=0 // pred_region
    _
  $region17: #{forward.27} parent=0 // pred_fallthru
    _
  // Predicated region
  $region18: #{forward.27} parent=0 // pred_check
    _
  $region19: #{forward.27} parent=0 // pred_check_branch
    %21 = sbr.rel (0) target = $region21
  $region20: #{forward.27} parent=0 // pred_region
    _
  $region21: #{forward.27} parent=0 // pred_fallthru
    _
  // Predicated region
  $region22: #{forward.27} parent=0 // pred_check
    _
  $region23: #{forward.27} parent=0 // pred_check_branch
    %23 = sbr.rel (0) target = $region25
  $region24: #{forward.27} parent=0 // pred_region
    _
  $region25: #{forward.27} parent=0 // pred_fallthru
    _
  // Predicated region
  $region26: #{forward.27} parent=0 // pred_check
    _
  $region27: #{forward.27} parent=0 // pred_check_branch
    %25 = sbr.rel (0) target = $region29
  $region28: #{forward.27} parent=0 // pred_region
    _
  $region29: #{forward.27} parent=0 // pred_fallthru
    _
  %v27 = vld [vmem:[%s0] sm:$0xf]
  %v28 = vld [vmem:[%s0 + $0x4] sm:$0xf]
  %v29 = vld [vmem:[%s1] sm:$0xf]
  %v30 = vld [vmem:[%s1 + $0x4] sm:$0xf]
  %v31 = vld [vmem:[%s1 + $0x8] sm:$0xf]
  %v32 = vld [vmem:[%s1 + $0xc] sm:$0xf]
  %v33 = vld [vmem:[%s2] sm:$0x1]
  %v35 = vperm.slane %v33, 0
  %v39 = vunpack.c.l.b16 %v27
  %v40 = vunpack.c.l.b16 %v28
  %v41 = vpack.c.b16 %v40, %v39
  %v46 = vunpack.c.l.b16 %v29
  %v47 = vunpack.c.l.b16 %v30
  %v48 = vunpack.c.l.b16 %v31
  %v49 = vunpack.c.l.b16 %v32
  %v50 = vpack.c.b16 %v47, %v46
  %v51 = vpack.c.b16 %v49, %v48
  %vm54 = vcmask 261120
  %v56 = vsel %vm54, %v41, 0
  %58 = vmatpush.bf16.msra.mxu0 0
  %59 = vmatpush.bf16.msra.mxu0 0
  %60 = vmatpush.bf16.msra.mxu0 0
  %61 = vmatpush.bf16.msra.mxu0 0
  %62 = vmatpush.bf16.msra.mxu0 0
  %63 = vmatpush.bf16.msra.mxu0 0
  %64 = vmatpush.bf16.msra.mxu0 %v51
  %65 = vmatpush.bf16.msra.mxu0 %v50
  %66 = vmatmul.bf16.gmra.mxu0 %v56
  %v67 = vpop.f32.mrf.mxu0
  %v68 = vadd.f32 %v35, %v67
  %v69 = vpop.f32.mrf.mxu0
  %v70 = vadd.f32 %v35, %v69
  %71 = vdwg.mxu0
  %v72 = vmul.f32 %v68, %v68
  %v73 = vmul.f32 %v70, %v70
  %v74 = vmul.f32 %v68, %v72
  %v75 = vmul.f32 %v70, %v73
  %v76 = vmul.f32 %v74, 0.044715
  %v77 = vmul.f32 %v75, 0.044715
  %v78 = vadd.f32 %v68, %v76
  %v79 = vadd.f32 %v70, %v77
  %v80 = vmul.f32 %v78, 0.7978846
  %v81 = vmul.f32 %v79, 0.7978846
  %v82 = vtanh.pop %v80
  %v83 = vtanh.pop %v81
  %v84 = vadd.f32 %v82, 1.0
  %v85 = vadd.f32 %v83, 1.0
  %v86 = vmul.f32 %v84, 0.5
  %v87 = vmul.f32 %v85, 0.5
  %v88 = vmul.f32 %v68, %v86
  %v89 = vmul.f32 %v70, %v87
  %v90 = vpack.c.bf16 %v89, %v88
  %v91 = vld [vmem:[%s3] sm:$0xf]
  %v92 = vld [vmem:[%s3 + $0x4] sm:$0xf]
  %v93 = vld [vmem:[%s3 + $0x8] sm:$0xf]
  %v94 = vld [vmem:[%s3 + $0xc] sm:$0xf]
  %v95 = vld [vmem:[%s3 + $0x10] sm:$0xf]
  %v96 = vld [vmem:[%s3 + $0x14] sm:$0xf]
  %v97 = vld [vmem:[%s3 + $0x18] sm:$0xf]
  %v98 = vld [vmem:[%s3 + $0x1c] sm:$0xf]
  %v99 = vld [vmem:[%s4] sm:$0x1]
  %v101 = vperm.slane %v99, 0
  %v111 = vunpack.c.l.b16 %v91
  %v112 = vunpack.c.l.b16 %v92
  %v113 = vunpack.c.l.b16 %v93
  %v114 = vunpack.c.l.b16 %v94
  %v115 = vunpack.c.l.b16 %v95
  %v116 = vunpack.c.l.b16 %v96
  %v117 = vunpack.c.l.b16 %v97
  %v118 = vunpack.c.l.b16 %v98
  %v119 = vpack.c.b16 %v112, %v111
  %v120 = vpack.c.b16 %v114, %v113
  %v121 = vpack.c.b16 %v116, %v115
  %v122 = vpack.c.b16 %v118, %v117
  %vm127 = vcmask 523264
  %v129 = vsel %vm127, %v90, 0
  %131 = vmatpush.bf16.msra.mxu0 0
  %132 = vmatpush.bf16.msra.mxu0 0
  %133 = vmatpush.bf16.msra.mxu0 0
  %134 = vmatpush.bf16.msra.mxu0 0
  %135 = vmatpush.bf16.msra.mxu0 %v122
  %136 = vmatpush.bf16.msra.mxu0 %v121
  %137 = vmatpush.bf16.msra.mxu0 %v120
  %138 = vmatpush.bf16.msra.mxu0 %v119
  %139 = vmatmul.bf16.gmra.mxu0 %v129
  %v140 = vpop.f32.mrf.mxu0
  %v141 = vadd.f32 %v101, %v140
  %v142 = vpop.f32.mrf.mxu0
  %v143 = vadd.f32 %v101, %v142
  %144 = vdwg.mxu0
  %v145 = vunpack.c.l.bf16 %v27
  %v146 = vunpack.c.l.bf16 %v28
  %v147 = vadd.f32 %v141, %v145
  %v148 = vadd.f32 %v143, %v146
  %v149 = vsel %vm54, %v147, 0.0
  %150 = vadd.xlane.f32.xlu0 %v149
  %v151 = vpop.xlane.xlu0 %150
  %v152 = vsel %vm54, %v148, 0.0
  %153 = vadd.xlane.f32.xlu0 %v152
  %v154 = vpop.xlane.xlu0 %153
  %v155 = vrcp.pop 32.0
  %v156 = vmul.f32 32.0, %v155
  %v157 = vsub.f32 1.0, %v156
  %v158 = vmul.f32 %v155, %v157
  %v159 = vadd.f32 %v155, %v158
  %vm160 = vweird.f32 %v155
  %v161 = vsel %vm160, %v155, %v159
  %v162 = vmul.f32 %v151, %v161
  %v163 = vmul.f32 %v154, %v161
  %v164 = vsub.f32 %v147, %v162
  %v165 = vsub.f32 %v148, %v163
  %v166 = vmul.f32 %v164, %v164
  %v167 = vmul.f32 %v165, %v165
  %v168 = vsel %vm54, %v166, 0.0
  %169 = vadd.xlane.f32.xlu0 %v168
  %v170 = vpop.xlane.xlu0 %169
  %v171 = vsel %vm54, %v167, 0.0
  %172 = vadd.xlane.f32.xlu0 %v171
  %v173 = vpop.xlane.xlu0 %172
  %v174 = vmul.f32 %v170, %v161
  %v175 = vmul.f32 %v173, %v161
  %v176 = vadd.f32 %v174, 1e-12
  %v177 = vadd.f32 %v175, 1e-12
  %v178 = vrsqrt.pop %v176
  %v179 = vmul.f32 %v178, %v176
  %v180 = vmul.f32 %v179, %v178
  %v181 = vmul.f32 0.5, %v180
  %v182 = vsub.f32 1.5, %v181
  %v183 = vmul.f32 %v178, %v182
  %vm184 = vweird.f32 %v176
  %vm185 = vweird.f32 %v178
  %vm186 = vmor %vm184, %vm185
  %v187 = vsel %vm186, %v178, %v183
  %v188 = vrsqrt.pop %v177
  %v189 = vmul.f32 %v188, %v177
  %v190 = vmul.f32 %v189, %v188
  %v191 = vmul.f32 0.5, %v190
  %v192 = vsub.f32 1.5, %v191
  %v193 = vmul.f32 %v188, %v192
  %vm194 = vweird.f32 %v177
  %vm195 = vweird.f32 %v188
  %vm196 = vmor %vm194, %vm195
  %v197 = vsel %vm196, %v188, %v193
  %v198 = vmul.f32 %v164, %v187
  %v199 = vmul.f32 %v165, %v197
  %v200 = vld [vmem:[%s5] sm:$0x1]
  %v202 = vperm.slane %v200, 0
  %v204 = vmul.f32 %v198, %v202
  %v205 = vmul.f32 %v199, %v202
  %v206 = vld [vmem:[%s6] sm:$0x1]
  %v208 = vperm.slane %v206, 0
  %v210 = vadd.f32 %v204, %v208
  %v211 = vadd.f32 %v205, %v208
  %v212 = vpack.c.bf16 %v210, %v210
  %v213 = vpack.c.bf16 %v211, %v211
  %vm214 = vcmask 257024
  %215 = vst.msk [vmem:[%s7] sm:$0xf] %vm214, %v212
  %216 = vst.msk [vmem:[%s7 + $0x4] sm:$0xf] %vm214, %v213
  // Predicated region
  $region30: #{forward.27} parent=0 // pred_check
    _
  $region31: #{forward.27} parent=0 // pred_check_branch
    %218 = sbr.rel (0) target = $region33
  $region32: #{forward.27} parent=0 // pred_region
    _
  $region33: #{forward.27} parent=0 // pred_fallthru
    _
  // Predicated region
  $region34: #{forward.27} parent=0 // pred_check
    _
  $region35: #{forward.27} parent=0 // pred_check_branch
    %220 = sbr.rel (0) target = $region37
  $region36: #{forward.27} parent=0 // pred_region
    _
  $region37: #{forward.27} parent=0 // pred_fallthru
    _

// kernel: forward.32
$region0: #{forward.32}
  #allocation0 [shape = 'u32[]', space=smem, size = 0x4, offset = 0x4, fixed_abs, tag = 'smem constant byte address 0x4 - core index']
  #allocation1 [shape = 'u32[72,128]{1,0:T(1,128)}', space=vmem, size = 0x9000, scoped, tag = 'internal scratch']
  %s0 = inlined_call_operand.vmem [shape: f32[4,8,32], index: 0, kind: input, shape index: {}]
  %s1 = inlined_call_operand.vmem [shape: f32[4,8,32], index: 1, kind: input, shape index: {}]
  %s2 = inlined_call_operand.vmem [shape: f32[8,32], index: 2, kind: input, shape index: {}]
  %s3 = inlined_call_operand.vmem [shape: f32[1,32], index: 3, kind: input, shape index: {}]
  %s4 = inlined_call_operand.vmem [shape: f32[1,32], index: 4, kind: input, shape index: {}]
  %s5 = inlined_call_operand.vmem [shape: bf16[4,8,32], index: 5, kind: output, shape index: {}]
  %s6 = sld [smem:[#allocation0]]
  $region53: #{forward.32} parent=0
    _
  %s8 = ssub.s32 1, %s6
  %s9 = scalar_select 0, %s8, %s6
  loop: start=0, step=1, limit=6
  $region2: #{forward.32} parent=0 // loop_pre_header
    _
  $region3: #{forward.32} parent=0 // loop_header
    %s11 = sphi 0, %s15
    %p12 = scmp.ge.s32.totalorder %s11, 6
    %s21 = sphi 0, %s23
    %s24 = sphi 0, %s21
    %s25 = sphi 0, %s24
    %s41 = sphi 0, %s25
    %s47 = sphi 0, %s49
    %s50 = sphi 0, %s47
    %s51 = sphi 0, %s50
    %s67 = sphi 0, %s51
    %s71 = sphi 0, %s71
    %s73 = sphi 0, %s71
    %s74 = sphi 0, %s73
    %s88 = sphi 0, %s74
    %s92 = sphi 0, %s92
    %s94 = sphi 0, %s92
    %s95 = sphi 0, %s94
    %s109 = sphi 0, %s95
    %s113 = sphi 0, %s113
    %s115 = sphi 0, %s113
    %s116 = sphi 0, %s115
    %s130 = sphi 0, %s116
    %s136 = sphi 0, %s138
    %s139 = sphi 0, %s136
    %s140 = sphi 0, %s139
    %s156 = sphi 0, %s140
  $region4: #{forward.32} parent=0 // loop_header_branch
    %14 = sbr.rel (%p12) target = $region8
  $region5: #{forward.32} parent=0 // loop_body
    %s16 = ssub.s32 %s11, 1
    %s17 = ssub.s32 %s11, 2
    %s18 = sadd.s32 %s11, 1
    %s19 = ssub.s32 %s11, %s18
    %p20 = scmp.eq.s32.totalorder %s19, 0
    %s22 = sadd.s32 %s21, 1
    %s23 = scalar_select %p20, %s21, %s22
    %p26 = pneg %p20
    %p27 = scmp.eq.s32.totalorder %s11, 3
    %p28 = por %p26, %p27
    %p29 = scmp.ne.s32.totalorder %s21, %s24
    %p30 = scmp.eq.s32.totalorder %s11, 0
    %p31 = por %p29, %p30
    %p32 = scmp.ne.s32.totalorder %s21, %s24
    %p33 = scmp.eq.s32.totalorder %s16, 3
    %p34 = por %p32, %p33
    %p35 = scmp.ne.s32.totalorder %s24, %s25
    %p36 = scmp.eq.s32.totalorder %s16, 0
    %p37 = por %p35, %p36
    %p38 = scmp.ne.s32.totalorder %s24, %s25
    %p39 = scmp.eq.s32.totalorder %s17, 3
    %p40 = por %p38, %p39
    %p42 = scmp.ne.s32.totalorder %s25, %s41
    %p43 = scmp.eq.s32.totalorder %s17, 0
    %p44 = por %p42, %p43
    %s45 = ssub.s32 %s11, %s18
    %p46 = scmp.eq.s32.totalorder %s45, 0
    %s48 = sadd.s32 %s47, 1
    %s49 = scalar_select %p46, %s47, %s48
    %p52 = pneg %p46
    %p53 = scmp.eq.s32.totalorder %s11, 3
    %p54 = por %p52, %p53
    %p55 = scmp.ne.s32.totalorder %s47, %s50
    %p56 = scmp.eq.s32.totalorder %s11, 0
    %p57 = por %p55, %p56
    %p58 = scmp.ne.s32.totalorder %s47, %s50
    %p59 = scmp.eq.s32.totalorder %s16, 3
    %p60 = por %p58, %p59
    %p61 = scmp.ne.s32.totalorder %s50, %s51
    %p62 = scmp.eq.s32.totalorder %s16, 0
    %p63 = por %p61, %p62
    %p64 = scmp.ne.s32.totalorder %s50, %s51
    %p65 = scmp.eq.s32.totalorder %s17, 3
    %p66 = por %p64, %p65
    %p68 = scmp.ne.s32.totalorder %s51, %s67
    %p69 = scmp.eq.s32.totalorder %s17, 0
    %p70 = por %p68, %p69
    %s72 = sadd.s32 %s71, 1
    %p75 = scmp.eq.s32.totalorder %s11, 3
    %p76 = scmp.ne.s32.totalorder %s71, %s73
    %p77 = scmp.eq.s32.totalorder %s11, 0
    %p78 = por %p76, %p77
    %p79 = scmp.ne.s32.totalorder %s71, %s73
    %p80 = scmp.eq.s32.totalorder %s16, 3
    %p81 = por %p79, %p80
    %p82 = scmp.ne.s32.totalorder %s73, %s74
    %p83 = scmp.eq.s32.totalorder %s16, 0
    %p84 = por %p82, %p83
    %p85 = scmp.ne.s32.totalorder %s73, %s74
    %p86 = scmp.eq.s32.totalorder %s17, 3
    %p87 = por %p85, %p86
    %p89 = scmp.ne.s32.totalorder %s74, %s88
    %p90 = scmp.eq.s32.totalorder %s17, 0
    %p91 = por %p89, %p90
    %s93 = sadd.s32 %s92, 1
    %p96 = scmp.eq.s32.totalorder %s11, 3
    %p97 = scmp.ne.s32.totalorder %s92, %s94
    %p98 = scmp.eq.s32.totalorder %s11, 0
    %p99 = por %p97, %p98
    %p100 = scmp.ne.s32.totalorder %s92, %s94
    %p101 = scmp.eq.s32.totalorder %s16, 3
    %p102 = por %p100, %p101
    %p103 = scmp.ne.s32.totalorder %s94, %s95
    %p104 = scmp.eq.s32.totalorder %s16, 0
    %p105 = por %p103, %p104
    %p106 = scmp.ne.s32.totalorder %s94, %s95
    %p107 = scmp.eq.s32.totalorder %s17, 3
    %p108 = por %p106, %p107
    %p110 = scmp.ne.s32.totalorder %s95, %s109
    %p111 = scmp.eq.s32.totalorder %s17, 0
    %p112 = por %p110, %p111
    %s114 = sadd.s32 %s113, 1
    %p117 = scmp.eq.s32.totalorder %s11, 3
    %p118 = scmp.ne.s32.totalorder %s113, %s115
    %p119 = scmp.eq.s32.totalorder %s11, 0
    %p120 = por %p118, %p119
    %p121 = scmp.ne.s32.totalorder %s113, %s115
    %p122 = scmp.eq.s32.totalorder %s16, 3
    %p123 = por %p121, %p122
    %p124 = scmp.ne.s32.totalorder %s115, %s116
    %p125 = scmp.eq.s32.totalorder %s16, 0
    %p126 = por %p124, %p125
    %p127 = scmp.ne.s32.totalorder %s115, %s116
    %p128 = scmp.eq.s32.totalorder %s17, 3
    %p129 = por %p127, %p128
    %p131 = scmp.ne.s32.totalorder %s116, %s130
    %p132 = scmp.eq.s32.totalorder %s17, 0
    %p133 = por %p131, %p132
    %s134 = ssub.s32 %s11, %s18
    %p135 = scmp.eq.s32.totalorder %s134, 0
    %s137 = sadd.s32 %s136, 1
    %s138 = scalar_select %p135, %s136, %s137
    %p141 = pneg %p135
    %p142 = scmp.eq.s32.totalorder %s11, 3
    %p143 = por %p141, %p142
    %p144 = scmp.ne.s32.totalorder %s136, %s139
    %p145 = scmp.eq.s32.totalorder %s11, 0
    %p146 = por %p144, %p145
    %p147 = scmp.ne.s32.totalorder %s136, %s139
    %p148 = scmp.eq.s32.totalorder %s16, 3
    %p149 = por %p147, %p148
    %p150 = scmp.ne.s32.totalorder %s139, %s140
    %p151 = scmp.eq.s32.totalorder %s16, 0
    %p152 = por %p150, %p151
    %p153 = scmp.ne.s32.totalorder %s139, %s140
    %p154 = scmp.eq.s32.totalorder %s17, 3
    %p155 = por %p153, %p154
    %p157 = scmp.ne.s32.totalorder %s140, %s156
    %p158 = scmp.eq.s32.totalorder %s17, 0
    %p159 = por %p157, %p158
    %p160 = scmp.le.s32.totalorder 1, %s11
    %p161 = scmp.lt.s32.totalorder %s11, 5
    %p162 = pnand %p160, %p161
    %p163 = pneg %p162
    // Predicated region
    $region9: #{forward.32} parent=5 // pred_check
      _
    $region10: #{forward.32} parent=5 // pred_check_branch
      %165 = sbr.rel (%p162) target = $region12
    $region11: #{forward.32} parent=5 // pred_region
      %s166 = ssub.s32 %s11, 1
      // Predicated region
      $region13: #{forward.32} parent=11 // pred_check
        %p167 = pneg %p84
      $region14: #{forward.32} parent=11 // pred_check_branch
        %169 = sbr.rel (%p167) target = $region16
      $region15: #{forward.32} parent=11 // pred_region
        _
      $region16: #{forward.32} parent=11 // pred_fallthru
        _
      // Predicated region
      $region17: #{forward.32} parent=11 // pred_check
        %p170 = pneg %p105
      $region18: #{forward.32} parent=11 // pred_check_branch
        %172 = sbr.rel (%p170) target = $region20
      $region19: #{forward.32} parent=11 // pred_region
        _
      $region20: #{forward.32} parent=11 // pred_fallthru
        _
      // Predicated region
      $region21: #{forward.32} parent=11 // pred_check
        %p173 = pneg %p126
      $region22: #{forward.32} parent=11 // pred_check_branch
        %175 = sbr.rel (%p173) target = $region24
      $region23: #{forward.32} parent=11 // pred_region
        _
      $region24: #{forward.32} parent=11 // pred_fallthru
        _
    $region12: #{forward.32} parent=5 // pred_fallthru
      _
    %p176 = scmp.lt.s32.totalorder %s11, 4
    // Predicated region
    $region25: #{forward.32} parent=5 // pred_check
      %p177 = pneg %p176
    $region26: #{forward.32} parent=5 // pred_check_branch
      %179 = sbr.rel (%p177) target = $region28
    $region27: #{forward.32} parent=5 // pred_region
      // Predicated region
      $region29: #{forward.32} parent=27 // pred_check
        %p180 = pneg %p31
      $region30: #{forward.32} parent=27 // pred_check_branch
        %182 = sbr.rel (%p180) target = $region32
      $region31: #{forward.32} parent=27 // pred_region
        %p183 = scmp.lt.s32.totalorder %s11, 3
        %s184 = scalar_select %p183, %s11, 3
        %s185 = smul.addr %s184, 8
        %s186 = scalar_lea.vmem %s0, %s185
      $region32: #{forward.32} parent=27 // pred_fallthru
        _
      // Predicated region
      $region33: #{forward.32} parent=27 // pred_check
        %p187 = pneg %p57
      $region34: #{forward.32} parent=27 // pred_check_branch
        %189 = sbr.rel (%p187) target = $region36
      $region35: #{forward.32} parent=27 // pred_region
        %p190 = scmp.lt.s32.totalorder %s11, 3
        %s191 = scalar_select %p190, %s11, 3
        %s192 = smul.addr %s191, 8
        %s193 = scalar_lea.vmem %s1, %s192
      $region36: #{forward.32} parent=27 // pred_fallthru
        _
    $region28: #{forward.32} parent=5 // pred_fallthru
      _
    %p194 = scmp.le.s32.totalorder 1, %s11
    %p195 = scmp.lt.s32.totalorder %s11, 5
    %p196 = pnand %p194, %p195
    %p197 = pneg %p196
    // Predicated region
    $region37: #{forward.32} parent=5 // pred_check
      _
    $region38: #{forward.32} parent=5 // pred_check_branch
      %199 = sbr.rel (%p196) target = $region40
    $region39: #{forward.32} parent=5 // pred_region
      %s200 = ssub.s32 %s11, 1
      %p201 = scmp.lt.s32.totalorder %s16, 3
      %s202 = scalar_select %p201, %s16, 3
      %s203 = smul.addr %s202, 8
      %s204 = scalar_lea.vmem %s0, %s203
      %p205 = pneg %p37
      %p206 = pneg %p34
      %p207 = scmp.lt.s32.totalorder %s16, 3
      %s208 = scalar_select %p207, %s16, 3
      %s209 = smul.addr %s208, 8
      %s210 = scalar_lea.vmem %s1, %s209
      %p211 = pneg %p63
      %p212 = pneg %p60
      %p213 = pneg %p84
      %p214 = pneg %p81
      %p215 = pneg %p105
      %p216 = pneg %p102
      %p217 = pneg %p126
      %p218 = pneg %p123
      %p219 = pneg %p152
      %p220 = pneg %p149
      %p221 = scmp.lt.s32.totalorder %s16, 3
      %s222 = scalar_select %p221, %s16, 3
      %s223 = smul.addr %s222, 4
      %s224 = scalar_lea.vmem %s5, %s223
      %p225 = scmp.lt.s32.totalorder %s16, 3
      %s226 = scalar_select %p225, %s16, 3
      %s227 = smul.addr %s226, 8
      %s228 = scalar_lea.vmem %s0, %s227
      %p229 = scmp.lt.s32.totalorder %s16, 3
      %s230 = scalar_select %p229, %s16, 3
      %s231 = smul.addr %s230, 8
      %s232 = scalar_lea.vmem %s1, %s231
      %p233 = scmp.lt.s32.totalorder %s16, 3
      %s234 = scalar_select %p233, %s16, 3
      %s235 = smul.addr %s234, 4
      %s236 = scalar_lea.vmem %s5, %s235
      %v237 = vld [vmem:[%s228] sm:$0xff]
      %v238 = vld [vmem:[%s232] sm:$0xff]
      %v239 = vadd.f32 %v237, %v238
      %v240 = vld [vmem:[%s2] sm:$0xff]
      %v241 = vadd.f32 %v239, %v240
      %vm242 = vcmask 261120
      %v243 = vsel %vm242, %v241, 0.0
      %244 = vadd.xlane.f32.xlu0 %v243
      %v245 = vpop.xlane.xlu0 %244
      %v246 = vrcp.pop 32.0
      %v247 = vmul.f32 32.0, %v246
      %v248 = vsub.f32 1.0, %v247
      %v249 = vmul.f32 %v246, %v248
      %v250 = vadd.f32 %v246, %v249
      %vm251 = vweird.f32 %v246
      %v252 = vsel %vm251, %v246, %v250
      %v253 = vmul.f32 %v245, %v252
      %v254 = vsub.f32 %v241, %v253
      %v255 = vmul.f32 %v254, %v254
      %v256 = vsel %vm242, %v255, 0.0
      %257 = vadd.xlane.f32.xlu0 %v256
      %v258 = vpop.xlane.xlu0 %257
      %v259 = vmul.f32 %v258, %v252
      %v260 = vadd.f32 %v259, 1e-12
      %v261 = vrsqrt.pop %v260
      %v262 = vmul.f32 %v261, %v260
      %v263 = vmul.f32 %v262, %v261
      %v264 = vmul.f32 0.5, %v263
      %v265 = vsub.f32 1.5, %v264
      %v266 = vmul.f32 %v261, %v265
      %vm267 = vweird.f32 %v260
      %vm268 = vweird.f32 %v261
      %vm269 = vmor %vm267, %vm268
      %v270 = vsel %vm269, %v261, %v266
      %v271 = vmul.f32 %v254, %v270
      %v272 = vld [vmem:[%s3] sm:$0x1]
      %v274 = vperm.slane %v272, 0
      %v276 = vmul.f32 %v271, %v274
      %v277 = vld [vmem:[%s4] sm:$0x1]
      %v279 = vperm.slane %v277, 0
      %v281 = vadd.f32 %v276, %v279
      %v282 = vpack.c.bf16 %v281, %v281
      %vm283 = vcmask 257024
      %284 = vst.msk [vmem:[%s236] sm:$0xf] %vm283, %v282
      %p285 = scmp.lt.s32.totalorder %s16, 3
      %s286 = scalar_select %p285, %s16, 3
      %s287 = smul.addr %s286, 4
      %s288 = scalar_lea.vmem %s5, %s287
      // Predicated region
      $region41: #{forward.32} parent=39 // pred_check
        %p289 = pneg %p149
      $region42: #{forward.32} parent=39 // pred_check_branch
        %291 = sbr.rel (%p289) target = $region44
      $region43: #{forward.32} parent=39 // pred_region
        _
      $region44: #{forward.32} parent=39 // pred_fallthru
        _
    $region40: #{forward.32} parent=5 // pred_fallthru
      _
    %p292 = scmp.le.s32.totalorder 2, %s11
    // Predicated region
    $region45: #{forward.32} parent=5 // pred_check
      %p293 = pneg %p292
    $region46: #{forward.32} parent=5 // pred_check_branch
      %295 = sbr.rel (%p293) target = $region48
    $region47: #{forward.32} parent=5 // pred_region
      %s296 = ssub.s32 %s11, 2
      // Predicated region
      $region49: #{forward.32} parent=47 // pred_check
        %p297 = pneg %p155
      $region50: #{forward.32} parent=47 // pred_check_branch
        %299 = sbr.rel (%p297) target = $region52
      $region51: #{forward.32} parent=47 // pred_region
        %p300 = scmp.lt.s32.totalorder %s17, 3
        %s301 = scalar_select %p300, %s17, 3
        %s302 = smul.addr %s301, 4
        %s303 = scalar_lea.vmem %s5, %s302
      $region52: #{forward.32} parent=47 // pred_fallthru
        _
    $region48: #{forward.32} parent=5 // pred_fallthru
      _
  $region6: #{forward.32} parent=0 // loop_footer
    %s15 = sadd.s32 1, %s11
  $region7: #{forward.32} parent=0 // loop_footer_branch
    %10 = sbr.rel target = $region3
  $region8: #{forward.32} parent=0 // loop_exit
    _

// kernel: forward.33
$region0: #{forward.33}
  #allocation0 [shape = 'u32[]', space=smem, size = 0x4, offset = 0x4, fixed_abs, tag = 'smem constant byte address 0x4 - core index']
  #allocation1 [shape = 'u32[72,128]{1,0:T(1,128)}', space=vmem, size = 0x9000, scoped, tag = 'internal scratch']
  %s0 = inlined_call_operand.vmem [shape: bf16[32,32], index: 0, kind: input, shape index: {}]
  %s1 = inlined_call_operand.vmem [shape: bf16[32,96], index: 1, kind: input, shape index: {}]
  %s2 = inlined_call_operand.vmem [shape: f32[1,96], index: 2, kind: input, shape index: {}]
  %s3 = inlined_call_operand.vmem [shape: bf16[32,32], index: 3, kind: output, shape index: {0}]
  %s4 = inlined_call_operand.vmem [shape: bf16[32,32], index: 4, kind: output, shape index: {1}]
  %s5 = inlined_call_operand.vmem [shape: bf16[32,32], index: 5, kind: output, shape index: {2}]
  %6 = xla_tuple %s3, %s4, %s5
  %s7 = sld [smem:[#allocation0]]
  $region38: #{forward.33} parent=0
    _
  %s9 = ssub.s32 1, %s7
  %s10 = scalar_select 0, %s9, %s7
  // Predicated region
  $region2: #{forward.33} parent=0 // pred_check
    _
  $region3: #{forward.33} parent=0 // pred_check_branch
    %12 = sbr.rel (0) target = $region5
  $region4: #{forward.33} parent=0 // pred_region
    _
  $region5: #{forward.33} parent=0 // pred_fallthru
    _
  // Predicated region
  $region6: #{forward.33} parent=0 // pred_check
    _
  $region7: #{forward.33} parent=0 // pred_check_branch
    %14 = sbr.rel (0) target = $region9
  $region8: #{forward.33} parent=0 // pred_region
    _
  $region9: #{forward.33} parent=0 // pred_fallthru
    _
  // Predicated region
  $region10: #{forward.33} parent=0 // pred_check
    _
  $region11: #{forward.33} parent=0 // pred_check_branch
    %16 = sbr.rel (0) target = $region13
  $region12: #{forward.33} parent=0 // pred_region
    _
  $region13: #{forward.33} parent=0 // pred_fallthru
    _
  %v18 = vld [vmem:[%s0] sm:$0xf]
  %v19 = vld [vmem:[%s0 + $0x4] sm:$0xf]
  %v20 = vld [vmem:[%s0 + $0x8] sm:$0xf]
  %v21 = vld [vmem:[%s0 + $0xc] sm:$0xf]
  %v22 = vld [vmem:[%s1] sm:$0xf]
  %v23 = vld [vmem:[%s1 + $0x4] sm:$0xf]
  %v24 = vld [vmem:[%s1 + $0x8] sm:$0xf]
  %v25 = vld [vmem:[%s1 + $0xc] sm:$0xf]
  %v26 = vld [vmem:[%s2] sm:$0x1]
  %v28 = vperm.slane %v26, 0
  %v34 = vunpack.c.l.b16 %v18
  %v35 = vunpack.c.l.b16 %v19
  %v36 = vunpack.c.l.b16 %v20
  %v37 = vunpack.c.l.b16 %v21
  %v38 = vpack.c.b16 %v35, %v34
  %v39 = vpack.c.b16 %v37, %v36
  %v44 = vunpack.c.l.b16 %v22
  %v45 = vunpack.c.l.b16 %v23
  %v46 = vunpack.c.l.b16 %v24
  %v47 = vunpack.c.l.b16 %v25
  %v48 = vpack.c.b16 %v45, %v44
  %v49 = vpack.c.b16 %v47, %v46
  %vm52 = vcmask 261120
  %v54 = vsel %vm52, %v38, 0
  %v57 = vsel %vm52, %v39, 0
  %59 = vmatpush.bf16.msra.mxu0 0
  %60 = vmatpush.bf16.msra.mxu0 0
  %61 = vmatpush.bf16.msra.mxu0 0
  %62 = vmatpush.bf16.msra.mxu0 0
  %63 = vmatpush.bf16.msra.mxu0 0
  %64 = vmatpush.bf16.msra.mxu0 0
  %65 = vmatpush.bf16.msra.mxu0 %v49
  %66 = vmatpush.bf16.msra.mxu0 %v48
  %67 = vmatmul.bf16.gmra.mxu0 %v54
  %v68 = vpop.f32.mrf.mxu0
  %v69 = vadd.f32 %v28, %v68
  %v70 = vpop.f32.mrf.mxu0
  %v71 = vadd.f32 %v28, %v70
  %72 = vmatmul.bf16.gmra.mxu0 %v57
  %v73 = vpop.f32.mrf.mxu0
  %v74 = vadd.f32 %v28, %v73
  %v75 = vpop.f32.mrf.mxu0
  %v76 = vadd.f32 %v28, %v75
  %77 = vdwg.mxu0
  %v78 = vmul.f32 %v69, 0.25
  %v79 = vmul.f32 %v71, 0.25
  %v80 = vmul.f32 %v74, 0.25
  %v81 = vmul.f32 %v76, 0.25
  %v82 = vpack.c.bf16 %v78, %v78
  %v83 = vpack.c.bf16 %v79, %v79
  %v84 = vpack.c.bf16 %v80, %v80
  %v85 = vpack.c.bf16 %v81, %v81
  %vm86 = vcmask 257024
  %87 = vst.msk [vmem:[%s3] sm:$0xf] %vm86, %v82
  %88 = vst.msk [vmem:[%s3 + $0x4] sm:$0xf] %vm86, %v83
  %89 = vst.msk [vmem:[%s3 + $0x8] sm:$0xf] %vm86, %v84
  %90 = vst.msk [vmem:[%s3 + $0xc] sm:$0xf] %vm86, %v85
  %v91 = vpack.c.bf16 %v69, %v69
  %v92 = vpack.c.bf16 %v71, %v71
  %v93 = vpack.c.bf16 %v74, %v74
  %v94 = vpack.c.bf16 %v76, %v76
  %99 = vrot.lane.b32.xlu0 %v91, 96
  %v100 = vpop.permute.xlu0 %99
  %101 = vrot.lane.b32.xlu0 %v92, 96
  %v102 = vpop.permute.xlu0 %101
  %103 = vrot.lane.b32.xlu0 %v93, 96
  %v104 = vpop.permute.xlu0 %103
  %105 = vrot.lane.b32.xlu0 %v94, 96
  %v106 = vpop.permute.xlu0 %105
  %111 = vst.msk [vmem:[%s4] sm:$0xf] %vm86, %v100
  %112 = vst.msk [vmem:[%s4 + $0x4] sm:$0xf] %vm86, %v102
  %113 = vst.msk [vmem:[%s4 + $0x8] sm:$0xf] %vm86, %v104
  %114 = vst.msk [vmem:[%s4 + $0xc] sm:$0xf] %vm86, %v106
  %115 = vrot.lane.b32.xlu0 %v91, 64
  %v116 = vpop.permute.xlu0 %115
  %117 = vrot.lane.b32.xlu0 %v92, 64
  %v118 = vpop.permute.xlu0 %117
  %119 = vrot.lane.b32.xlu0 %v93, 64
  %v120 = vpop.permute.xlu0 %119
  %121 = vrot.lane.b32.xlu0 %v94, 64
  %v122 = vpop.permute.xlu0 %121
  %127 = vst.msk [vmem:[%s5] sm:$0xf] %vm86, %v116
  %128 = vst.msk [vmem:[%s5 + $0x4] sm:$0xf] %vm86, %v118
  %129 = vst.msk [vmem:[%s5 + $0x8] sm:$0xf] %vm86, %v120
  %130 = vst.msk [vmem:[%s5 + $0xc] sm:$0xf] %vm86, %v122
  // Predicated region
  $region14: #{forward.33} parent=0 // pred_check
    _
  $region15: #{forward.33} parent=0 // pred_check_branch
    %132 = sbr.rel (0) target = $region17
  $region16: #{forward.33} parent=0 // pred_region
    _
  $region17: #{forward.33} parent=0 // pred_fallthru
    _
  // Predicated region
  $region18: #{forward.33} parent=0 // pred_check
    _
  $region19: #{forward.33} parent=0 // pred_check_branch
    %134 = sbr.rel (0) target = $region21
  $region20: #{forward.33} parent=0 // pred_region
    _
  $region21: #{forward.33} parent=0 // pred_fallthru
    _
  // Predicated region
  $region22: #{forward.33} parent=0 // pred_check
    _
  $region23: #{forward.33} parent=0 // pred_check_branch
    %136 = sbr.rel (0) target = $region25
  $region24: #{forward.33} parent=0 // pred_region
    _
  $region25: #{forward.33} parent=0 // pred_fallthru
    _
  // Predicated region
  $region26: #{forward.33} parent=0 // pred_check
    _
  $region27: #{forward.33} parent=0 // pred_check_branch
    %138 = sbr.rel (0) target = $region29
  $region28: #{forward.33} parent=0 // pred_region
    _
  $region29: #{forward.33} parent=0 // pred_fallthru
    _
  // Predicated region
  $region30: #{forward.33} parent=0 // pred_check
    _
  $region31: #{forward.33} parent=0 // pred_check_branch
    %140 = sbr.rel (0) target = $region33
  $region32: #{forward.33} parent=0 // pred_region
    _
  $region33: #{forward.33} parent=0 // pred_fallthru
    _
  // Predicated region
  $region34: #{forward.33} parent=0 // pred_check
    _
  $region35: #{forward.33} parent=0 // pred_check_branch
    %142 = sbr.rel (0) target = $region37
  $region36: #{forward.33} parent=0 // pred_region
    _
  $region37: #{forward.33} parent=0 // pred_fallthru
    _

// kernel: forward.34
$region0: #{forward.34}
  #allocation0 [shape = 'u32[]', space=smem, size = 0x4, offset = 0x4, fixed_abs, tag = 'smem constant byte address 0x4 - core index']
  #allocation1 [shape = 'u32[72,128]{1,0:T(1,128)}', space=vmem, size = 0x9000, scoped, tag = 'internal scratch']
  %s0 = inlined_call_operand.vmem [shape: bf16[4,8,32], index: 0, kind: input, shape index: {}]
  %s1 = inlined_call_operand.vmem [shape: bf16[4,8,32], index: 1, kind: input, shape index: {}]
  %s2 = inlined_call_operand.vmem [shape: bf16[4,8,32], index: 2, kind: input, shape index: {}]
  %s3 = inlined_call_operand.vmem [shape: f32[4,1,8], index: 3, kind: input, shape index: {}]
  %s4 = inlined_call_operand.vmem [shape: bf16[4,8,32], index: 4, kind: output, shape index: {}]
  %s5 = sld [smem:[#allocation0]]
  $region49: #{forward.34} parent=0
    _
  %s7 = ssub.s32 1, %s5
  %s8 = scalar_select 0, %s7, %s5
  loop: start=0, step=1, limit=6
  $region2: #{forward.34} parent=0 // loop_pre_header
    _
  $region3: #{forward.34} parent=0 // loop_header
    %s10 = sphi 0, %s14
    %p11 = scmp.ge.s32.totalorder %s10, 6
    %s17 = sphi 0, %s36
    %s18 = sphi 0, %s32
    %s19 = sphi 0, %s28
    %s20 = sphi 0, %s17
    %s21 = sphi 0, %s18
    %s22 = sphi 0, %s19
    %s23 = sphi 0, %s20
    %s24 = sphi 0, %s21
    %s25 = sphi 0, %s22
    %s43 = sphi 0, %s45
    %s46 = sphi 0, %s43
    %s47 = sphi 0, %s46
    %s63 = sphi 0, %s47
    %s71 = sphi 0, %s73
    %s74 = sphi 0, %s71
    %s75 = sphi 0, %s74
    %s91 = sphi 0, %s75
    %s99 = sphi 0, %s101
    %s102 = sphi 0, %s99
    %s103 = sphi 0, %s102
    %s119 = sphi 0, %s103
    %s125 = sphi 0, %s127
    %s128 = sphi 0, %s125
    %s129 = sphi 0, %s128
    %s145 = sphi 0, %s129
    %s155 = sphi 0, %s157
    %s158 = sphi 0, %s155
    %s159 = sphi 0, %s158
    %s175 = sphi 0, %s159
  $region4: #{forward.34} parent=0 // loop_header_branch
    %13 = sbr.rel (%p11) target = $region8
  $region5: #{forward.34} parent=0 // loop_body
    %s15 = ssub.s32 %s10, 1
    %s16 = ssub.s32 %s10, 2
    %s26 = sadd.s32 1, %s19
    %p27 = scmp.ge.s32.totalorder %s26, 1
    %s28 = scalar_select %p27, 0, %s26
    %s29 = sadd.s32 1, %s18
    %s30 = scalar_select %p27, %s29, %s18
    %p31 = scmp.ge.s32.totalorder %s30, 1
    %s32 = scalar_select %p31, 0, %s30
    %s33 = sadd.s32 1, %s17
    %s34 = scalar_select %p31, %s33, %s17
    %p35 = scmp.ge.s32.totalorder %s34, 4
    %s36 = scalar_select %p35, 0, %s34
    %s37 = ssub.s32 %s17, %s36
    %s38 = ssub.s32 %s19, %s28
    %s39 = sor.u32 %s37, %s38
    %s40 = ssub.s32 %s18, %s32
    %s41 = sor.u32 %s39, %s40
    %p42 = scmp.eq.s32.totalorder %s41, 0
    %s44 = sadd.s32 %s43, 1
    %s45 = scalar_select %p42, %s43, %s44
    %p48 = pneg %p42
    %p49 = scmp.eq.s32.totalorder %s10, 3
    %p50 = por %p48, %p49
    %p51 = scmp.ne.s32.totalorder %s43, %s46
    %p52 = scmp.eq.s32.totalorder %s10, 0
    %p53 = por %p51, %p52
    %p54 = scmp.ne.s32.totalorder %s43, %s46
    %p55 = scmp.eq.s32.totalorder %s15, 3
    %p56 = por %p54, %p55
    %p57 = scmp.ne.s32.totalorder %s46, %s47
    %p58 = scmp.eq.s32.totalorder %s15, 0
    %p59 = por %p57, %p58
    %p60 = scmp.ne.s32.totalorder %s46, %s47
    %p61 = scmp.eq.s32.totalorder %s16, 3
    %p62 = por %p60, %p61
    %p64 = scmp.ne.s32.totalorder %s47, %s63
    %p65 = scmp.eq.s32.totalorder %s16, 0
    %p66 = por %p64, %p65
    %s67 = ssub.s32 %s17, %s36
    %s68 = ssub.s32 %s18, %s32
    %s69 = sor.u32 %s67, %s68
    %p70 = scmp.eq.s32.totalorder %s69, 0
    %s72 = sadd.s32 %s71, 1
    %s73 = scalar_select %p70, %s71, %s72
    %p76 = pneg %p70
    %p77 = scmp.eq.s32.totalorder %s10, 3
    %p78 = por %p76, %p77
    %p79 = scmp.ne.s32.totalorder %s71, %s74
    %p80 = scmp.eq.s32.totalorder %s10, 0
    %p81 = por %p79, %p80
    %p82 = scmp.ne.s32.totalorder %s71, %s74
    %p83 = scmp.eq.s32.totalorder %s15, 3
    %p84 = por %p82, %p83
    %p85 = scmp.ne.s32.totalorder %s74, %s75
    %p86 = scmp.eq.s32.totalorder %s15, 0
    %p87 = por %p85, %p86
    %p88 = scmp.ne.s32.totalorder %s74, %s75
    %p89 = scmp.eq.s32.totalorder %s16, 3
    %p90 = por %p88, %p89
    %p92 = scmp.ne.s32.totalorder %s75, %s91
    %p93 = scmp.eq.s32.totalorder %s16, 0
    %p94 = por %p92, %p93
    %s95 = ssub.s32 %s17, %s36
    %s96 = ssub.s32 %s18, %s32
    %s97 = sor.u32 %s95, %s96
    %p98 = scmp.eq.s32.totalorder %s97, 0
    %s100 = sadd.s32 %s99, 1
    %s101 = scalar_select %p98, %s99, %s100
    %p104 = pneg %p98
    %p105 = scmp.eq.s32.totalorder %s10, 3
    %p106 = por %p104, %p105
    %p107 = scmp.ne.s32.totalorder %s99, %s102
    %p108 = scmp.eq.s32.totalorder %s10, 0
    %p109 = por %p107, %p108
    %p110 = scmp.ne.s32.totalorder %s99, %s102
    %p111 = scmp.eq.s32.totalorder %s15, 3
    %p112 = por %p110, %p111
    %p113 = scmp.ne.s32.totalorder %s102, %s103
    %p114 = scmp.eq.s32.totalorder %s15, 0
    %p115 = por %p113, %p114
    %p116 = scmp.ne.s32.totalorder %s102, %s103
    %p117 = scmp.eq.s32.totalorder %s16, 3
    %p118 = por %p116, %p117
    %p120 = scmp.ne.s32.totalorder %s103, %s119
    %p121 = scmp.eq.s32.totalorder %s16, 0
    %p122 = por %p120, %p121
    %s123 = ssub.s32 %s17, %s36
    %p124 = scmp.eq.s32.totalorder %s123, 0
    %s126 = sadd.s32 %s125, 1
    %s127 = scalar_select %p124, %s125, %s126
    %p130 = pneg %p124
    %p131 = scmp.eq.s32.totalorder %s10, 3
    %p132 = por %p130, %p131
    %p133 = scmp.ne.s32.totalorder %s125, %s128
    %p134 = scmp.eq.s32.totalorder %s10, 0
    %p135 = por %p133, %p134
    %p136 = scmp.ne.s32.totalorder %s125, %s128
    %p137 = scmp.eq.s32.totalorder %s15, 3
    %p138 = por %p136, %p137
    %p139 = scmp.ne.s32.totalorder %s128, %s129
    %p140 = scmp.eq.s32.totalorder %s15, 0
    %p141 = por %p139, %p140
    %p142 = scmp.ne.s32.totalorder %s128, %s129
    %p143 = scmp.eq.s32.totalorder %s16, 3
    %p144 = por %p142, %p143
    %p146 = scmp.ne.s32.totalorder %s129, %s145
    %p147 = scmp.eq.s32.totalorder %s16, 0
    %p148 = por %p146, %p147
    %s149 = ssub.s32 %s17, %s36
    %s150 = ssub.s32 %s19, %s28
    %s151 = sor.u32 %s149, %s150
    %s152 = ssub.s32 %s18, %s32
    %s153 = sor.u32 %s151, %s152
    %p154 = scmp.eq.s32.totalorder %s153, 0
    %s156 = sadd.s32 %s155, 1
    %s157 = scalar_select %p154, %s155, %s156
    %p160 = pneg %p154
    %p161 = scmp.eq.s32.totalorder %s10, 3
    %p162 = por %p160, %p161
    %p163 = scmp.ne.s32.totalorder %s155, %s158
    %p164 = scmp.eq.s32.totalorder %s10, 0
    %p165 = por %p163, %p164
    %p166 = scmp.ne.s32.totalorder %s155, %s158
    %p167 = scmp.eq.s32.totalorder %s15, 3
    %p168 = por %p166, %p167
    %p169 = scmp.ne.s32.totalorder %s158, %s159
    %p170 = scmp.eq.s32.totalorder %s15, 0
    %p171 = por %p169, %p170
    %p172 = scmp.ne.s32.totalorder %s158, %s159
    %p173 = scmp.eq.s32.totalorder %s16, 3
    %p174 = por %p172, %p173
    %p176 = scmp.ne.s32.totalorder %s159, %s175
    %p177 = scmp.eq.s32.totalorder %s16, 0
    %p178 = por %p176, %p177
    %p179 = scmp.le.s32.totalorder 1, %s10
    %p180 = scmp.lt.s32.totalorder %s10, 5
    %p181 = pnand %p179, %p180
    %p182 = pneg %p181
    // Predicated region
    $region9: #{forward.34} parent=5 // pred_check
      _
    $region10: #{forward.34} parent=5 // pred_check_branch
      %184 = sbr.rel (%p181) target = $region12
    $region11: #{forward.34} parent=5 // pred_region
      %s185 = ssub.s32 %s10, 1
    $region12: #{forward.34} parent=5 // pred_fallthru
      _
    %p186 = scmp.lt.s32.totalorder %s10, 4
    // Predicated region
    $region13: #{forward.34} parent=5 // pred_check
      %p187 = pneg %p186
    $region14: #{forward.34} parent=5 // pred_check_branch
      %189 = sbr.rel (%p187) target = $region16
    $region15: #{forward.34} parent=5 // pred_region
      // Predicated region
      $region17: #{forward.34} parent=15 // pred_check
        %p190 = pneg %p53
      $region18: #{forward.34} parent=15 // pred_check_branch
        %192 = sbr.rel (%p190) target = $region20
      $region19: #{forward.34} parent=15 // pred_region
        %p193 = scmp.lt.s32.totalorder %s17, 3
        %s194 = scalar_select %p193, %s17, 3
        %p195 = scmp.lt.s32.totalorder %s19, 0
        %s196 = scalar_select %p195, %s19, 0
        %p197 = scmp.lt.s32.totalorder %s18, 0
        %s198 = scalar_select %p197, %s18, 0
        %s199 = sadd.s32 %s198, %s196
        %s200 = sadd.s32 %s199, %s194
        %s201 = smul.addr %s200, 4
        %s202 = scalar_lea.vmem %s0, %s201
      $region20: #{forward.34} parent=15 // pred_fallthru
        _
      // Predicated region
      $region21: #{forward.34} parent=15 // pred_check
        %p203 = pneg %p81
      $region22: #{forward.34} parent=15 // pred_check_branch
        %205 = sbr.rel (%p203) target = $region24
      $region23: #{forward.34} parent=15 // pred_region
        %p206 = scmp.lt.s32.totalorder %s17, 3
        %s207 = scalar_select %p206, %s17, 3
        %p208 = scmp.lt.s32.totalorder %s18, 0
        %s209 = scalar_select %p208, %s18, 0
        %s210 = sadd.s32 %s209, %s207
        %s211 = smul.addr %s210, 4
        %s212 = scalar_lea.vmem %s1, %s211
      $region24: #{forward.34} parent=15 // pred_fallthru
        _
      // Predicated region
      $region25: #{forward.34} parent=15 // pred_check
        %p213 = pneg %p109
      $region26: #{forward.34} parent=15 // pred_check_branch
        %215 = sbr.rel (%p213) target = $region28
      $region27: #{forward.34} parent=15 // pred_region
        %p216 = scmp.lt.s32.totalorder %s17, 3
        %s217 = scalar_select %p216, %s17, 3
        %p218 = scmp.lt.s32.totalorder %s18, 0
        %s219 = scalar_select %p218, %s18, 0
        %s220 = sadd.s32 %s219, %s217
        %s221 = smul.addr %s220, 4
        %s222 = scalar_lea.vmem %s2, %s221
      $region28: #{forward.34} parent=15 // pred_fallthru
        _
      // Predicated region
      $region29: #{forward.34} parent=15 // pred_check
        %p223 = pneg %p135
      $region30: #{forward.34} parent=15 // pred_check_branch
        %225 = sbr.rel (%p223) target = $region32
      $region31: #{forward.34} parent=15 // pred_region
        %p226 = scmp.lt.s32.totalorder %s17, 3
        %s227 = scalar_select %p226, %s17, 3
        %s228 = scalar_lea.vmem %s3, %s227
      $region32: #{forward.34} parent=15 // pred_fallthru
        _
    $region16: #{forward.34} parent=5 // pred_fallthru
      _
    %p229 = scmp.le.s32.totalorder 1, %s10
    %p230 = scmp.lt.s32.totalorder %s10, 5
    %p231 = pnand %p229, %p230
    %p232 = pneg %p231
    // Predicated region
    $region33: #{forward.34} parent=5 // pred_check
      _
    $region34: #{forward.34} parent=5 // pred_check_branch
      %234 = sbr.rel (%p231) target = $region36
    $region35: #{forward.34} parent=5 // pred_region
      %s235 = ssub.s32 %s10, 1
      %p236 = scmp.lt.s32.totalorder %s20, 3
      %s237 = scalar_select %p236, %s20, 3
      %p238 = scmp.lt.s32.totalorder %s22, 0
      %s239 = scalar_select %p238, %s22, 0
      %p240 = scmp.lt.s32.totalorder %s21, 0
      %s241 = scalar_select %p240, %s21, 0
      %s242 = sadd.s32 %s241, %s239
      %s243 = sadd.s32 %s242, %s237
      %s244 = smul.addr %s243, 4
      %s245 = scalar_lea.vmem %s0, %s244
      %p246 = pneg %p59
      %p247 = pneg %p56
      %p248 = scmp.lt.s32.totalorder %s20, 3
      %s249 = scalar_select %p248, %s20, 3
      %p250 = scmp.lt.s32.totalorder %s21, 0
      %s251 = scalar_select %p250, %s21, 0
      %s252 = sadd.s32 %s251, %s249
      %s253 = smul.addr %s252, 4
      %s254 = scalar_lea.vmem %s1, %s253
      %p255 = pneg %p87
      %p256 = pneg %p84
      %p257 = scmp.lt.s32.totalorder %s20, 3
      %s258 = scalar_select %p257, %s20, 3
      %p259 = scmp.lt.s32.totalorder %s21, 0
      %s260 = scalar_select %p259, %s21, 0
      %s261 = sadd.s32 %s260, %s258
      %s262 = smul.addr %s261, 4
      %s263 = scalar_lea.vmem %s2, %s262
      %p264 = pneg %p115
      %p265 = pneg %p112
      %p266 = scmp.lt.s32.totalorder %s20, 3
      %s267 = scalar_select %p266, %s20, 3
      %s268 = scalar_lea.vmem %s3, %s267
      %p269 = pneg %p141
      %p270 = pneg %p138
      %p271 = pneg %p171
      %p272 = pneg %p168
      %p273 = scmp.lt.s32.totalorder %s20, 3
      %s274 = scalar_select %p273, %s20, 3
      %p275 = scmp.lt.s32.totalorder %s22, 0
      %s276 = scalar_select %p275, %s22, 0
      %p277 = scmp.lt.s32.totalorder %s21, 0
      %s278 = scalar_select %p277, %s21, 0
      %s279 = sadd.s32 %s278, %s276
      %s280 = sadd.s32 %s279, %s274
      %s281 = smul.addr %s280, 4
      %s282 = scalar_lea.vmem %s4, %s281
      %p283 = scmp.lt.s32.totalorder %s20, 3
      %s284 = scalar_select %p283, %s20, 3
      %p285 = scmp.lt.s32.totalorder %s22, 0
      %s286 = scalar_select %p285, %s22, 0
      %p287 = scmp.lt.s32.totalorder %s21, 0
      %s288 = scalar_select %p287, %s21, 0
      %s289 = sadd.s32 %s288, %s286
      %s290 = sadd.s32 %s289, %s284
      %s291 = smul.addr %s290, 4
      %s292 = scalar_lea.vmem %s0, %s291
      %p293 = scmp.lt.s32.totalorder %s20, 3
      %s294 = scalar_select %p293, %s20, 3
      %p295 = scmp.lt.s32.totalorder %s21, 0
      %s296 = scalar_select %p295, %s21, 0
      %s297 = sadd.s32 %s296, %s294
      %s298 = smul.addr %s297, 4
      %s299 = scalar_lea.vmem %s1, %s298
      %p300 = scmp.lt.s32.totalorder %s20, 3
      %s301 = scalar_select %p300, %s20, 3
      %p302 = scmp.lt.s32.totalorder %s21, 0
      %s303 = scalar_select %p302, %s21, 0
      %s304 = sadd.s32 %s303, %s301
      %s305 = smul.addr %s304, 4
      %s306 = scalar_lea.vmem %s2, %s305
      %p307 = scmp.lt.s32.totalorder %s20, 3
      %s308 = scalar_select %p307, %s20, 3
      %s309 = scalar_lea.vmem %s3, %s308
      %p310 = scmp.lt.s32.totalorder %s20, 3
      %s311 = scalar_select %p310, %s20, 3
      %p312 = scmp.lt.s32.totalorder %s22, 0
      %s313 = scalar_select %p312, %s22, 0
      %p314 = scmp.lt.s32.totalorder %s21, 0
      %s315 = scalar_select %p314, %s21, 0
      %s316 = sadd.s32 %s315, %s313
      %s317 = sadd.s32 %s316, %s311
      %s318 = smul.addr %s317, 4
      %s319 = scalar_lea.vmem %s4, %s318
      %v321 = vld [vmem:[%s309] sm:$0x1]
      %v322 = vld [vmem:[%s292] sm:$0xf]
      %v323 = vld [vmem:[%s299] sm:$0xf]
      %v324 = vld [vmem:[%s306] sm:$0xf]
      %v326 = vperm.slane %v321, 0
      %vm328 = vcmask 130048
      %v330 = vsel %vm328, %v322, 0
      %v333 = vsel %vm328, %v323, 0
      %335 = vmatpush.bf16.xpose.msra.mxu0 0
      %336 = vmatpush.bf16.xpose.msra.mxu0 0
      %337 = vmatpush.bf16.xpose.msra.mxu0 0
      %338 = vmatpush.bf16.xpose.msra.mxu0 0
      %339 = vmatpush.bf16.xpose.msra.mxu0 0
      %340 = vmatpush.bf16.xpose.msra.mxu0 0
      %341 = vmatpush.bf16.xpose.msra.mxu0 0
      %342 = vmatpush.bf16.xpose.msra.mxu0 %v333
      %343 = vmatmul.bf16.gmra.mxu0 %v330
      %v344 = vpop.f32.mrf.mxu0
      %v345 = vadd.f32 %v326, %v344
      %v346 = vpop.f32.mrf.mxu0
      %347 = vdwg.mxu0
      %vm348 = vcmask 64512
      %v349 = vsel %vm348, %v345, -inf
      %350 = vmax.xlane.f32.xlu0 %v349
      %v351 = vpop.xlane.xlu0 %350
      %v352 = vsub.f32 %v345, %v351
      %v353 = vmul.f32 %v352, 1.442695
      %v354 = vpow.pop %v353
      %v355 = vsel %vm348, %v354, 0.0
      %356 = vadd.xlane.f32.xlu0 %v355
      %v357 = vpop.xlane.xlu0 %356
      %v358 = vrcp.pop %v357
      %v359 = vmul.f32 %v354, %v358
      %v360 = vpack.c.bf16 %v359, %v359
      %v362 = vsel %vm348, %v360, 0
      %vm364 = vcmask 1043456
      %v366 = vsel %vm364, %v324, 0
      %368 = vmatpush.bf16.msra.mxu0 0
      %369 = vmatpush.bf16.msra.mxu0 0
      %370 = vmatpush.bf16.msra.mxu0 0
      %371 = vmatpush.bf16.msra.mxu0 0
      %372 = vmatpush.bf16.msra.mxu0 0
      %373 = vmatpush.bf16.msra.mxu0 0
      %374 = vmatpush.bf16.msra.mxu0 0
      %375 = vmatpush.bf16.msra.mxu0 %v366
      %376 = vmatmul.bf16.gmra.mxu0 %v362
      %v377 = vpop.f32.mrf.mxu0
      %v378 = vadd.f32 0.0, %v377
      %v379 = vpop.f32.mrf.mxu0
      %380 = vdwg.mxu0
      %v381 = vpack.c.bf16 %v378, %v378
      %vm382 = vcmask 125952
      %383 = vst.msk [vmem:[%s319] sm:$0xf] %vm382, %v381
      %v385 = vunpack.c.l.b16 %v322
      %v386 = vpack.c.b16 %v385, %v385
      %387 = vrot.lane.b32.xlu0 %v386, 112
      %v388 = vpop.permute.xlu0 %387
      %v390 = vunpack.c.l.b16 %v323
      %v391 = vpack.c.b16 %v390, %v390
      %392 = vrot.lane.b32.xlu0 %v391, 112
      %v393 = vpop.permute.xlu0 %392
      %v395 = vsel %vm328, %v388, 0
      %v398 = vsel %vm328, %v393, 0
      %400 = vmatpush.bf16.xpose.msra.mxu0 0
      %401 = vmatpush.bf16.xpose.msra.mxu0 0
      %402 = vmatpush.bf16.xpose.msra.mxu0 0
      %403 = vmatpush.bf16.xpose.msra.mxu0 0
      %404 = vmatpush.bf16.xpose.msra.mxu0 0
      %405 = vmatpush.bf16.xpose.msra.mxu0 0
      %406 = vmatpush.bf16.xpose.msra.mxu0 0
      %407 = vmatpush.bf16.xpose.msra.mxu0 %v398
      %408 = vmatmul.bf16.gmra.mxu0 %v395
      %v409 = vpop.f32.mrf.mxu0
      %v410 = vadd.f32 %v326, %v409
      %v411 = vpop.f32.mrf.mxu0
      %412 = vdwg.mxu0
      %v413 = vsel %vm348, %v410, -inf
      %414 = vmax.xlane.f32.xlu0 %v413
      %v415 = vpop.xlane.xlu0 %414
      %v416 = vsub.f32 %v410, %v415
      %v417 = vmul.f32 %v416, 1.442695
      %v418 = vpow.pop %v417
      %v419 = vsel %vm348, %v418, 0.0
      %420 = vadd.xlane.f32.xlu0 %v419
      %v421 = vpop.xlane.xlu0 %420
      %v422 = vrcp.pop %v421
      %v423 = vmul.f32 %v418, %v422
      %v424 = vpack.c.bf16 %v423, %v423
      %v426 = vunpack.c.l.b16 %v324
      %v427 = vpack.c.b16 %v426, %v426
      %428 = vrot.lane.b32.xlu0 %v427, 112
      %v429 = vpop.permute.xlu0 %428
      %v431 = vsel %vm348, %v424, 0
      %v434 = vsel %vm364, %v429, 0
      %436 = vmatpush.bf16.msra.mxu0 0
      %437 = vmatpush.bf16.msra.mxu0 0
      %438 = vmatpush.bf16.msra.mxu0 0
      %439 = vmatpush.bf16.msra.mxu0 0
      %440 = vmatpush.bf16.msra.mxu0 0
      %441 = vmatpush.bf16.msra.mxu0 0
      %442 = vmatpush.bf16.msra.mxu0 0
      %443 = vmatpush.bf16.msra.mxu0 %v434
      %444 = vmatmul.bf16.gmra.mxu0 %v431
      %v445 = vpop.f32.mrf.mxu0
      %v446 = vadd.f32 0.0, %v445
      %v447 = vpop.f32.mrf.mxu0
      %448 = vdwg.mxu0
      %v449 = vpack.c.bf16 %v446, %v446
      %451 = vrot.lane.b32.xlu0 %v449, 16
      %v452 = vpop.permute.xlu0 %451
      %vm454 = vcmask 257152
      %455 = vst.msk [vmem:[%s319] sm:$0xf] %vm454, %v452
      %p456 = scmp.lt.s32.totalorder %s20, 3
      %s457 = scalar_select %p456, %s20, 3
      %p458 = scmp.lt.s32.totalorder %s22, 0
      %s459 = scalar_select %p458, %s22, 0
      %p460 = scmp.lt.s32.totalorder %s21, 0
      %s461 = scalar_select %p460, %s21, 0
      %s462 = sadd.s32 %s461, %s459
      %s463 = sadd.s32 %s462, %s457
      %s464 = smul.addr %s463, 4
      %s465 = scalar_lea.vmem %s4, %s464
      // Predicated region
      $region37: #{forward.34} parent=35 // pred_check
        %p466 = pneg %p168
      $region38: #{forward.34} parent=35 // pred_check_branch
        %468 = sbr.rel (%p466) target = $region40
      $region39: #{forward.34} parent=35 // pred_region
        _
      $region40: #{forward.34} parent=35 // pred_fallthru
        _
    $region36: #{forward.34} parent=5 // pred_fallthru
      _
    %p469 = scmp.le.s32.totalorder 2, %s10
    // Predicated region
    $region41: #{forward.34} parent=5 // pred_check
      %p470 = pneg %p469
    $region42: #{forward.34} parent=5 // pred_check_branch
      %472 = sbr.rel (%p470) target = $region44
    $region43: #{forward.34} parent=5 // pred_region
      %s473 = ssub.s32 %s10, 2
      // Predicated region
      $region45: #{forward.34} parent=43 // pred_check
        %p474 = pneg %p174
      $region46: #{forward.34} parent=43 // pred_check_branch
        %476 = sbr.rel (%p474) target = $region48
      $region47: #{forward.34} parent=43 // pred_region
        %p477 = scmp.lt.s32.totalorder %s23, 3
        %s478 = scalar_select %p477, %s23, 3
        %p479 = scmp.lt.s32.totalorder %s25, 0
        %s480 = scalar_select %p479, %s25, 0
        %p481 = scmp.lt.s32.totalorder %s24, 0
        %s482 = scalar_select %p481, %s24, 0
        %s483 = sadd.s32 %s482, %s480
        %s484 = sadd.s32 %s483, %s478
        %s485 = smul.addr %s484, 4
        %s486 = scalar_lea.vmem %s4, %s485
      $region48: #{forward.34} parent=43 // pred_fallthru
        _
    $region44: #{forward.34} parent=5 // pred_fallthru
      _
  $region6: #{forward.34} parent=0 // loop_footer
    %s14 = sadd.s32 1, %s10
  $region7: #{forward.34} parent=0 // loop_footer_branch
    %9 = sbr.rel target = $region3
  $region8: #{forward.34} parent=0 // loop_exit
    _

// kernel: forward.35
$region0: #{forward.35}
  #allocation0 [shape = 'u32[]', space=smem, size = 0x4, offset = 0x4, fixed_abs, tag = 'smem constant byte address 0x4 - core index']
  #allocation1 [shape = 'u32[72,128]{1,0:T(1,128)}', space=vmem, size = 0x9000, scoped, tag = 'internal scratch']
  %s0 = inlined_call_operand.vmem [shape: bf16[32,32], index: 0, kind: input, shape index: {}]
  %s1 = inlined_call_operand.vmem [shape: bf16[32,32], index: 1, kind: input, shape index: {}]
  %s2 = inlined_call_operand.vmem [shape: f32[1,32], index: 2, kind: input, shape index: {}]
  %s3 = inlined_call_operand.vmem [shape: bf16[32,32], index: 3, kind: input, shape index: {}]
  %s4 = inlined_call_operand.vmem [shape: f32[1,32], index: 4, kind: input, shape index: {}]
  %s5 = inlined_call_operand.vmem [shape: f32[1,32], index: 5, kind: input, shape index: {}]
  %s6 = inlined_call_operand.vmem [shape: bf16[32,32], index: 6, kind: output, shape index: {}]
  %s7 = sld [smem:[#allocation0]]
  $region34: #{forward.35} parent=0
    _
  %s9 = ssub.s32 1, %s7
  %s10 = scalar_select 0, %s9, %s7
  // Predicated region
  $region2: #{forward.35} parent=0 // pred_check
    _
  $region3: #{forward.35} parent=0 // pred_check_branch
    %12 = sbr.rel (0) target = $region5
  $region4: #{forward.35} parent=0 // pred_region
    _
  $region5: #{forward.35} parent=0 // pred_fallthru
    _
  // Predicated region
  $region6: #{forward.35} parent=0 // pred_check
    _
  $region7: #{forward.35} parent=0 // pred_check_branch
    %14 = sbr.rel (0) target = $region9
  $region8: #{forward.35} parent=0 // pred_region
    _
  $region9: #{forward.35} parent=0 // pred_fallthru
    _
  // Predicated region
  $region10: #{forward.35} parent=0 // pred_check
    _
  $region11: #{forward.35} parent=0 // pred_check_branch
    %16 = sbr.rel (0) target = $region13
  $region12: #{forward.35} parent=0 // pred_region
    _
  $region13: #{forward.35} parent=0 // pred_fallthru
    _
  // Predicated region
  $region14: #{forward.35} parent=0 // pred_check
    _
  $region15: #{forward.35} parent=0 // pred_check_branch
    %18 = sbr.rel (0) target = $region17
  $region16: #{forward.35} parent=0 // pred_region
    _
  $region17: #{forward.35} parent=0 // pred_fallthru
    _
  // Predicated region
  $region18: #{forward.35} parent=0 // pred_check
    _
  $region19: #{forward.35} parent=0 // pred_check_branch
    %20 = sbr.rel (0) target = $region21
  $region20: #{forward.35} parent=0 // pred_region
    _
  $region21: #{forward.35} parent=0 // pred_fallthru
    _
  // Predicated region
  $region22: #{forward.35} parent=0 // pred_check
    _
  $region23: #{forward.35} parent=0 // pred_check_branch
    %22 = sbr.rel (0) target = $region25
  $region24: #{forward.35} parent=0 // pred_region
    _
  $region25: #{forward.35} parent=0 // pred_fallthru
    _
  %v24 = vld [vmem:[%s0] sm:$0xf]
  %v25 = vld [vmem:[%s0 + $0x4] sm:$0xf]
  %v26 = vld [vmem:[%s0 + $0x8] sm:$0xf]
  %v27 = vld [vmem:[%s0 + $0xc] sm:$0xf]
  %v28 = vld [vmem:[%s1] sm:$0xf]
  %v29 = vld [vmem:[%s1 + $0x4] sm:$0xf]
  %v30 = vld [vmem:[%s1 + $0x8] sm:$0xf]
  %v31 = vld [vmem:[%s1 + $0xc] sm:$0xf]
  %v32 = vld [vmem:[%s2] sm:$0x1]
  %v34 = vperm.slane %v32, 0
  %v40 = vunpack.c.l.b16 %v24
  %v41 = vunpack.c.l.b16 %v25
  %v42 = vunpack.c.l.b16 %v26
  %v43 = vunpack.c.l.b16 %v27
  %v44 = vpack.c.b16 %v41, %v40
  %v45 = vpack.c.b16 %v43, %v42
  %v50 = vunpack.c.l.b16 %v28
  %v51 = vunpack.c.l.b16 %v29
  %v52 = vunpack.c.l.b16 %v30
  %v53 = vunpack.c.l.b16 %v31
  %v54 = vpack.c.b16 %v51, %v50
  %v55 = vpack.c.b16 %v53, %v52
  %vm58 = vcmask 261120
  %v60 = vsel %vm58, %v44, 0
  %v63 = vsel %vm58, %v45, 0
  %65 = vmatpush.bf16.msra.mxu0 0
  %66 = vmatpush.bf16.msra.mxu0 0
  %67 = vmatpush.bf16.msra.mxu0 0
  %68 = vmatpush.bf16.msra.mxu0 0
  %69 = vmatpush.bf16.msra.mxu0 0
  %70 = vmatpush.bf16.msra.mxu0 0
  %71 = vmatpush.bf16.msra.mxu0 %v55
  %72 = vmatpush.bf16.msra.mxu0 %v54
  %73 = vmatmul.bf16.gmra.mxu0 %v60
  %v74 = vpop.f32.mrf.mxu0
  %v75 = vadd.f32 %v34, %v74
  %v76 = vpop.f32.mrf.mxu0
  %v77 = vadd.f32 %v34, %v76
  %78 = vmatmul.bf16.gmra.mxu0 %v63
  %v79 = vpop.f32.mrf.mxu0
  %v80 = vadd.f32 %v34, %v79
  %v81 = vpop.f32.mrf.mxu0
  %v82 = vadd.f32 %v34, %v81
  %83 = vdwg.mxu0
  %v84 = vld [vmem:[%s3] sm:$0xf]
  %v85 = vld [vmem:[%s3 + $0x4] sm:$0xf]
  %v86 = vld [vmem:[%s3 + $0x8] sm:$0xf]
  %v87 = vld [vmem:[%s3 + $0xc] sm:$0xf]
  %v88 = vunpack.c.l.bf16 %v84
  %v89 = vunpack.c.l.bf16 %v85
  %v90 = vunpack.c.l.bf16 %v86
  %v91 = vunpack.c.l.bf16 %v87
  %v92 = vadd.f32 %v75, %v88
  %v93 = vadd.f32 %v77, %v89
  %v94 = vadd.f32 %v80, %v90
  %v95 = vadd.f32 %v82, %v91
  %v96 = vsel %vm58, %v92, 0.0
  %97 = vadd.xlane.f32.xlu0 %v96
  %v98 = vpop.xlane.xlu0 %97
  %v99 = vsel %vm58, %v93, 0.0
  %100 = vadd.xlane.f32.xlu0 %v99
  %v101 = vpop.xlane.xlu0 %100
  %v102 = vsel %vm58, %v94, 0.0
  %103 = vadd.xlane.f32.xlu0 %v102
  %v104 = vpop.xlane.xlu0 %103
  %v105 = vsel %vm58, %v95, 0.0
  %106 = vadd.xlane.f32.xlu0 %v105
  %v107 = vpop.xlane.xlu0 %106
  %v108 = vrcp.pop 32.0
  %v109 = vmul.f32 32.0, %v108
  %v110 = vsub.f32 1.0, %v109
  %v111 = vmul.f32 %v108, %v110
  %v112 = vadd.f32 %v108, %v111
  %vm113 = vweird.f32 %v108
  %v114 = vsel %vm113, %v108, %v112
  %v115 = vmul.f32 %v98, %v114
  %v116 = vmul.f32 %v101, %v114
  %v117 = vmul.f32 %v104, %v114
  %v118 = vmul.f32 %v107, %v114
  %v119 = vsub.f32 %v92, %v115
  %v120 = vsub.f32 %v93, %v116
  %v121 = vsub.f32 %v94, %v117
  %v122 = vsub.f32 %v95, %v118
  %v123 = vmul.f32 %v119, %v119
  %v124 = vmul.f32 %v120, %v120
  %v125 = vmul.f32 %v121, %v121
  %v126 = vmul.f32 %v122, %v122
  %v127 = vsel %vm58, %v123, 0.0
  %128 = vadd.xlane.f32.xlu0 %v127
  %v129 = vpop.xlane.xlu0 %128
  %v130 = vsel %vm58, %v124, 0.0
  %131 = vadd.xlane.f32.xlu0 %v130
  %v132 = vpop.xlane.xlu0 %131
  %v133 = vsel %vm58, %v125, 0.0
  %134 = vadd.xlane.f32.xlu0 %v133
  %v135 = vpop.xlane.xlu0 %134
  %v136 = vsel %vm58, %v126, 0.0
  %137 = vadd.xlane.f32.xlu0 %v136
  %v138 = vpop.xlane.xlu0 %137
  %v139 = vmul.f32 %v129, %v114
  %v140 = vmul.f32 %v132, %v114
  %v141 = vmul.f32 %v135, %v114
  %v142 = vmul.f32 %v138, %v114
  %v143 = vadd.f32 %v139, 1e-12
  %v144 = vadd.f32 %v140, 1e-12
  %v145 = vadd.f32 %v141, 1e-12
  %v146 = vadd.f32 %v142, 1e-12
  %v147 = vrsqrt.pop %v143
  %v148 = vmul.f32 %v147, %v143
  %v149 = vmul.f32 %v148, %v147
  %v150 = vmul.f32 0.5, %v149
  %v151 = vsub.f32 1.5, %v150
  %v152 = vmul.f32 %v147, %v151
  %vm153 = vweird.f32 %v143
  %vm154 = vweird.f32 %v147
  %vm155 = vmor %vm153, %vm154
  %v156 = vsel %vm155, %v147, %v152
  %v157 = vrsqrt.pop %v144
  %v158 = vmul.f32 %v157, %v144
  %v159 = vmul.f32 %v158, %v157
  %v160 = vmul.f32 0.5, %v159
  %v161 = vsub.f32 1.5, %v160
  %v162 = vmul.f32 %v157, %v161
  %vm163 = vweird.f32 %v144
  %vm164 = vweird.f32 %v157
  %vm165 = vmor %vm163, %vm164
  %v166 = vsel %vm165, %v157, %v162
  %v167 = vrsqrt.pop %v145
  %v168 = vmul.f32 %v167, %v145
  %v169 = vmul.f32 %v168, %v167
  %v170 = vmul.f32 0.5, %v169
  %v171 = vsub.f32 1.5, %v170
  %v172 = vmul.f32 %v167, %v171
  %vm173 = vweird.f32 %v145
  %vm174 = vweird.f32 %v167
  %vm175 = vmor %vm173, %vm174
  %v176 = vsel %vm175, %v167, %v172
  %v177 = vrsqrt.pop %v146
  %v178 = vmul.f32 %v177, %v146
  %v179 = vmul.f32 %v178, %v177
  %v180 = vmul.f32 0.5, %v179
  %v181 = vsub.f32 1.5, %v180
  %v182 = vmul.f32 %v177, %v181
  %vm183 = vweird.f32 %v146
  %vm184 = vweird.f32 %v177
  %vm185 = vmor %vm183, %vm184
  %v186 = vsel %vm185, %v177, %v182
  %v187 = vmul.f32 %v119, %v156
  %v188 = vmul.f32 %v120, %v166
  %v189 = vmul.f32 %v121, %v176
  %v190 = vmul.f32 %v122, %v186
  %v191 = vld [vmem:[%s4] sm:$0x1]
  %v193 = vperm.slane %v191, 0
  %v195 = vmul.f32 %v187, %v193
  %v196 = vmul.f32 %v188, %v193
  %v197 = vmul.f32 %v189, %v193
  %v198 = vmul.f32 %v190, %v193
  %v199 = vld [vmem:[%s5] sm:$0x1]
  %v201 = vperm.slane %v199, 0
  %v203 = vadd.f32 %v195, %v201
  %v204 = vadd.f32 %v196, %v201
  %v205 = vadd.f32 %v197, %v201
  %v206 = vadd.f32 %v198, %v201
  %v207 = vpack.c.bf16 %v203, %v203
  %v208 = vpack.c.bf16 %v204, %v204
  %v209 = vpack.c.bf16 %v205, %v205
  %v210 = vpack.c.bf16 %v206, %v206
  %vm211 = vcmask 257024
  %212 = vst.msk [vmem:[%s6] sm:$0xf] %vm211, %v207
  %213 = vst.msk [vmem:[%s6 + $0x4] sm:$0xf] %vm211, %v208
  %214 = vst.msk [vmem:[%s6 + $0x8] sm:$0xf] %vm211, %v209
  %215 = vst.msk [vmem:[%s6 + $0xc] sm:$0xf] %vm211, %v210
  // Predicated region
  $region26: #{forward.35} parent=0 // pred_check
    _
  $region27: #{forward.35} parent=0 // pred_check_branch
    %217 = sbr.rel (0) target = $region29
  $region28: #{forward.35} parent=0 // pred_region
    _
  $region29: #{forward.35} parent=0 // pred_fallthru
    _
  // Predicated region
  $region30: #{forward.35} parent=0 // pred_check
    _
  $region31: #{forward.35} parent=0 // pred_check_branch
    %219 = sbr.rel (0) target = $region33
  $region32: #{forward.35} parent=0 // pred_region
    _
  $region33: #{forward.35} parent=0 // pred_fallthru
    _

// kernel: forward.36
$region0: #{forward.36}
  #allocation0 [shape = 'u32[]', space=smem, size = 0x4, offset = 0x4, fixed_abs, tag = 'smem constant byte address 0x4 - core index']
  #allocation1 [shape = 'u32[72,128]{1,0:T(1,128)}', space=vmem, size = 0x9000, scoped, tag = 'internal scratch']
  %s0 = inlined_call_operand.vmem [shape: bf16[32,32], index: 0, kind: input, shape index: {}]
  %s1 = inlined_call_operand.vmem [shape: bf16[32,64], index: 1, kind: input, shape index: {}]
  %s2 = inlined_call_operand.vmem [shape: f32[1,64], index: 2, kind: input, shape index: {}]
  %s3 = inlined_call_operand.vmem [shape: bf16[64,32], index: 3, kind: input, shape index: {}]
  %s4 = inlined_call_operand.vmem [shape: f32[1,32], index: 4, kind: input, shape index: {}]
  %s5 = inlined_call_operand.vmem [shape: f32[1,32], index: 5, kind: input, shape index: {}]
  %s6 = inlined_call_operand.vmem [shape: f32[1,32], index: 6, kind: input, shape index: {}]
  %s7 = inlined_call_operand.vmem [shape: bf16[32,32], index: 7, kind: output, shape index: {}]
  %s8 = sld [smem:[#allocation0]]
  $region38: #{forward.36} parent=0
    _
  %s10 = ssub.s32 1, %s8
  %s11 = scalar_select 0, %s10, %s8
  // Predicated region
  $region2: #{forward.36} parent=0 // pred_check
    _
  $region3: #{forward.36} parent=0 // pred_check_branch
    %13 = sbr.rel (0) target = $region5
  $region4: #{forward.36} parent=0 // pred_region
    _
  $region5: #{forward.36} parent=0 // pred_fallthru
    _
  // Predicated region
  $region6: #{forward.36} parent=0 // pred_check
    _
  $region7: #{forward.36} parent=0 // pred_check_branch
    %15 = sbr.rel (0) target = $region9
  $region8: #{forward.36} parent=0 // pred_region
    _
  $region9: #{forward.36} parent=0 // pred_fallthru
    _
  // Predicated region
  $region10: #{forward.36} parent=0 // pred_check
    _
  $region11: #{forward.36} parent=0 // pred_check_branch
    %17 = sbr.rel (0) target = $region13
  $region12: #{forward.36} parent=0 // pred_region
    _
  $region13: #{forward.36} parent=0 // pred_fallthru
    _
  // Predicated region
  $region14: #{forward.36} parent=0 // pred_check
    _
  $region15: #{forward.36} parent=0 // pred_check_branch
    %19 = sbr.rel (0) target = $region17
  $region16: #{forward.36} parent=0 // pred_region
    _
  $region17: #{forward.36} parent=0 // pred_fallthru
    _
  // Predicated region
  $region18: #{forward.36} parent=0 // pred_check
    _
  $region19: #{forward.36} parent=0 // pred_check_branch
    %21 = sbr.rel (0) target = $region21
  $region20: #{forward.36} parent=0 // pred_region
    _
  $region21: #{forward.36} parent=0 // pred_fallthru
    _
  // Predicated region
  $region22: #{forward.36} parent=0 // pred_check
    _
  $region23: #{forward.36} parent=0 // pred_check_branch
    %23 = sbr.rel (0) target = $region25
  $region24: #{forward.36} parent=0 // pred_region
    _
  $region25: #{forward.36} parent=0 // pred_fallthru
    _
  // Predicated region
  $region26: #{forward.36} parent=0 // pred_check
    _
  $region27: #{forward.36} parent=0 // pred_check_branch
    %25 = sbr.rel (0) target = $region29
  $region28: #{forward.36} parent=0 // pred_region
    _
  $region29: #{forward.36} parent=0 // pred_fallthru
    _
  %v27 = vld [vmem:[%s0] sm:$0xf]
  %v28 = vld [vmem:[%s0 + $0x4] sm:$0xf]
  %v29 = vld [vmem:[%s0 + $0x8] sm:$0xf]
  %v30 = vld [vmem:[%s0 + $0xc] sm:$0xf]
  %v31 = vld [vmem:[%s1] sm:$0xf]
  %v32 = vld [vmem:[%s1 + $0x4] sm:$0xf]
  %v33 = vld [vmem:[%s1 + $0x8] sm:$0xf]
  %v34 = vld [vmem:[%s1 + $0xc] sm:$0xf]
  %v35 = vld [vmem:[%s2] sm:$0x1]
  %v37 = vperm.slane %v35, 0
  %v43 = vunpack.c.l.b16 %v27
  %v44 = vunpack.c.l.b16 %v28
  %v45 = vunpack.c.l.b16 %v29
  %v46 = vunpack.c.l.b16 %v30
  %v47 = vpack.c.b16 %v44, %v43
  %v48 = vpack.c.b16 %v46, %v45
  %v53 = vunpack.c.l.b16 %v31
  %v54 = vunpack.c.l.b16 %v32
  %v55 = vunpack.c.l.b16 %v33
  %v56 = vunpack.c.l.b16 %v34
  %v57 = vpack.c.b16 %v54, %v53
  %v58 = vpack.c.b16 %v56, %v55
  %vm61 = vcmask 261120
  %v63 = vsel %vm61, %v47, 0
  %v66 = vsel %vm61, %v48, 0
  %68 = vmatpush.bf16.msra.mxu0 0
  %69 = vmatpush.bf16.msra.mxu0 0
  %70 = vmatpush.bf16.msra.mxu0 0
  %71 = vmatpush.bf16.msra.mxu0 0
  %72 = vmatpush.bf16.msra.mxu0 0
  %73 = vmatpush.bf16.msra.mxu0 0
  %74 = vmatpush.bf16.msra.mxu0 %v58
  %75 = vmatpush.bf16.msra.mxu0 %v57
  %76 = vmatmul.bf16.gmra.mxu0 %v63
  %v77 = vpop.f32.mrf.mxu0
  %v78 = vadd.f32 %v37, %v77
  %v79 = vpop.f32.mrf.mxu0
  %v80 = vadd.f32 %v37, %v79
  %81 = vmatmul.bf16.gmra.mxu0 %v66
  %v82 = vpop.f32.mrf.mxu0
  %v83 = vadd.f32 %v37, %v82
  %v84 = vpop.f32.mrf.mxu0
  %v85 = vadd.f32 %v37, %v84
  %86 = vdwg.mxu0
  %v87 = vmul.f32 %v78, %v78
  %v88 = vmul.f32 %v80, %v80
  %v89 = vmul.f32 %v83, %v83
  %v90 = vmul.f32 %v85, %v85
  %v91 = vmul.f32 %v78, %v87
  %v92 = vmul.f32 %v80, %v88
  %v93 = vmul.f32 %v83, %v89
  %v94 = vmul.f32 %v85, %v90
  %v95 = vmul.f32 %v91, 0.044715
  %v96 = vmul.f32 %v92, 0.044715
  %v97 = vmul.f32 %v93, 0.044715
  %v98 = vmul.f32 %v94, 0.044715
  %v99 = vadd.f32 %v78, %v95
  %v100 = vadd.f32 %v80, %v96
  %v101 = vadd.f32 %v83, %v97
  %v102 = vadd.f32 %v85, %v98
  %v103 = vmul.f32 %v99, 0.7978846
  %v104 = vmul.f32 %v100, 0.7978846
  %v105 = vmul.f32 %v101, 0.7978846
  %v106 = vmul.f32 %v102, 0.7978846
  %v107 = vtanh.pop %v103
  %v108 = vtanh.pop %v104
  %v109 = vtanh.pop %v105
  %v110 = vtanh.pop %v106
  %v111 = vadd.f32 %v107, 1.0
  %v112 = vadd.f32 %v108, 1.0
  %v113 = vadd.f32 %v109, 1.0
  %v114 = vadd.f32 %v110, 1.0
  %v115 = vmul.f32 %v111, 0.5
  %v116 = vmul.f32 %v112, 0.5
  %v117 = vmul.f32 %v113, 0.5
  %v118 = vmul.f32 %v114, 0.5
  %v119 = vmul.f32 %v78, %v115
  %v120 = vmul.f32 %v80, %v116
  %v121 = vmul.f32 %v83, %v117
  %v122 = vmul.f32 %v85, %v118
  %v123 = vpack.c.bf16 %v120, %v119
  %v124 = vpack.c.bf16 %v122, %v121
  %v125 = vld [vmem:[%s3] sm:$0xf]
  %v126 = vld [vmem:[%s3 + $0x4] sm:$0xf]
  %v127 = vld [vmem:[%s3 + $0x8] sm:$0xf]
  %v128 = vld [vmem:[%s3 + $0xc] sm:$0xf]
  %v129 = vld [vmem:[%s3 + $0x10] sm:$0xf]
  %v130 = vld [vmem:[%s3 + $0x14] sm:$0xf]
  %v131 = vld [vmem:[%s3 + $0x18] sm:$0xf]
  %v132 = vld [vmem:[%s3 + $0x1c] sm:$0xf]
  %v133 = vld [vmem:[%s4] sm:$0x1]
  %v135 = vperm.slane %v133, 0
  %v145 = vunpack.c.l.b16 %v125
  %v146 = vunpack.c.l.b16 %v126
  %v147 = vunpack.c.l.b16 %v127
  %v148 = vunpack.c.l.b16 %v128
  %v149 = vunpack.c.l.b16 %v129
  %v150 = vunpack.c.l.b16 %v130
  %v151 = vunpack.c.l.b16 %v131
  %v152 = vunpack.c.l.b16 %v132
  %v153 = vpack.c.b16 %v146, %v145
  %v154 = vpack.c.b16 %v148, %v147
  %v155 = vpack.c.b16 %v150, %v149
  %v156 = vpack.c.b16 %v152, %v151
  %vm161 = vcmask 523264
  %v163 = vsel %vm161, %v123, 0
  %v166 = vsel %vm161, %v124, 0
  %168 = vmatpush.bf16.msra.mxu0 0
  %169 = vmatpush.bf16.msra.mxu0 0
  %170 = vmatpush.bf16.msra.mxu0 0
  %171 = vmatpush.bf16.msra.mxu0 0
  %172 = vmatpush.bf16.msra.mxu0 %v156
  %173 = vmatpush.bf16.msra.mxu0 %v155
  %174 = vmatpush.bf16.msra.mxu0 %v154
  %175 = vmatpush.bf16.msra.mxu0 %v153
  %176 = vmatmul.bf16.gmra.mxu0 %v163
  %v177 = vpop.f32.mrf.mxu0
  %v178 = vadd.f32 %v135, %v177
  %v179 = vpop.f32.mrf.mxu0
  %v180 = vadd.f32 %v135, %v179
  %181 = vmatmul.bf16.gmra.mxu0 %v166
  %v182 = vpop.f32.mrf.mxu0
  %v183 = vadd.f32 %v135, %v182
  %v184 = vpop.f32.mrf.mxu0
  %v185 = vadd.f32 %v135, %v184
  %186 = vdwg.mxu0
  %v187 = vunpack.c.l.bf16 %v27
  %v188 = vunpack.c.l.bf16 %v28
  %v189 = vunpack.c.l.bf16 %v29
  %v190 = vunpack.c.l.bf16 %v30
  %v191 = vadd.f32 %v178, %v187
  %v192 = vadd.f32 %v180, %v188
  %v193 = vadd.f32 %v183, %v189
  %v194 = vadd.f32 %v185, %v190
  %v195 = vsel %vm61, %v191, 0.0
  %196 = vadd.xlane.f32.xlu0 %v195
  %v197 = vpop.xlane.xlu0 %196
  %v198 = vsel %vm61, %v192, 0.0
  %199 = vadd.xlane.f32.xlu0 %v198
  %v200 = vpop.xlane.xlu0 %199
  %v201 = vsel %vm61, %v193, 0.0
  %202 = vadd.xlane.f32.xlu0 %v201
  %v203 = vpop.xlane.xlu0 %202
  %v204 = vsel %vm61, %v194, 0.0
  %205 = vadd.xlane.f32.xlu0 %v204
  %v206 = vpop.xlane.xlu0 %205
  %v207 = vrcp.pop 32.0
  %v208 = vmul.f32 32.0, %v207
  %v209 = vsub.f32 1.0, %v208
  %v210 = vmul.f32 %v207, %v209
  %v211 = vadd.f32 %v207, %v210
  %vm212 = vweird.f32 %v207
  %v213 = vsel %vm212, %v207, %v211
  %v214 = vmul.f32 %v197, %v213
  %v215 = vmul.f32 %v200, %v213
  %v216 = vmul.f32 %v203, %v213
  %v217 = vmul.f32 %v206, %v213
  %v218 = vsub.f32 %v191, %v214
  %v219 = vsub.f32 %v192, %v215
  %v220 = vsub.f32 %v193, %v216
  %v221 = vsub.f32 %v194, %v217
  %v222 = vmul.f32 %v218, %v218
  %v223 = vmul.f32 %v219, %v219
  %v224 = vmul.f32 %v220, %v220
  %v225 = vmul.f32 %v221, %v221
  %v226 = vsel %vm61, %v222, 0.0
  %227 = vadd.xlane.f32.xlu0 %v226
  %v228 = vpop.xlane.xlu0 %227
  %v229 = vsel %vm61, %v223, 0.0
  %230 = vadd.xlane.f32.xlu0 %v229
  %v231 = vpop.xlane.xlu0 %230
  %v232 = vsel %vm61, %v224, 0.0
  %233 = vadd.xlane.f32.xlu0 %v232
  %v234 = vpop.xlane.xlu0 %233
  %v235 = vsel %vm61, %v225, 0.0
  %236 = vadd.xlane.f32.xlu0 %v235
  %v237 = vpop.xlane.xlu0 %236
  %v238 = vmul.f32 %v228, %v213
  %v239 = vmul.f32 %v231, %v213
  %v240 = vmul.f32 %v234, %v213
  %v241 = vmul.f32 %v237, %v213
  %v242 = vadd.f32 %v238, 1e-12
  %v243 = vadd.f32 %v239, 1e-12
  %v244 = vadd.f32 %v240, 1e-12
  %v245 = vadd.f32 %v241, 1e-12
  %v246 = vrsqrt.pop %v242
  %v247 = vmul.f32 %v246, %v242
  %v248 = vmul.f32 %v247, %v246
  %v249 = vmul.f32 0.5, %v248
  %v250 = vsub.f32 1.5, %v249
  %v251 = vmul.f32 %v246, %v250
  %vm252 = vweird.f32 %v242
  %vm253 = vweird.f32 %v246
  %vm254 = vmor %vm252, %vm253
  %v255 = vsel %vm254, %v246, %v251
  %v256 = vrsqrt.pop %v243
  %v257 = vmul.f32 %v256, %v243
  %v258 = vmul.f32 %v257, %v256
  %v259 = vmul.f32 0.5, %v258
  %v260 = vsub.f32 1.5, %v259
  %v261 = vmul.f32 %v256, %v260
  %vm262 = vweird.f32 %v243
  %vm263 = vweird.f32 %v256
  %vm264 = vmor %vm262, %vm263
  %v265 = vsel %vm264, %v256, %v261
  %v266 = vrsqrt.pop %v244
  %v267 = vmul.f32 %v266, %v244
  %v268 = vmul.f32 %v267, %v266
  %v269 = vmul.f32 0.5, %v268
  %v270 = vsub.f32 1.5, %v269
  %v271 = vmul.f32 %v266, %v270
  %vm272 = vweird.f32 %v244
  %vm273 = vweird.f32 %v266
  %vm274 = vmor %vm272, %vm273
  %v275 = vsel %vm274, %v266, %v271
  %v276 = vrsqrt.pop %v245
  %v277 = vmul.f32 %v276, %v245
  %v278 = vmul.f32 %v277, %v276
  %v279 = vmul.f32 0.5, %v278
  %v280 = vsub.f32 1.5, %v279
  %v281 = vmul.f32 %v276, %v280
  %vm282 = vweird.f32 %v245
  %vm283 = vweird.f32 %v276
  %vm284 = vmor %vm282, %vm283
  %v285 = vsel %vm284, %v276, %v281
  %v286 = vmul.f32 %v218, %v255
  %v287 = vmul.f32 %v219, %v265
  %v288 = vmul.f32 %v220, %v275
  %v289 = vmul.f32 %v221, %v285
  %v290 = vld [vmem:[%s5] sm:$0x1]
  %v292 = vperm.slane %v290, 0
  %v294 = vmul.f32 %v286, %v292
  %v295 = vmul.f32 %v287, %v292
  %v296 = vmul.f32 %v288, %v292
  %v297 = vmul.f32 %v289, %v292
  %v298 = vld [vmem:[%s6] sm:$0x1]
  %v300 = vperm.slane %v298, 0
  %v302 = vadd.f32 %v294, %v300
  %v303 = vadd.f32 %v295, %v300
  %v304 = vadd.f32 %v296, %v300
  %v305 = vadd.f32 %v297, %v300
  %v306 = vpack.c.bf16 %v302, %v302
  %v307 = vpack.c.bf16 %v303, %v303
  %v308 = vpack.c.bf16 %v304, %v304
  %v309 = vpack.c.bf16 %v305, %v305
  %vm310 = vcmask 257024
  %311 = vst.msk [vmem:[%s7] sm:$0xf] %vm310, %v306
  %312 = vst.msk [vmem:[%s7 + $0x4] sm:$0xf] %vm310, %v307
  %313 = vst.msk [vmem:[%s7 + $0x8] sm:$0xf] %vm310, %v308
  %314 = vst.msk [vmem:[%s7 + $0xc] sm:$0xf] %vm310, %v309
  // Predicated region
  $region30: #{forward.36} parent=0 // pred_check
    _
  $region31: #{forward.36} parent=0 // pred_check_branch
    %316 = sbr.rel (0) target = $region33
  $region32: #{forward.36} parent=0 // pred_region
    _
  $region33: #{forward.36} parent=0 // pred_fallthru
    _
  // Predicated region
  $region34: #{forward.36} parent=0 // pred_check
    _
  $region35: #{forward.36} parent=0 // pred_check_branch
    %318 = sbr.rel (0) target = $region37
  $region36: #{forward.36} parent=0 // pred_region
    _
  $region37: #{forward.36} parent=0 // pred_fallthru
    _

// kernel: forward.41
$region0: #{forward.41}
  #allocation0 [shape = 'u32[]', space=smem, size = 0x4, offset = 0x4, fixed_abs, tag = 'smem constant byte address 0x4 - core index']
  #allocation1 [shape = 'u32[72,128]{1,0:T(1,128)}', space=vmem, size = 0x9000, scoped, tag = 'internal scratch']
  %s0 = inlined_call_operand.vmem [shape: bf16[8,32], index: 0, kind: input, shape index: {}]
  %s1 = inlined_call_operand.vmem [shape: bf16[32,32], index: 1, kind: input, shape index: {}]
  %s2 = inlined_call_operand.vmem [shape: f32[1,32], index: 2, kind: input, shape index: {}]
  %s3 = inlined_call_operand.vmem [shape: f32[8,32], index: 3, kind: output, shape index: {}]
  %s4 = sld [smem:[#allocation0]]
  $region22: #{forward.41} parent=0
    _
  %s6 = ssub.s32 1, %s4
  %s7 = scalar_select 0, %s6, %s4
  // Predicated region
  $region2: #{forward.41} parent=0 // pred_check
    _
  $region3: #{forward.41} parent=0 // pred_check_branch
    %9 = sbr.rel (0) target = $region5
  $region4: #{forward.41} parent=0 // pred_region
    _
  $region5: #{forward.41} parent=0 // pred_fallthru
    _
  // Predicated region
  $region6: #{forward.41} parent=0 // pred_check
    _
  $region7: #{forward.41} parent=0 // pred_check_branch
    %11 = sbr.rel (0) target = $region9
  $region8: #{forward.41} parent=0 // pred_region
    _
  $region9: #{forward.41} parent=0 // pred_fallthru
    _
  // Predicated region
  $region10: #{forward.41} parent=0 // pred_check
    _
  $region11: #{forward.41} parent=0 // pred_check_branch
    %13 = sbr.rel (0) target = $region13
  $region12: #{forward.41} parent=0 // pred_region
    _
  $region13: #{forward.41} parent=0 // pred_fallthru
    _
  %v15 = vld [vmem:[%s0] sm:$0xf]
  %v16 = vld [vmem:[%s1] sm:$0xf]
  %v17 = vld [vmem:[%s1 + $0x4] sm:$0xf]
  %v18 = vld [vmem:[%s1 + $0x8] sm:$0xf]
  %v19 = vld [vmem:[%s1 + $0xc] sm:$0xf]
  %v20 = vld [vmem:[%s2] sm:$0x1]
  %v22 = vperm.slane %v20, 0
  %v28 = vunpack.c.l.b16 %v16
  %v29 = vunpack.c.l.b16 %v17
  %v30 = vunpack.c.l.b16 %v18
  %v31 = vunpack.c.l.b16 %v19
  %v32 = vpack.c.b16 %v29, %v28
  %v33 = vpack.c.b16 %v31, %v30
  %vm36 = vcmask 261120
  %v38 = vsel %vm36, %v15, 0
  %40 = vmatpush.bf16.msra.mxu0 0
  %41 = vmatpush.bf16.msra.mxu0 0
  %42 = vmatpush.bf16.msra.mxu0 0
  %43 = vmatpush.bf16.msra.mxu0 0
  %44 = vmatpush.bf16.msra.mxu0 0
  %45 = vmatpush.bf16.msra.mxu0 0
  %46 = vmatpush.bf16.msra.mxu0 %v33
  %47 = vmatpush.bf16.msra.mxu0 %v32
  %48 = vmatmul.bf16.gmra.mxu0 %v38
  %v49 = vpop.f32.mrf.mxu0
  %v50 = vadd.f32 %v22, %v49
  %v51 = vpop.f32.mrf.mxu0
  %52 = vdwg.mxu0
  %v53 = vtanh.pop %v50
  %54 = vst.msk [vmem:[%s3] sm:$0xff] %vm36, %v53
  // Predicated region
  $region14: #{forward.41} parent=0 // pred_check
    _
  $region15: #{forward.41} parent=0 // pred_check_branch
    %56 = sbr.rel (0) target = $region17
  $region16: #{forward.41} parent=0 // pred_region
    _
  $region17: #{forward.41} parent=0 // pred_fallthru
    _
  // Predicated region
  $region18: #{forward.41} parent=0 // pred_check
    _
  $region19: #{forward.41} parent=0 // pred_check_branch
    %58 = sbr.rel (0) target = $region21
  $region20: #{forward.41} parent=0 // pred_region
    _
  $region21: #{forward.41} parent=0 // pred_fallthru
    _

// kernel: forward.42
$region0: #{forward.42}
  #allocation0 [shape = 'u32[]', space=smem, size = 0x4, offset = 0x4, fixed_abs, tag = 'smem constant byte address 0x4 - core index']
  #allocation1 [shape = 'u32[72,128]{1,0:T(1,128)}', space=vmem, size = 0x9000, scoped, tag = 'internal scratch']
  %s0 = inlined_call_operand.vmem [shape: bf16[8,32], index: 0, kind: input, shape index: {}]
  %s1 = inlined_call_operand.vmem [shape: bf16[32,32], index: 1, kind: input, shape index: {}]
  %s2 = inlined_call_operand.vmem [shape: f32[1,32], index: 2, kind: input, shape index: {}]
  %s3 = inlined_call_operand.vmem [shape: bf16[8,32], index: 3, kind: output, shape index: {}]
  %s4 = sld [smem:[#allocation0]]
  $region22: #{forward.42} parent=0
    _
  %s6 = ssub.s32 1, %s4
  %s7 = scalar_select 0, %s6, %s4
  // Predicated region
  $region2: #{forward.42} parent=0 // pred_check
    _
  $region3: #{forward.42} parent=0 // pred_check_branch
    %9 = sbr.rel (0) target = $region5
  $region4: #{forward.42} parent=0 // pred_region
    _
  $region5: #{forward.42} parent=0 // pred_fallthru
    _
  // Predicated region
  $region6: #{forward.42} parent=0 // pred_check
    _
  $region7: #{forward.42} parent=0 // pred_check_branch
    %11 = sbr.rel (0) target = $region9
  $region8: #{forward.42} parent=0 // pred_region
    _
  $region9: #{forward.42} parent=0 // pred_fallthru
    _
  // Predicated region
  $region10: #{forward.42} parent=0 // pred_check
    _
  $region11: #{forward.42} parent=0 // pred_check_branch
    %13 = sbr.rel (0) target = $region13
  $region12: #{forward.42} parent=0 // pred_region
    _
  $region13: #{forward.42} parent=0 // pred_fallthru
    _
  %v15 = vld [vmem:[%s0] sm:$0xf]
  %v16 = vld [vmem:[%s1] sm:$0xf]
  %v17 = vld [vmem:[%s1 + $0x4] sm:$0xf]
  %v18 = vld [vmem:[%s1 + $0x8] sm:$0xf]
  %v19 = vld [vmem:[%s1 + $0xc] sm:$0xf]
  %v20 = vld [vmem:[%s2] sm:$0x1]
  %v22 = vperm.slane %v20, 0
  %v28 = vunpack.c.l.b16 %v16
  %v29 = vunpack.c.l.b16 %v17
  %v30 = vunpack.c.l.b16 %v18
  %v31 = vunpack.c.l.b16 %v19
  %v32 = vpack.c.b16 %v29, %v28
  %v33 = vpack.c.b16 %v31, %v30
  %vm36 = vcmask 261120
  %v38 = vsel %vm36, %v15, 0
  %40 = vmatpush.bf16.msra.mxu0 0
  %41 = vmatpush.bf16.msra.mxu0 0
  %42 = vmatpush.bf16.msra.mxu0 0
  %43 = vmatpush.bf16.msra.mxu0 0
  %44 = vmatpush.bf16.msra.mxu0 0
  %45 = vmatpush.bf16.msra.mxu0 0
  %46 = vmatpush.bf16.msra.mxu0 %v33
  %47 = vmatpush.bf16.msra.mxu0 %v32
  %48 = vmatmul.bf16.gmra.mxu0 %v38
  %v49 = vpop.f32.mrf.mxu0
  %v50 = vadd.f32 %v22, %v49
  %v51 = vpop.f32.mrf.mxu0
  %52 = vdwg.mxu0
  %v53 = vpack.c.bf16 %v50, %v50
  %vm54 = vcmask 257024
  %55 = vst.msk [vmem:[%s3] sm:$0xf] %vm54, %v53
  // Predicated region
  $region14: #{forward.42} parent=0 // pred_check
    _
  $region15: #{forward.42} parent=0 // pred_check_branch
    %57 = sbr.rel (0) target = $region17
  $region16: #{forward.42} parent=0 // pred_region
    _
  $region17: #{forward.42} parent=0 // pred_fallthru
    _
  // Predicated region
  $region18: #{forward.42} parent=0 // pred_check
    _
  $region19: #{forward.42} parent=0 // pred_check_branch
    %59 = sbr.rel (0) target = $region21
  $region20: #{forward.42} parent=0 // pred_region
    _
  $region21: #{forward.42} parent=0 // pred_fallthru
    _

// kernel: forward.45
$region0: #{forward.45}
  #allocation0 [shape = 'u32[]', space=smem, size = 0x4, offset = 0x4, fixed_abs, tag = 'smem constant byte address 0x4 - core index']
  #allocation1 [shape = 'u32[72,128]{1,0:T(1,128)}', space=vmem, size = 0x9000, scoped, tag = 'internal scratch']
  %s0 = inlined_call_operand.vmem [shape: bf16[8,32], index: 0, kind: input, shape index: {}]
  %s1 = inlined_call_operand.vmem [shape: bf16[32,128], index: 1, kind: input, shape index: {}]
  %s2 = inlined_call_operand.vmem [shape: f32[1,128], index: 2, kind: input, shape index: {}]
  %s3 = inlined_call_operand.vmem [shape: f32[8,128], index: 3, kind: output, shape index: {}]
  %s4 = sld [smem:[#allocation0]]
  $region22: #{forward.45} parent=0
    _
  %s6 = ssub.s32 1, %s4
  %s7 = scalar_select 0, %s6, %s4
  // Predicated region
  $region2: #{forward.45} parent=0 // pred_check
    _
  $region3: #{forward.45} parent=0 // pred_check_branch
    %9 = sbr.rel (0) target = $region5
  $region4: #{forward.45} parent=0 // pred_region
    _
  $region5: #{forward.45} parent=0 // pred_fallthru
    _
  // Predicated region
  $region6: #{forward.45} parent=0 // pred_check
    _
  $region7: #{forward.45} parent=0 // pred_check_branch
    %11 = sbr.rel (0) target = $region9
  $region8: #{forward.45} parent=0 // pred_region
    _
  $region9: #{forward.45} parent=0 // pred_fallthru
    _
  // Predicated region
  $region10: #{forward.45} parent=0 // pred_check
    _
  $region11: #{forward.45} parent=0 // pred_check_branch
    %13 = sbr.rel (0) target = $region13
  $region12: #{forward.45} parent=0 // pred_region
    _
  $region13: #{forward.45} parent=0 // pred_fallthru
    _
  %v15 = vld [vmem:[%s0] sm:$0xf]
  %v16 = vld [vmem:[%s1] sm:$0xf]
  %v17 = vld [vmem:[%s1 + $0x4] sm:$0xf]
  %v18 = vld [vmem:[%s1 + $0x8] sm:$0xf]
  %v19 = vld [vmem:[%s1 + $0xc] sm:$0xf]
  %v20 = vld [vmem:[%s2] sm:$0x1]
  %v22 = vperm.slane %v20, 0
  %v28 = vunpack.c.l.b16 %v16
  %v29 = vunpack.c.l.b16 %v17
  %v30 = vunpack.c.l.b16 %v18
  %v31 = vunpack.c.l.b16 %v19
  %v32 = vpack.c.b16 %v29, %v28
  %v33 = vpack.c.b16 %v31, %v30
  %vm36 = vcmask 261120
  %v38 = vsel %vm36, %v15, 0
  %40 = vmatpush.bf16.msra.mxu0 0
  %41 = vmatpush.bf16.msra.mxu0 0
  %42 = vmatpush.bf16.msra.mxu0 0
  %43 = vmatpush.bf16.msra.mxu0 0
  %44 = vmatpush.bf16.msra.mxu0 0
  %45 = vmatpush.bf16.msra.mxu0 0
  %46 = vmatpush.bf16.msra.mxu0 %v33
  %47 = vmatpush.bf16.msra.mxu0 %v32
  %48 = vmatmul.bf16.gmra.mxu0 %v38
  %v49 = vpop.f32.mrf.mxu0
  %v50 = vadd.f32 %v22, %v49
  %v51 = vpop.f32.mrf.mxu0
  %52 = vdwg.mxu0
  %53 = vst [vmem:[%s3] sm:$0xff] %v50
  // Predicated region
  $region14: #{forward.45} parent=0 // pred_check
    _
  $region15: #{forward.45} parent=0 // pred_check_branch
    %55 = sbr.rel (0) target = $region17
  $region16: #{forward.45} parent=0 // pred_region
    _
  $region17: #{forward.45} parent=0 // pred_fallthru
    _
  // Predicated region
  $region18: #{forward.45} parent=0 // pred_check
    _
  $region19: #{forward.45} parent=0 // pred_check_branch
    %57 = sbr.rel (0) target = $region21
  $region20: #{forward.45} parent=0 // pred_region
    _
  $region21: #{forward.45} parent=0 // pred_fallthru
    _

// kernel: forward.44
$region0: #{forward.44}
  #allocation0 [shape = 'u32[]', space=smem, size = 0x4, offset = 0x4, fixed_abs, tag = 'smem constant byte address 0x4 - core index']
  #allocation1 [shape = 'u32[72,128]{1,0:T(1,128)}', space=vmem, size = 0x9000, scoped, tag = 'internal scratch']
  %s0 = inlined_call_operand.vmem [shape: bf16[4,32], index: 0, kind: input, shape index: {}]
  %s1 = inlined_call_operand.vmem [shape: bf16[2,8,32], index: 1, kind: input, shape index: {}]
  %s2 = inlined_call_operand.vmem [shape: f32[2,1,8], index: 2, kind: input, shape index: {}]
  %s3 = inlined_call_operand.vmem [shape: f32[2,32], index: 3, kind: output, shape index: {}]
  %s4 = sld [smem:[#allocation0]]
  $region22: #{forward.44} parent=0
    _
  %s6 = ssub.s32 1, %s4
  %s7 = scalar_select 0, %s6, %s4
  // Predicated region
  $region2: #{forward.44} parent=0 // pred_check
    _
  $region3: #{forward.44} parent=0 // pred_check_branch
    %9 = sbr.rel (0) target = $region5
  $region4: #{forward.44} parent=0 // pred_region
    _
  $region5: #{forward.44} parent=0 // pred_fallthru
    _
  // Predicated region
  $region6: #{forward.44} parent=0 // pred_check
    _
  $region7: #{forward.44} parent=0 // pred_check_branch
    %11 = sbr.rel (0) target = $region9
  $region8: #{forward.44} parent=0 // pred_region
    _
  $region9: #{forward.44} parent=0 // pred_fallthru
    _
  // Predicated region
  $region10: #{forward.44} parent=0 // pred_check
    _
  $region11: #{forward.44} parent=0 // pred_check_branch
    %13 = sbr.rel (0) target = $region13
  $region12: #{forward.44} parent=0 // pred_region
    _
  $region13: #{forward.44} parent=0 // pred_fallthru
    _
  %v15 = vld [vmem:[%s0] sm:$0x3]
  %v16 = vld [vmem:[%s1] sm:$0xf]
  %v17 = vld [vmem:[%s2] sm:$0x1]
  %v19 = vperm.slane %v17, 0
  %vm21 = vcmask 261120
  %v23 = vsel %vm21, %v15, 0
  %v26 = vsel %vm21, %v16, 0
  %28 = vmatpush.bf16.xpose.msra.mxu0 0
  %29 = vmatpush.bf16.xpose.msra.mxu0 0
  %30 = vmatpush.bf16.xpose.msra.mxu0 0
  %31 = vmatpush.bf16.xpose.msra.mxu0 0
  %32 = vmatpush.bf16.xpose.msra.mxu0 0
  %33 = vmatpush.bf16.xpose.msra.mxu0 0
  %34 = vmatpush.bf16.xpose.msra.mxu0 0
  %35 = vmatpush.bf16.xpose.msra.mxu0 %v26
  %36 = vmatmul.bf16.gmra.mxu0 %v23
  %v37 = vpop.f32.mrf.mxu0
  %v38 = vadd.f32 %v19, %v37
  %v39 = vpop.f32.mrf.mxu0
  %40 = vdwg.mxu0
  %vm41 = vcmask 60416
  %v42 = vsel %vm41, %v38, -inf
  %43 = vmax.xlane.f32.xlu0 %v42
  %v44 = vpop.xlane.xlu0 %43
  %v45 = vsub.f32 %v38, %v44
  %v46 = vmul.f32 %v45, 1.442695
  %v47 = vpow.pop %v46
  %v48 = vsel %vm41, %v47, 0.0
  %49 = vadd.xlane.f32.xlu0 %v48
  %v50 = vpop.xlane.xlu0 %49
  %v51 = vrcp.pop %v50
  %v52 = vmul.f32 %v47, %v51
  %v53 = vpack.c.bf16 %v52, %v52
  %vm54 = vcmask 64512
  %v56 = vsel %vm54, %v53, 0
  %vm58 = vcmask 1043456
  %v59 = vsel %vm58, %v16, 0
  %61 = vmatpush.bf16.msra.mxu0 0
  %62 = vmatpush.bf16.msra.mxu0 0
  %63 = vmatpush.bf16.msra.mxu0 0
  %64 = vmatpush.bf16.msra.mxu0 0
  %65 = vmatpush.bf16.msra.mxu0 0
  %66 = vmatpush.bf16.msra.mxu0 0
  %67 = vmatpush.bf16.msra.mxu0 0
  %68 = vmatpush.bf16.msra.mxu0 %v59
  %69 = vmatmul.bf16.gmra.mxu0 %v56
  %v70 = vpop.f32.mrf.mxu0
  %v71 = vadd.f32 0.0, %v70
  %v72 = vpop.f32.mrf.mxu0
  %73 = vdwg.mxu0
  %vm74 = vcmask 257024
  %v75 = vsel %vm74, %v71, 0.0
  %v76 = vrot.slane %v75, 4
  %v77 = vadd.f32 %v75, %v76
  %v78 = vrot.slane %v77, 2
  %v79 = vadd.f32 %v77, %v78
  %v80 = vrot.slane %v79, 1
  %v81 = vadd.f32 %v79, %v80
  %v82 = vrcp.pop 4.0
  %v83 = vmul.f32 4.0, %v82
  %v84 = vsub.f32 1.0, %v83
  %v85 = vmul.f32 %v82, %v84
  %v86 = vadd.f32 %v82, %v85
  %vm87 = vweird.f32 %v82
  %v88 = vsel %vm87, %v82, %v86
  %v89 = vmul.f32 %v81, %v88
  %vm90 = vcmask 253952
  %91 = vst.msk [vmem:[%s3] sm:$0x1] %vm90, %v89
  %s92 = scalar_lea.vmem %s1, 4
  %v93 = vld [vmem:[%s92] sm:$0xf]
  %s94 = scalar_lea.vmem %s2, 1
  %v95 = vld [vmem:[%s94] sm:$0x1]
  %v97 = vperm.slane %v95, 0
  %v100 = vsel %vm21, %v93, 0
  %102 = vmatpush.bf16.xpose.msra.mxu0 0
  %103 = vmatpush.bf16.xpose.msra.mxu0 0
  %104 = vmatpush.bf16.xpose.msra.mxu0 0
  %105 = vmatpush.bf16.xpose.msra.mxu0 0
  %106 = vmatpush.bf16.xpose.msra.mxu0 0
  %107 = vmatpush.bf16.xpose.msra.mxu0 0
  %108 = vmatpush.bf16.xpose.msra.mxu0 0
  %109 = vmatpush.bf16.xpose.msra.mxu0 %v100
  %110 = vmatmul.bf16.gmra.mxu0 %v23
  %v111 = vpop.f32.mrf.mxu0
  %v112 = vadd.f32 %v97, %v111
  %v113 = vpop.f32.mrf.mxu0
  %114 = vdwg.mxu0
  %v115 = vsel %vm41, %v112, -inf
  %116 = vmax.xlane.f32.xlu0 %v115
  %v117 = vpop.xlane.xlu0 %116
  %v118 = vsub.f32 %v112, %v117
  %v119 = vmul.f32 %v118, 1.442695
  %v120 = vpow.pop %v119
  %v121 = vsel %vm41, %v120, 0.0
  %122 = vadd.xlane.f32.xlu0 %v121
  %v123 = vpop.xlane.xlu0 %122
  %v124 = vrcp.pop %v123
  %v125 = vmul.f32 %v120, %v124
  %v126 = vpack.c.bf16 %v125, %v125
  %v128 = vsel %vm54, %v126, 0
  %v130 = vsel %vm58, %v93, 0
  %132 = vmatpush.bf16.msra.mxu0 0
  %133 = vmatpush.bf16.msra.mxu0 0
  %134 = vmatpush.bf16.msra.mxu0 0
  %135 = vmatpush.bf16.msra.mxu0 0
  %136 = vmatpush.bf16.msra.mxu0 0
  %137 = vmatpush.bf16.msra.mxu0 0
  %138 = vmatpush.bf16.msra.mxu0 0
  %139 = vmatpush.bf16.msra.mxu0 %v130
  %140 = vmatmul.bf16.gmra.mxu0 %v128
  %v141 = vpop.f32.mrf.mxu0
  %v142 = vadd.f32 0.0, %v141
  %v143 = vpop.f32.mrf.mxu0
  %144 = vdwg.mxu0
  %v145 = vsel %vm74, %v142, 0.0
  %v146 = vrot.slane %v145, 4
  %v147 = vadd.f32 %v145, %v146
  %v148 = vrot.slane %v147, 2
  %v149 = vadd.f32 %v147, %v148
  %v150 = vrot.slane %v149, 1
  %v151 = vadd.f32 %v149, %v150
  %v152 = vmul.f32 %v151, %v88
  %153 = vst.msk [vmem:[%s3 + $0x1] sm:$0x1] %vm90, %v152
  // Predicated region
  $region14: #{forward.44} parent=0 // pred_check
    _
  $region15: #{forward.44} parent=0 // pred_check_branch
    %155 = sbr.rel (0) target = $region17
  $region16: #{forward.44} parent=0 // pred_region
    _
  $region17: #{forward.44} parent=0 // pred_fallthru
    _
  // Predicated region
  $region18: #{forward.44} parent=0 // pred_check
    _
  $region19: #{forward.44} parent=0 // pred_check_branch
    %157 = sbr.rel (0) target = $region21
  $region20: #{forward.44} parent=0 // pred_region
    _
  $region21: #{forward.44} parent=0 // pred_fallthru
    _

</llo_original>
